<compile_context>
chip_gen: v7x
topology: tpu7x:2x2x1
jax: 0.10.0
libtpu: 0.0.40
codegen_flags: <defaults>
</compile_context>

<pallas_src>
import functools

import jax
import jax.numpy as jnp
from jax import lax
from jax.experimental import pallas as pl
from jax.experimental.pallas import tpu as pltpu


def _round_up(x, m):
    return ((x + m - 1) // m) * m


def _fold_bn(gamma, beta, mean, var, eps=1e-5):
    scale = gamma / jnp.sqrt(var + eps)
    shift = beta - mean * scale
    return scale, shift


# ----------------------------------------------------------------------------
# Fused Pallas kernel: 5 x (conv1d -> folded BN -> tanh) + residual add
# ----------------------------------------------------------------------------
def _postnet_kernel(x_ref, res_ref, *rest, n_layers, K, pad, tile_t, t_valid):
    w_refs = rest[0:n_layers]
    sc_refs = rest[n_layers:2 * n_layers]
    sh_refs = rest[2 * n_layers:3 * n_layers]
    o_ref = rest[3 * n_layers]
    bufs = rest[3 * n_layers + 1: 3 * n_layers + 3]   # ping-pong VMEM scratch

    H = n_layers * pad
    t0 = pl.program_id(1) * tile_t            # first valid output row of this tile

    for l in range(n_layers):
        rows_in = tile_t + 2 * (H - l * pad)
        rows_out = rows_in - (K - 1)
        src = x_ref if l == 0 else bufs[(l - 1) % 2]
        w_ref = w_refs[l]
        cin = w_ref.shape[1]
        cout = w_ref.shape[2]

        # conv1d as K shifted, accumulating MXU matmuls (bf16 x bf16 -> f32 acc).
        acc = jnp.zeros((rows_out, cout), jnp.float32)
        for k in range(K):
            acc = acc + jnp.dot(src[pl.ds(k, rows_out), pl.ds(0, cin)],
                                w_ref[k],
                                preferred_element_type=jnp.float32)

        # folded BatchNorm (eval): y * gamma/sqrt(var+eps) + (beta - mean*scale)
        y = acc * sc_refs[l][...] + sh_refs[l][...]

        if l < n_layers - 1:
            y = jnp.tanh(y)
            # Zero rows whose global time index is outside [0, T): reproduces the
            # next conv layer's zero padding exactly (halo rows must be "padding").
            g = (t0 - (H - (l + 1) * pad)
                 + lax.broadcasted_iota(jnp.int32, y.shape, 0))
            y = jnp.where((g >= 0) & (g < t_valid), y, 0.0)
            dst = bufs[l % 2]
            dst[pl.ds(0, rows_out), pl.ds(0, cout)] = y.astype(dst.dtype)
        else:
            # Last layer: no tanh; add f32 residual; write lane-dense output block.
            o_ref[...] = (y + res_ref[...]).astype(o_ref.dtype)
        # NOTE: dropout in the PyTorch postnet is identity in eval/traced mode.


# ----------------------------------------------------------------------------
# Wrapper: layout prep (time-major, channel pad, halo windows) + pallas_call
# ----------------------------------------------------------------------------
def traced_postnet(mel_outputs, params, kernel_size=5, tile_t=256):
    """mel_outputs: (B, n_mel, T) f32 -> (B, n_mel, T) == mel + postnet(mel)."""
    B, n_mel, T = mel_outputs.shape
    K = kernel_size
    pad = (K - 1) // 2
    L = len(params)
    H = L * pad

    dims = [params[0]["w"].shape[1]] + [p["w"].shape[0] for p in params]
    dims_pad = [_round_up(d, 128) for d in dims]     # lane-dense channel widths
    c0p = dims_pad[0]
    cmid = max(dims_pad[1:L]) if L > 1 else c0p

    tile_t = min(tile_t, _round_up(T, 8))
    t_tiles = -(-T // tile_t)
    t_pad = t_tiles * tile_t
    r0 = tile_t + 2 * H                      # input rows per tile (with full halo)
    r1 = tile_t + 2 * (H - pad)              # max intermediate rows per tile

    # Time-major slab (B, T, C), channel- and time-padded.  Residual stays f32.
    x_tm = jnp.transpose(mel_outputs, (0, 2, 1))
    x_tm = jnp.pad(x_tm, ((0, 0), (0, t_pad - T), (0, c0p - n_mel)))
    residual = x_tm.astype(jnp.float32)
    xp = jnp.pad(x_tm, ((0, 0), (H, H), (0, 0))).astype(jnp.bfloat16)

    # Pre-gather overlapping halo windows, one per time tile: (B, t_tiles, r0, c0p).
    # Overhead is only ~2H/tile_t extra input bytes (vs ~5x for XLA-side im2col).
    xw = jnp.stack([xp[:, i * tile_t:i * tile_t + r0, :] for i in range(t_tiles)],
                   axis=1)

    # Per-layer flattened conv weights (K, C_in_pad, C_out_pad) bf16 + folded BN f32.
    w_list, sc_list, sh_list = [], [], []
    for l, p in enumerate(params):
        c_out, c_in, _ = p["w"].shape
        cinp, coutp = dims_pad[l], dims_pad[l + 1]
        w = jnp.transpose(p["w"], (2, 1, 0))                       # (K, C_in, C_out)
        w = jnp.pad(w, ((0, 0), (0, cinp - c_in), (0, coutp - c_out)))
        w_list.append(w.astype(jnp.bfloat16))
        scale, shift = _fold_bn(p["gamma"], p["beta"], p["mean"], p["var"])
        sc_list.append(jnp.pad(scale, (0, coutp - c_out), constant_values=1.0)
                       .reshape(1, coutp).astype(jnp.float32))
        sh_list.append(jnp.pad(shift, (0, coutp - c_out))
                       .reshape(1, coutp).astype(jnp.float32))

    in_specs = [
        pl.BlockSpec((None, None, r0, c0p), lambda b, t: (b, t, 0, 0)),  # x windows
        pl.BlockSpec((None, tile_t, c0p), lambda b, t: (b, t, 0)),       # residual
    ]
    for l in range(L):                                                   # weights
        in_specs.append(pl.BlockSpec((K, dims_pad[l], dims_pad[l + 1]),
                                     lambda b, t: (0, 0, 0)))
    for l in range(L):                                                   # BN scale
        in_specs.append(pl.BlockSpec((1, dims_pad[l + 1]), lambda b, t: (0, 0)))
    for l in range(L):                                                   # BN shift
        in_specs.append(pl.BlockSpec((1, dims_pad[l + 1]), lambda b, t: (0, 0)))
    out_spec = pl.BlockSpec((None, tile_t, c0p), lambda b, t: (b, t, 0))

    scratch_shapes = [pltpu.VMEM((r1, cmid), jnp.bfloat16),
                      pltpu.VMEM((r1, cmid), jnp.bfloat16)]

    kernel = functools.partial(_postnet_kernel, n_layers=L, K=K, pad=pad,
                               tile_t=tile_t, t_valid=T)

    # Advisory cost estimate for the XLA scheduler.
    flops = 2 * B * t_tiles * sum(
        (tile_t + 2 * (H - (l + 1) * pad)) * K * dims_pad[l] * dims_pad[l + 1]
        for l in range(L))
    transcendentals = B * t_tiles * sum(
        (tile_t + 2 * (H - (l + 1) * pad)) * dims_pad[l + 1] for l in range(L - 1))
    args = [xw, residual] + w_list + sc_list + sh_list
    bytes_accessed = (sum(int(a.size) * a.dtype.itemsize for a in args)
                      + B * t_pad * c0p * 4)

    out = pl.pallas_call(
        kernel,
        out_shape=jax.ShapeDtypeStruct((B, t_pad, c0p), jnp.float32),
        grid=(B, t_tiles),
        in_specs=in_specs,
        out_specs=out_spec,
        scratch_shapes=scratch_shapes,
        compiler_params=pltpu.CompilerParams(
            dimension_semantics=("parallel", "parallel"),
            vmem_limit_bytes=64 * 1024 * 1024),
        cost_estimate=pl.CostEstimate(flops=flops,
                                      transcendentals=transcendentals,
                                      bytes_accessed=bytes_accessed),
    )(*args)

    # Drop channel/time padding; back to (B, n_mel, T).
    return jnp.transpose(out[:, :T, :n_mel], (0, 2, 1))


# ----------------------------------------------------------------------------
# Parameters + pure-JAX reference for verification
# ----------------------------------------------------------------------------
def make_postnet_params(key, n_mel, emb_dim, kernel_size, n_layers=5):
    """Deterministic synthetic parameters matching Tacotron2 Postnet shapes."""
    dims = [n_mel] + [emb_dim] * (n_layers - 1) + [n_mel]
    params = []
    for i in range(n_layers):
        c_in, c_out = dims[i], dims[i + 1]
        key, kw, kg, kb, km, kv = jax.random.split(key, 6)
        w = 0.1 * jax.random.normal(kw, (c_out, c_in, kernel_size), jnp.float32)
        gamma = 1.0 + 0.1 * jax.random.normal(kg, (c_out,), jnp.float32)
        beta = 0.1 * jax.random.normal(kb, (c_out,), jnp.float32)
        running_mean = 0.1 * jax.random.normal(km, (c_out,), jnp.float32)
        running_var = 1.0 + 0.1 * jax.random.uniform(kv, (c_out,), jnp.float32)
        params.append(dict(w=w, gamma=gamma, beta=beta,
                           mean=running_mean, var=running_var))
    return params


def reference_postnet(mel_outputs, params, kernel_size=5):
    pad = (kernel_size - 1) // 2
    x = mel_outputs
    n_layers = len(params)
    for li, p in enumerate(params):
        y = lax.conv_general_dilated(
            x, p["w"], window_strides=(1,), padding=[(pad, pad)],
            dimension_numbers=("NCH", "OIH", "NCH"))
        scale, shift = _fold_bn(p["gamma"], p["beta"], p["mean"], p["var"])
        y = y * scale[None, :, None] + shift[None, :, None]
        if li != n_layers - 1:
            y = jnp.tanh(y)
        x = y
    return mel_outputs + x


if __name__ == "__main__":
    key = jax.random.PRNGKey(0)
    B, n_mel, T = 2, 8, 16          # small shapes: batch=2, mel-channels=8, frames=16
    emb_dim, ksize = 32, 5

    key, kx, kp = jax.random.split(key, 3)
    mel = jax.random.normal(kx, (B, n_mel, T), jnp.float32)
    params = make_postnet_params(kp, n_mel, emb_dim, ksize)

    out = traced_postnet(mel, params, kernel_size=ksize)
    out = jax.block_until_ready(out)

    ref = reference_postnet(mel, params, kernel_size=ksize)   # f32 reference
    assert out.shape == (B, n_mel, T)
    max_err = float(jnp.max(jnp.abs(out - ref)))
    # bf16 MXU operands (f32 accumulation + f32 residual) => loosened tolerance.
    assert max_err < 5e-2, f"mismatch vs reference: max abs err = {max_err}"

    print("KERNEL_OK")
</pallas_src>

<mosaic_0001>
module attributes {stable_mosaic.version = 11 : i64} {
  func.func @_postnet_kernel(%arg0: i32, %arg1: i32, %arg2: memref<1x1x36x128xbf16, #tpu.memory_space<vmem>>, %arg3: memref<1x16x128xf32, #tpu.memory_space<vmem>>, %arg4: memref<5x128x128xbf16, #tpu.memory_space<vmem>>, %arg5: memref<5x128x128xbf16, #tpu.memory_space<vmem>>, %arg6: memref<5x128x128xbf16, #tpu.memory_space<vmem>>, %arg7: memref<5x128x128xbf16, #tpu.memory_space<vmem>>, %arg8: memref<5x128x128xbf16, #tpu.memory_space<vmem>>, %arg9: memref<1x128xf32, #tpu.memory_space<vmem>>, %arg10: memref<1x128xf32, #tpu.memory_space<vmem>>, %arg11: memref<1x128xf32, #tpu.memory_space<vmem>>, %arg12: memref<1x128xf32, #tpu.memory_space<vmem>>, %arg13: memref<1x128xf32, #tpu.memory_space<vmem>>, %arg14: memref<1x128xf32, #tpu.memory_space<vmem>>, %arg15: memref<1x128xf32, #tpu.memory_space<vmem>>, %arg16: memref<1x128xf32, #tpu.memory_space<vmem>>, %arg17: memref<1x128xf32, #tpu.memory_space<vmem>>, %arg18: memref<1x128xf32, #tpu.memory_space<vmem>>, %arg19: memref<1x16x128xf32, #tpu.memory_space<vmem>>, %arg20: memref<32x128xbf16, #tpu.memory_space<vmem>>, %arg21: memref<32x128xbf16, #tpu.memory_space<vmem>>) attributes {dimension_semantics = [#tpu.dimension_semantics<parallel>, #tpu.dimension_semantics<parallel>], iteration_bounds = array<i64: 2, 1>, scalar_prefetch = 0 : i64, scratch_operands = 2 : i64, tpu.core_type = #tpu.core_type<tc>, window_params = [{transform_indices = @transform_0, window_bounds = array<i64: 1, 1, 36, 128>}, {transform_indices = @transform_1, window_bounds = array<i64: 1, 16, 128>}, {pipeline_mode = #tpu.pipeline_mode<synchronous>, transform_indices = @transform_2, window_bounds = array<i64: 5, 128, 128>}, {pipeline_mode = #tpu.pipeline_mode<synchronous>, transform_indices = @transform_3, window_bounds = array<i64: 5, 128, 128>}, {pipeline_mode = #tpu.pipeline_mode<synchronous>, transform_indices = @transform_4, window_bounds = array<i64: 5, 128, 128>}, {pipeline_mode = #tpu.pipeline_mode<synchronous>, transform_indices = @transform_5, window_bounds = array<i64: 5, 128, 128>}, {pipeline_mode = #tpu.pipeline_mode<synchronous>, transform_indices = @transform_6, window_bounds = array<i64: 5, 128, 128>}, {pipeline_mode = #tpu.pipeline_mode<synchronous>, transform_indices = @transform_7, window_bounds = array<i64: 1, 128>}, {pipeline_mode = #tpu.pipeline_mode<synchronous>, transform_indices = @transform_8, window_bounds = array<i64: 1, 128>}, {pipeline_mode = #tpu.pipeline_mode<synchronous>, transform_indices = @transform_9, window_bounds = array<i64: 1, 128>}, {pipeline_mode = #tpu.pipeline_mode<synchronous>, transform_indices = @transform_10, window_bounds = array<i64: 1, 128>}, {pipeline_mode = #tpu.pipeline_mode<synchronous>, transform_indices = @transform_11, window_bounds = array<i64: 1, 128>}, {pipeline_mode = #tpu.pipeline_mode<synchronous>, transform_indices = @transform_12, window_bounds = array<i64: 1, 128>}, {pipeline_mode = #tpu.pipeline_mode<synchronous>, transform_indices = @transform_13, window_bounds = array<i64: 1, 128>}, {pipeline_mode = #tpu.pipeline_mode<synchronous>, transform_indices = @transform_14, window_bounds = array<i64: 1, 128>}, {pipeline_mode = #tpu.pipeline_mode<synchronous>, transform_indices = @transform_15, window_bounds = array<i64: 1, 128>}, {pipeline_mode = #tpu.pipeline_mode<synchronous>, transform_indices = @transform_16, window_bounds = array<i64: 1, 128>}, {transform_indices = @transform_17, window_bounds = array<i64: 1, 16, 128>}]} {
    %c16_i32 = arith.constant 16 : i32
    %0 = arith.muli %arg1, %c16_i32 : i32
    %cst = arith.constant 0.000000e+00 : f32
    %1 = vector.broadcast %cst : f32 to vector<32x128xf32>
    %c0 = arith.constant 0 : index
    %c0_0 = arith.constant 0 : index
    %c0_1 = arith.constant 0 : index
    %c0_2 = arith.constant 0 : index
    %2 = vector.load %arg2[%c0, %c0_0, %c0_1, %c0_2] : memref<1x1x36x128xbf16, #tpu.memory_space<vmem>>, vector<1x1x32x128xbf16>
    %3 = vector.shape_cast %2 : vector<1x1x32x128xbf16> to vector<32x128xbf16>
    %c0_3 = arith.constant 0 : index
    %c0_4 = arith.constant 0 : index
    %c0_5 = arith.constant 0 : index
    %4 = vector.load %arg4[%c0_3, %c0_4, %c0_5] : memref<5x128x128xbf16, #tpu.memory_space<vmem>>, vector<1x128x128xbf16>
    %5 = vector.shape_cast %4 : vector<1x128x128xbf16> to vector<128x128xbf16>
    %cst_6 = arith.constant dense<0.000000e+00> : vector<32x128xf32>
    %6 = tpu.matmul %3, %5, %cst_6 {dimension_numbers = #tpu.dot_dimension_numbers<[1], [0], [0], [1], [0, 0, 1, 1], [], []>} : vector<32x128xbf16>, vector<128x128xbf16>, vector<32x128xf32> -> vector<32x128xf32>
    %7 = arith.addf %1, %6 : vector<32x128xf32>
    %c0_7 = arith.constant 0 : index
    %c0_8 = arith.constant 0 : index
    %c1 = arith.constant 1 : index
    %c0_9 = arith.constant 0 : index
    %8 = vector.load %arg2[%c0_7, %c0_8, %c1, %c0_9] : memref<1x1x36x128xbf16, #tpu.memory_space<vmem>>, vector<1x1x32x128xbf16>
    %9 = vector.shape_cast %8 : vector<1x1x32x128xbf16> to vector<32x128xbf16>
    %c1_10 = arith.constant 1 : index
    %c0_11 = arith.constant 0 : index
    %c0_12 = arith.constant 0 : index
    %10 = vector.load %arg4[%c1_10, %c0_11, %c0_12] : memref<5x128x128xbf16, #tpu.memory_space<vmem>>, vector<1x128x128xbf16>
    %11 = vector.shape_cast %10 : vector<1x128x128xbf16> to vector<128x128xbf16>
    %cst_13 = arith.constant dense<0.000000e+00> : vector<32x128xf32>
    %12 = tpu.matmul %9, %11, %cst_13 {dimension_numbers = #tpu.dot_dimension_numbers<[1], [0], [0], [1], [0, 0, 1, 1], [], []>} : vector<32x128xbf16>, vector<128x128xbf16>, vector<32x128xf32> -> vector<32x128xf32>
    %13 = arith.addf %7, %12 : vector<32x128xf32>
    %c0_14 = arith.constant 0 : index
    %c0_15 = arith.constant 0 : index
    %c2 = arith.constant 2 : index
    %c0_16 = arith.constant 0 : index
    %14 = vector.load %arg2[%c0_14, %c0_15, %c2, %c0_16] : memref<1x1x36x128xbf16, #tpu.memory_space<vmem>>, vector<1x1x32x128xbf16>
    %15 = vector.shape_cast %14 : vector<1x1x32x128xbf16> to vector<32x128xbf16>
    %c2_17 = arith.constant 2 : index
    %c0_18 = arith.constant 0 : index
    %c0_19 = arith.constant 0 : index
    %16 = vector.load %arg4[%c2_17, %c0_18, %c0_19] : memref<5x128x128xbf16, #tpu.memory_space<vmem>>, vector<1x128x128xbf16>
    %17 = vector.shape_cast %16 : vector<1x128x128xbf16> to vector<128x128xbf16>
    %cst_20 = arith.constant dense<0.000000e+00> : vector<32x128xf32>
    %18 = tpu.matmul %15, %17, %cst_20 {dimension_numbers = #tpu.dot_dimension_numbers<[1], [0], [0], [1], [0, 0, 1, 1], [], []>} : vector<32x128xbf16>, vector<128x128xbf16>, vector<32x128xf32> -> vector<32x128xf32>
    %19 = arith.addf %13, %18 : vector<32x128xf32>
    %c0_21 = arith.constant 0 : index
    %c0_22 = arith.constant 0 : index
    %c3 = arith.constant 3 : index
    %c0_23 = arith.constant 0 : index
    %20 = vector.load %arg2[%c0_21, %c0_22, %c3, %c0_23] : memref<1x1x36x128xbf16, #tpu.memory_space<vmem>>, vector<1x1x32x128xbf16>
    %21 = vector.shape_cast %20 : vector<1x1x32x128xbf16> to vector<32x128xbf16>
    %c3_24 = arith.constant 3 : index
    %c0_25 = arith.constant 0 : index
    %c0_26 = arith.constant 0 : index
    %22 = vector.load %arg4[%c3_24, %c0_25, %c0_26] : memref<5x128x128xbf16, #tpu.memory_space<vmem>>, vector<1x128x128xbf16>
    %23 = vector.shape_cast %22 : vector<1x128x128xbf16> to vector<128x128xbf16>
    %cst_27 = arith.constant dense<0.000000e+00> : vector<32x128xf32>
    %24 = tpu.matmul %21, %23, %cst_27 {dimension_numbers = #tpu.dot_dimension_numbers<[1], [0], [0], [1], [0, 0, 1, 1], [], []>} : vector<32x128xbf16>, vector<128x128xbf16>, vector<32x128xf32> -> vector<32x128xf32>
    %25 = arith.addf %19, %24 : vector<32x128xf32>
    %c0_28 = arith.constant 0 : index
    %c0_29 = arith.constant 0 : index
    %c4 = arith.constant 4 : index
    %c0_30 = arith.constant 0 : index
    %26 = vector.load %arg2[%c0_28, %c0_29, %c4, %c0_30] : memref<1x1x36x128xbf16, #tpu.memory_space<vmem>>, vector<1x1x32x128xbf16>
    %27 = vector.shape_cast %26 : vector<1x1x32x128xbf16> to vector<32x128xbf16>
    %c4_31 = arith.constant 4 : index
    %c0_32 = arith.constant 0 : index
    %c0_33 = arith.constant 0 : index
    %28 = vector.load %arg4[%c4_31, %c0_32, %c0_33] : memref<5x128x128xbf16, #tpu.memory_space<vmem>>, vector<1x128x128xbf16>
    %29 = vector.shape_cast %28 : vector<1x128x128xbf16> to vector<128x128xbf16>
    %cst_34 = arith.constant dense<0.000000e+00> : vector<32x128xf32>
    %30 = tpu.matmul %27, %29, %cst_34 {dimension_numbers = #tpu.dot_dimension_numbers<[1], [0], [0], [1], [0, 0, 1, 1], [], []>} : vector<32x128xbf16>, vector<128x128xbf16>, vector<32x128xf32> -> vector<32x128xf32>
    %31 = arith.addf %25, %30 : vector<32x128xf32>
    %c0_35 = arith.constant 0 : index
    %c0_36 = arith.constant 0 : index
    %32 = vector.load %arg9[%c0_35, %c0_36] : memref<1x128xf32, #tpu.memory_space<vmem>>, vector<1x128xf32>
    %33 = vector.broadcast %32 : vector<1x128xf32> to vector<32x128xf32>
    %34 = arith.mulf %31, %33 : vector<32x128xf32>
    %c0_37 = arith.constant 0 : index
    %c0_38 = arith.constant 0 : index
    %35 = vector.load %arg14[%c0_37, %c0_38] : memref<1x128xf32, #tpu.memory_space<vmem>>, vector<1x128xf32>
    %36 = vector.broadcast %35 : vector<1x128xf32> to vector<32x128xf32>
    %37 = arith.addf %34, %36 : vector<32x128xf32>
    %38 = math.tanh %37 : vector<32x128xf32>
    %c8_i32 = arith.constant 8 : i32
    %39 = arith.subi %0, %c8_i32 : i32
    %40 = tpu.iota {dimensions = array<i32: 0>} : vector<32x128xi32>
    %41 = vector.broadcast %39 : i32 to vector<32x128xi32>
    %42 = arith.addi %41, %40 : vector<32x128xi32>
    %c0_i32 = arith.constant 0 : i32
    %43 = vector.broadcast %c0_i32 : i32 to vector<32x128xi32>
    %44 = arith.cmpi sge, %42, %43 : vector<32x128xi32>
    %c16_i32_39 = arith.constant 16 : i32
    %45 = vector.broadcast %c16_i32_39 : i32 to vector<32x128xi32>
    %46 = arith.cmpi slt, %42, %45 : vector<32x128xi32>
    %47 = arith.andi %44, %46 : vector<32x128xi1>
    %cst_40 = arith.constant 0.000000e+00 : f32
    %48 = vector.broadcast %cst_40 : f32 to vector<32x128xf32>
    %49 = arith.select %47, %38, %48 : vector<32x128xi1>, vector<32x128xf32>
    %50 = arith.truncf %49 : vector<32x128xf32> to vector<32x128xbf16>
    %c0_41 = arith.constant 0 : index
    %c0_42 = arith.constant 0 : index
    %51 = vector.load %arg20[%c0_41, %c0_42] : memref<32x128xbf16, #tpu.memory_space<vmem>>, vector<32x128xbf16>
    tpu.vector_store %arg20[%c0_41, %c0_42], %50 {strides = array<i32>} : memref<32x128xbf16, #tpu.memory_space<vmem>>, vector<32x128xbf16>,
    %cst_43 = arith.constant 0.000000e+00 : f32
    %52 = vector.broadcast %cst_43 : f32 to vector<28x128xf32>
    %c0_44 = arith.constant 0 : index
    %c0_45 = arith.constant 0 : index
    %53 = vector.load %arg20[%c0_44, %c0_45] : memref<32x128xbf16, #tpu.memory_space<vmem>>, vector<28x128xbf16>
    %c0_46 = arith.constant 0 : index
    %c0_47 = arith.constant 0 : index
    %c0_48 = arith.constant 0 : index
    %54 = vector.load %arg5[%c0_46, %c0_47, %c0_48] : memref<5x128x128xbf16, #tpu.memory_space<vmem>>, vector<1x128x128xbf16>
    %55 = vector.shape_cast %54 : vector<1x128x128xbf16> to vector<128x128xbf16>
    %cst_49 = arith.constant dense<0.000000e+00> : vector<28x128xf32>
    %56 = tpu.matmul %53, %55, %cst_49 {dimension_numbers = #tpu.dot_dimension_numbers<[1], [0], [0], [1], [0, 0, 1, 1], [], []>} : vector<28x128xbf16>, vector<128x128xbf16>, vector<28x128xf32> -> vector<28x128xf32>
    %57 = arith.addf %52, %56 : vector<28x128xf32>
    %c1_50 = arith.constant 1 : index
    %c0_51 = arith.constant 0 : index
    %58 = vector.load %arg20[%c1_50, %c0_51] : memref<32x128xbf16, #tpu.memory_space<vmem>>, vector<28x128xbf16>
    %c1_52 = arith.constant 1 : index
    %c0_53 = arith.constant 0 : index
    %c0_54 = arith.constant 0 : index
    %59 = vector.load %arg5[%c1_52, %c0_53, %c0_54] : memref<5x128x128xbf16, #tpu.memory_space<vmem>>, vector<1x128x128xbf16>
    %60 = vector.shape_cast %59 : vector<1x128x128xbf16> to vector<128x128xbf16>
    %cst_55 = arith.constant dense<0.000000e+00> : vector<28x128xf32>
    %61 = tpu.matmul %58, %60, %cst_55 {dimension_numbers = #tpu.dot_dimension_numbers<[1], [0], [0], [1], [0, 0, 1, 1], [], []>} : vector<28x128xbf16>, vector<128x128xbf16>, vector<28x128xf32> -> vector<28x128xf32>
    %62 = arith.addf %57, %61 : vector<28x128xf32>
    %c2_56 = arith.constant 2 : index
    %c0_57 = arith.constant 0 : index
    %63 = vector.load %arg20[%c2_56, %c0_57] : memref<32x128xbf16, #tpu.memory_space<vmem>>, vector<28x128xbf16>
    %c2_58 = arith.constant 2 : index
    %c0_59 = arith.constant 0 : index
    %c0_60 = arith.constant 0 : index
    %64 = vector.load %arg5[%c2_58, %c0_59, %c0_60] : memref<5x128x128xbf16, #tpu.memory_space<vmem>>, vector<1x128x128xbf16>
    %65 = vector.shape_cast %64 : vector<1x128x128xbf16> to vector<128x128xbf16>
    %cst_61 = arith.constant dense<0.000000e+00> : vector<28x128xf32>
    %66 = tpu.matmul %63, %65, %cst_61 {dimension_numbers = #tpu.dot_dimension_numbers<[1], [0], [0], [1], [0, 0, 1, 1], [], []>} : vector<28x128xbf16>, vector<128x128xbf16>, vector<28x128xf32> -> vector<28x128xf32>
    %67 = arith.addf %62, %66 : vector<28x128xf32>
    %c3_62 = arith.constant 3 : index
    %c0_63 = arith.constant 0 : index
    %68 = vector.load %arg20[%c3_62, %c0_63] : memref<32x128xbf16, #tpu.memory_space<vmem>>, vector<28x128xbf16>
    %c3_64 = arith.constant 3 : index
    %c0_65 = arith.constant 0 : index
    %c0_66 = arith.constant 0 : index
    %69 = vector.load %arg5[%c3_64, %c0_65, %c0_66] : memref<5x128x128xbf16, #tpu.memory_space<vmem>>, vector<1x128x128xbf16>
    %70 = vector.shape_cast %69 : vector<1x128x128xbf16> to vector<128x128xbf16>
    %cst_67 = arith.constant dense<0.000000e+00> : vector<28x128xf32>
    %71 = tpu.matmul %68, %70, %cst_67 {dimension_numbers = #tpu.dot_dimension_numbers<[1], [0], [0], [1], [0, 0, 1, 1], [], []>} : vector<28x128xbf16>, vector<128x128xbf16>, vector<28x128xf32> -> vector<28x128xf32>
    %72 = arith.addf %67, %71 : vector<28x128xf32>
    %c4_68 = arith.constant 4 : index
    %c0_69 = arith.constant 0 : index
    %73 = vector.load %arg20[%c4_68, %c0_69] : memref<32x128xbf16, #tpu.memory_space<vmem>>, vector<28x128xbf16>
    %c4_70 = arith.constant 4 : index
    %c0_71 = arith.constant 0 : index
    %c0_72 = arith.constant 0 : index
    %74 = vector.load %arg5[%c4_70, %c0_71, %c0_72] : memref<5x128x128xbf16, #tpu.memory_space<vmem>>, vector<1x128x128xbf16>
    %75 = vector.shape_cast %74 : vector<1x128x128xbf16> to vector<128x128xbf16>
    %cst_73 = arith.constant dense<0.000000e+00> : vector<28x128xf32>
    %76 = tpu.matmul %73, %75, %cst_73 {dimension_numbers = #tpu.dot_dimension_numbers<[1], [0], [0], [1], [0, 0, 1, 1], [], []>} : vector<28x128xbf16>, vector<128x128xbf16>, vector<28x128xf32> -> vector<28x128xf32>
    %77 = arith.addf %72, %76 : vector<28x128xf32>
    %c0_74 = arith.constant 0 : index
    %c0_75 = arith.constant 0 : index
    %78 = vector.load %arg10[%c0_74, %c0_75] : memref<1x128xf32, #tpu.memory_space<vmem>>, vector<1x128xf32>
    %79 = vector.broadcast %78 : vector<1x128xf32> to vector<28x128xf32>
    %80 = arith.mulf %77, %79 : vector<28x128xf32>
    %c0_76 = arith.constant 0 : index
    %c0_77 = arith.constant 0 : index
    %81 = vector.load %arg15[%c0_76, %c0_77] : memref<1x128xf32, #tpu.memory_space<vmem>>, vector<1x128xf32>
    %82 = vector.broadcast %81 : vector<1x128xf32> to vector<28x128xf32>
    %83 = arith.addf %80, %82 : vector<28x128xf32>
    %84 = math.tanh %83 : vector<28x128xf32>
    %c6_i32 = arith.constant 6 : i32
    %85 = arith.subi %0, %c6_i32 : i32
    %86 = tpu.iota {dimensions = array<i32: 0>} : vector<28x128xi32>
    %87 = vector.broadcast %85 : i32 to vector<28x128xi32>
    %88 = arith.addi %87, %86 : vector<28x128xi32>
    %c0_i32_78 = arith.constant 0 : i32
    %89 = vector.broadcast %c0_i32_78 : i32 to vector<28x128xi32>
    %90 = arith.cmpi sge, %88, %89 : vector<28x128xi32>
    %c16_i32_79 = arith.constant 16 : i32
    %91 = vector.broadcast %c16_i32_79 : i32 to vector<28x128xi32>
    %92 = arith.cmpi slt, %88, %91 : vector<28x128xi32>
    %93 = arith.andi %90, %92 : vector<28x128xi1>
    %cst_80 = arith.constant 0.000000e+00 : f32
    %94 = vector.broadcast %cst_80 : f32 to vector<28x128xf32>
    %95 = arith.select %93, %84, %94 : vector<28x128xi1>, vector<28x128xf32>
    %96 = arith.truncf %95 : vector<28x128xf32> to vector<28x128xbf16>
    %c0_81 = arith.constant 0 : index
    %c0_82 = arith.constant 0 : index
    %97 = vector.load %arg21[%c0_81, %c0_82] : memref<32x128xbf16, #tpu.memory_space<vmem>>, vector<28x128xbf16>
    tpu.vector_store %arg21[%c0_81, %c0_82], %96 {strides = array<i32>} : memref<32x128xbf16, #tpu.memory_space<vmem>>, vector<28x128xbf16>,
    %cst_83 = arith.constant 0.000000e+00 : f32
    %98 = vector.broadcast %cst_83 : f32 to vector<24x128xf32>
    %c0_84 = arith.constant 0 : index
    %c0_85 = arith.constant 0 : index
    %99 = vector.load %arg21[%c0_84, %c0_85] : memref<32x128xbf16, #tpu.memory_space<vmem>>, vector<24x128xbf16>
    %c0_86 = arith.constant 0 : index
    %c0_87 = arith.constant 0 : index
    %c0_88 = arith.constant 0 : index
    %100 = vector.load %arg6[%c0_86, %c0_87, %c0_88] : memref<5x128x128xbf16, #tpu.memory_space<vmem>>, vector<1x128x128xbf16>
    %101 = vector.shape_cast %100 : vector<1x128x128xbf16> to vector<128x128xbf16>
    %cst_89 = arith.constant dense<0.000000e+00> : vector<24x128xf32>
    %102 = tpu.matmul %99, %101, %cst_89 {dimension_numbers = #tpu.dot_dimension_numbers<[1], [0], [0], [1], [0, 0, 1, 1], [], []>} : vector<24x128xbf16>, vector<128x128xbf16>, vector<24x128xf32> -> vector<24x128xf32>
    %103 = arith.addf %98, %102 : vector<24x128xf32>
    %c1_90 = arith.constant 1 : index
    %c0_91 = arith.constant 0 : index
    %104 = vector.load %arg21[%c1_90, %c0_91] : memref<32x128xbf16, #tpu.memory_space<vmem>>, vector<24x128xbf16>
    %c1_92 = arith.constant 1 : index
    %c0_93 = arith.constant 0 : index
    %c0_94 = arith.constant 0 : index
    %105 = vector.load %arg6[%c1_92, %c0_93, %c0_94] : memref<5x128x128xbf16, #tpu.memory_space<vmem>>, vector<1x128x128xbf16>
    %106 = vector.shape_cast %105 : vector<1x128x128xbf16> to vector<128x128xbf16>
    %cst_95 = arith.constant dense<0.000000e+00> : vector<24x128xf32>
    %107 = tpu.matmul %104, %106, %cst_95 {dimension_numbers = #tpu.dot_dimension_numbers<[1], [0], [0], [1], [0, 0, 1, 1], [], []>} : vector<24x128xbf16>, vector<128x128xbf16>, vector<24x128xf32> -> vector<24x128xf32>
    %108 = arith.addf %103, %107 : vector<24x128xf32>
    %c2_96 = arith.constant 2 : index
    %c0_97 = arith.constant 0 : index
    %109 = vector.load %arg21[%c2_96, %c0_97] : memref<32x128xbf16, #tpu.memory_space<vmem>>, vector<24x128xbf16>
    %c2_98 = arith.constant 2 : index
    %c0_99 = arith.constant 0 : index
    %c0_100 = arith.constant 0 : index
    %110 = vector.load %arg6[%c2_98, %c0_99, %c0_100] : memref<5x128x128xbf16, #tpu.memory_space<vmem>>, vector<1x128x128xbf16>
    %111 = vector.shape_cast %110 : vector<1x128x128xbf16> to vector<128x128xbf16>
    %cst_101 = arith.constant dense<0.000000e+00> : vector<24x128xf32>
    %112 = tpu.matmul %109, %111, %cst_101 {dimension_numbers = #tpu.dot_dimension_numbers<[1], [0], [0], [1], [0, 0, 1, 1], [], []>} : vector<24x128xbf16>, vector<128x128xbf16>, vector<24x128xf32> -> vector<24x128xf32>
    %113 = arith.addf %108, %112 : vector<24x128xf32>
    %c3_102 = arith.constant 3 : index
    %c0_103 = arith.constant 0 : index
    %114 = vector.load %arg21[%c3_102, %c0_103] : memref<32x128xbf16, #tpu.memory_space<vmem>>, vector<24x128xbf16>
    %c3_104 = arith.constant 3 : index
    %c0_105 = arith.constant 0 : index
    %c0_106 = arith.constant 0 : index
    %115 = vector.load %arg6[%c3_104, %c0_105, %c0_106] : memref<5x128x128xbf16, #tpu.memory_space<vmem>>, vector<1x128x128xbf16>
    %116 = vector.shape_cast %115 : vector<1x128x128xbf16> to vector<128x128xbf16>
    %cst_107 = arith.constant dense<0.000000e+00> : vector<24x128xf32>
    %117 = tpu.matmul %114, %116, %cst_107 {dimension_numbers = #tpu.dot_dimension_numbers<[1], [0], [0], [1], [0, 0, 1, 1], [], []>} : vector<24x128xbf16>, vector<128x128xbf16>, vector<24x128xf32> -> vector<24x128xf32>
    %118 = arith.addf %113, %117 : vector<24x128xf32>
    %c4_108 = arith.constant 4 : index
    %c0_109 = arith.constant 0 : index
    %119 = vector.load %arg21[%c4_108, %c0_109] : memref<32x128xbf16, #tpu.memory_space<vmem>>, vector<24x128xbf16>
    %c4_110 = arith.constant 4 : index
    %c0_111 = arith.constant 0 : index
    %c0_112 = arith.constant 0 : index
    %120 = vector.load %arg6[%c4_110, %c0_111, %c0_112] : memref<5x128x128xbf16, #tpu.memory_space<vmem>>, vector<1x128x128xbf16>
    %121 = vector.shape_cast %120 : vector<1x128x128xbf16> to vector<128x128xbf16>
    %cst_113 = arith.constant dense<0.000000e+00> : vector<24x128xf32>
    %122 = tpu.matmul %119, %121, %cst_113 {dimension_numbers = #tpu.dot_dimension_numbers<[1], [0], [0], [1], [0, 0, 1, 1], [], []>} : vector<24x128xbf16>, vector<128x128xbf16>, vector<24x128xf32> -> vector<24x128xf32>
    %123 = arith.addf %118, %122 : vector<24x128xf32>
    %c0_114 = arith.constant 0 : index
    %c0_115 = arith.constant 0 : index
    %124 = vector.load %arg11[%c0_114, %c0_115] : memref<1x128xf32, #tpu.memory_space<vmem>>, vector<1x128xf32>
    %125 = vector.broadcast %124 : vector<1x128xf32> to vector<24x128xf32>
    %126 = arith.mulf %123, %125 : vector<24x128xf32>
    %c0_116 = arith.constant 0 : index
    %c0_117 = arith.constant 0 : index
    %127 = vector.load %arg16[%c0_116, %c0_117] : memref<1x128xf32, #tpu.memory_space<vmem>>, vector<1x128xf32>
    %128 = vector.broadcast %127 : vector<1x128xf32> to vector<24x128xf32>
    %129 = arith.addf %126, %128 : vector<24x128xf32>
    %130 = math.tanh %129 : vector<24x128xf32>
    %c4_i32 = arith.constant 4 : i32
    %131 = arith.subi %0, %c4_i32 : i32
    %132 = tpu.iota {dimensions = array<i32: 0>} : vector<24x128xi32>
    %133 = vector.broadcast %131 : i32 to vector<24x128xi32>
    %134 = arith.addi %133, %132 : vector<24x128xi32>
    %c0_i32_118 = arith.constant 0 : i32
    %135 = vector.broadcast %c0_i32_118 : i32 to vector<24x128xi32>
    %136 = arith.cmpi sge, %134, %135 : vector<24x128xi32>
    %c16_i32_119 = arith.constant 16 : i32
    %137 = vector.broadcast %c16_i32_119 : i32 to vector<24x128xi32>
    %138 = arith.cmpi slt, %134, %137 : vector<24x128xi32>
    %139 = arith.andi %136, %138 : vector<24x128xi1>
    %cst_120 = arith.constant 0.000000e+00 : f32
    %140 = vector.broadcast %cst_120 : f32 to vector<24x128xf32>
    %141 = arith.select %139, %130, %140 : vector<24x128xi1>, vector<24x128xf32>
    %142 = arith.truncf %141 : vector<24x128xf32> to vector<24x128xbf16>
    %c0_121 = arith.constant 0 : index
    %c0_122 = arith.constant 0 : index
    %143 = vector.load %arg20[%c0_121, %c0_122] : memref<32x128xbf16, #tpu.memory_space<vmem>>, vector<24x128xbf16>
    tpu.vector_store %arg20[%c0_121, %c0_122], %142 {strides = array<i32>} : memref<32x128xbf16, #tpu.memory_space<vmem>>, vector<24x128xbf16>,
    %cst_123 = arith.constant 0.000000e+00 : f32
    %144 = vector.broadcast %cst_123 : f32 to vector<20x128xf32>
    %c0_124 = arith.constant 0 : index
    %c0_125 = arith.constant 0 : index
    %145 = vector.load %arg20[%c0_124, %c0_125] : memref<32x128xbf16, #tpu.memory_space<vmem>>, vector<20x128xbf16>
    %c0_126 = arith.constant 0 : index
    %c0_127 = arith.constant 0 : index
    %c0_128 = arith.constant 0 : index
    %146 = vector.load %arg7[%c0_126, %c0_127, %c0_128] : memref<5x128x128xbf16, #tpu.memory_space<vmem>>, vector<1x128x128xbf16>
    %147 = vector.shape_cast %146 : vector<1x128x128xbf16> to vector<128x128xbf16>
    %cst_129 = arith.constant dense<0.000000e+00> : vector<20x128xf32>
    %148 = tpu.matmul %145, %147, %cst_129 {dimension_numbers = #tpu.dot_dimension_numbers<[1], [0], [0], [1], [0, 0, 1, 1], [], []>} : vector<20x128xbf16>, vector<128x128xbf16>, vector<20x128xf32> -> vector<20x128xf32>
    %149 = arith.addf %144, %148 : vector<20x128xf32>
    %c1_130 = arith.constant 1 : index
    %c0_131 = arith.constant 0 : index
    %150 = vector.load %arg20[%c1_130, %c0_131] : memref<32x128xbf16, #tpu.memory_space<vmem>>, vector<20x128xbf16>
    %c1_132 = arith.constant 1 : index
    %c0_133 = arith.constant 0 : index
    %c0_134 = arith.constant 0 : index
    %151 = vector.load %arg7[%c1_132, %c0_133, %c0_134] : memref<5x128x128xbf16, #tpu.memory_space<vmem>>, vector<1x128x128xbf16>
    %152 = vector.shape_cast %151 : vector<1x128x128xbf16> to vector<128x128xbf16>
    %cst_135 = arith.constant dense<0.000000e+00> : vector<20x128xf32>
    %153 = tpu.matmul %150, %152, %cst_135 {dimension_numbers = #tpu.dot_dimension_numbers<[1], [0], [0], [1], [0, 0, 1, 1], [], []>} : vector<20x128xbf16>, vector<128x128xbf16>, vector<20x128xf32> -> vector<20x128xf32>
    %154 = arith.addf %149, %153 : vector<20x128xf32>
    %c2_136 = arith.constant 2 : index
    %c0_137 = arith.constant 0 : index
    %155 = vector.load %arg20[%c2_136, %c0_137] : memref<32x128xbf16, #tpu.memory_space<vmem>>, vector<20x128xbf16>
    %c2_138 = arith.constant 2 : index
    %c0_139 = arith.constant 0 : index
    %c0_140 = arith.constant 0 : index
    %156 = vector.load %arg7[%c2_138, %c0_139, %c0_140] : memref<5x128x128xbf16, #tpu.memory_space<vmem>>, vector<1x128x128xbf16>
    %157 = vector.shape_cast %156 : vector<1x128x128xbf16> to vector<128x128xbf16>
    %cst_141 = arith.constant dense<0.000000e+00> : vector<20x128xf32>
    %158 = tpu.matmul %155, %157, %cst_141 {dimension_numbers = #tpu.dot_dimension_numbers<[1], [0], [0], [1], [0, 0, 1, 1], [], []>} : vector<20x128xbf16>, vector<128x128xbf16>, vector<20x128xf32> -> vector<20x128xf32>
    %159 = arith.addf %154, %158 : vector<20x128xf32>
    %c3_142 = arith.constant 3 : index
    %c0_143 = arith.constant 0 : index
    %160 = vector.load %arg20[%c3_142, %c0_143] : memref<32x128xbf16, #tpu.memory_space<vmem>>, vector<20x128xbf16>
    %c3_144 = arith.constant 3 : index
    %c0_145 = arith.constant 0 : index
    %c0_146 = arith.constant 0 : index
    %161 = vector.load %arg7[%c3_144, %c0_145, %c0_146] : memref<5x128x128xbf16, #tpu.memory_space<vmem>>, vector<1x128x128xbf16>
    %162 = vector.shape_cast %161 : vector<1x128x128xbf16> to vector<128x128xbf16>
    %cst_147 = arith.constant dense<0.000000e+00> : vector<20x128xf32>
    %163 = tpu.matmul %160, %162, %cst_147 {dimension_numbers = #tpu.dot_dimension_numbers<[1], [0], [0], [1], [0, 0, 1, 1], [], []>} : vector<20x128xbf16>, vector<128x128xbf16>, vector<20x128xf32> -> vector<20x128xf32>
    %164 = arith.addf %159, %163 : vector<20x128xf32>
    %c4_148 = arith.constant 4 : index
    %c0_149 = arith.constant 0 : index
    %165 = vector.load %arg20[%c4_148, %c0_149] : memref<32x128xbf16, #tpu.memory_space<vmem>>, vector<20x128xbf16>
    %c4_150 = arith.constant 4 : index
    %c0_151 = arith.constant 0 : index
    %c0_152 = arith.constant 0 : index
    %166 = vector.load %arg7[%c4_150, %c0_151, %c0_152] : memref<5x128x128xbf16, #tpu.memory_space<vmem>>, vector<1x128x128xbf16>
    %167 = vector.shape_cast %166 : vector<1x128x128xbf16> to vector<128x128xbf16>
    %cst_153 = arith.constant dense<0.000000e+00> : vector<20x128xf32>
    %168 = tpu.matmul %165, %167, %cst_153 {dimension_numbers = #tpu.dot_dimension_numbers<[1], [0], [0], [1], [0, 0, 1, 1], [], []>} : vector<20x128xbf16>, vector<128x128xbf16>, vector<20x128xf32> -> vector<20x128xf32>
    %169 = arith.addf %164, %168 : vector<20x128xf32>
    %c0_154 = arith.constant 0 : index
    %c0_155 = arith.constant 0 : index
    %170 = vector.load %arg12[%c0_154, %c0_155] : memref<1x128xf32, #tpu.memory_space<vmem>>, vector<1x128xf32>
    %171 = vector.broadcast %170 : vector<1x128xf32> to vector<20x128xf32>
    %172 = arith.mulf %169, %171 : vector<20x128xf32>
    %c0_156 = arith.constant 0 : index
    %c0_157 = arith.constant 0 : index
    %173 = vector.load %arg17[%c0_156, %c0_157] : memref<1x128xf32, #tpu.memory_space<vmem>>, vector<1x128xf32>
    %174 = vector.broadcast %173 : vector<1x128xf32> to vector<20x128xf32>
    %175 = arith.addf %172, %174 : vector<20x128xf32>
    %176 = math.tanh %175 : vector<20x128xf32>
    %c2_i32 = arith.constant 2 : i32
    %177 = arith.subi %0, %c2_i32 : i32
    %178 = tpu.iota {dimensions = array<i32: 0>} : vector<20x128xi32>
    %179 = vector.broadcast %177 : i32 to vector<20x128xi32>
    %180 = arith.addi %179, %178 : vector<20x128xi32>
    %c0_i32_158 = arith.constant 0 : i32
    %181 = vector.broadcast %c0_i32_158 : i32 to vector<20x128xi32>
    %182 = arith.cmpi sge, %180, %181 : vector<20x128xi32>
    %c16_i32_159 = arith.constant 16 : i32
    %183 = vector.broadcast %c16_i32_159 : i32 to vector<20x128xi32>
    %184 = arith.cmpi slt, %180, %183 : vector<20x128xi32>
    %185 = arith.andi %182, %184 : vector<20x128xi1>
    %cst_160 = arith.constant 0.000000e+00 : f32
    %186 = vector.broadcast %cst_160 : f32 to vector<20x128xf32>
    %187 = arith.select %185, %176, %186 : vector<20x128xi1>, vector<20x128xf32>
    %188 = arith.truncf %187 : vector<20x128xf32> to vector<20x128xbf16>
    %c0_161 = arith.constant 0 : index
    %c0_162 = arith.constant 0 : index
    %189 = vector.load %arg21[%c0_161, %c0_162] : memref<32x128xbf16, #tpu.memory_space<vmem>>, vector<20x128xbf16>
    tpu.vector_store %arg21[%c0_161, %c0_162], %188 {strides = array<i32>} : memref<32x128xbf16, #tpu.memory_space<vmem>>, vector<20x128xbf16>,
    %cst_163 = arith.constant 0.000000e+00 : f32
    %190 = vector.broadcast %cst_163 : f32 to vector<16x128xf32>
    %c0_164 = arith.constant 0 : index
    %c0_165 = arith.constant 0 : index
    %191 = vector.load %arg21[%c0_164, %c0_165] : memref<32x128xbf16, #tpu.memory_space<vmem>>, vector<16x128xbf16>
    %c0_166 = arith.constant 0 : index
    %c0_167 = arith.constant 0 : index
    %c0_168 = arith.constant 0 : index
    %192 = vector.load %arg8[%c0_166, %c0_167, %c0_168] : memref<5x128x128xbf16, #tpu.memory_space<vmem>>, vector<1x128x128xbf16>
    %193 = vector.shape_cast %192 : vector<1x128x128xbf16> to vector<128x128xbf16>
    %cst_169 = arith.constant dense<0.000000e+00> : vector<16x128xf32>
    %194 = tpu.matmul %191, %193, %cst_169 {dimension_numbers = #tpu.dot_dimension_numbers<[1], [0], [0], [1], [0, 0, 1, 1], [], []>} : vector<16x128xbf16>, vector<128x128xbf16>, vector<16x128xf32> -> vector<16x128xf32>
    %195 = arith.addf %190, %194 : vector<16x128xf32>
    %c1_170 = arith.constant 1 : index
    %c0_171 = arith.constant 0 : index
    %196 = vector.load %arg21[%c1_170, %c0_171] : memref<32x128xbf16, #tpu.memory_space<vmem>>, vector<16x128xbf16>
    %c1_172 = arith.constant 1 : index
    %c0_173 = arith.constant 0 : index
    %c0_174 = arith.constant 0 : index
    %197 = vector.load %arg8[%c1_172, %c0_173, %c0_174] : memref<5x128x128xbf16, #tpu.memory_space<vmem>>, vector<1x128x128xbf16>
    %198 = vector.shape_cast %197 : vector<1x128x128xbf16> to vector<128x128xbf16>
    %cst_175 = arith.constant dense<0.000000e+00> : vector<16x128xf32>
    %199 = tpu.matmul %196, %198, %cst_175 {dimension_numbers = #tpu.dot_dimension_numbers<[1], [0], [0], [1], [0, 0, 1, 1], [], []>} : vector<16x128xbf16>, vector<128x128xbf16>, vector<16x128xf32> -> vector<16x128xf32>
    %200 = arith.addf %195, %199 : vector<16x128xf32>
    %c2_176 = arith.constant 2 : index
    %c0_177 = arith.constant 0 : index
    %201 = vector.load %arg21[%c2_176, %c0_177] : memref<32x128xbf16, #tpu.memory_space<vmem>>, vector<16x128xbf16>
    %c2_178 = arith.constant 2 : index
    %c0_179 = arith.constant 0 : index
    %c0_180 = arith.constant 0 : index
    %202 = vector.load %arg8[%c2_178, %c0_179, %c0_180] : memref<5x128x128xbf16, #tpu.memory_space<vmem>>, vector<1x128x128xbf16>
    %203 = vector.shape_cast %202 : vector<1x128x128xbf16> to vector<128x128xbf16>
    %cst_181 = arith.constant dense<0.000000e+00> : vector<16x128xf32>
    %204 = tpu.matmul %201, %203, %cst_181 {dimension_numbers = #tpu.dot_dimension_numbers<[1], [0], [0], [1], [0, 0, 1, 1], [], []>} : vector<16x128xbf16>, vector<128x128xbf16>, vector<16x128xf32> -> vector<16x128xf32>
    %205 = arith.addf %200, %204 : vector<16x128xf32>
    %c3_182 = arith.constant 3 : index
    %c0_183 = arith.constant 0 : index
    %206 = vector.load %arg21[%c3_182, %c0_183] : memref<32x128xbf16, #tpu.memory_space<vmem>>, vector<16x128xbf16>
    %c3_184 = arith.constant 3 : index
    %c0_185 = arith.constant 0 : index
    %c0_186 = arith.constant 0 : index
    %207 = vector.load %arg8[%c3_184, %c0_185, %c0_186] : memref<5x128x128xbf16, #tpu.memory_space<vmem>>, vector<1x128x128xbf16>
    %208 = vector.shape_cast %207 : vector<1x128x128xbf16> to vector<128x128xbf16>
    %cst_187 = arith.constant dense<0.000000e+00> : vector<16x128xf32>
    %209 = tpu.matmul %206, %208, %cst_187 {dimension_numbers = #tpu.dot_dimension_numbers<[1], [0], [0], [1], [0, 0, 1, 1], [], []>} : vector<16x128xbf16>, vector<128x128xbf16>, vector<16x128xf32> -> vector<16x128xf32>
    %210 = arith.addf %205, %209 : vector<16x128xf32>
    %c4_188 = arith.constant 4 : index
    %c0_189 = arith.constant 0 : index
    %211 = vector.load %arg21[%c4_188, %c0_189] : memref<32x128xbf16, #tpu.memory_space<vmem>>, vector<16x128xbf16>
    %c4_190 = arith.constant 4 : index
    %c0_191 = arith.constant 0 : index
    %c0_192 = arith.constant 0 : index
    %212 = vector.load %arg8[%c4_190, %c0_191, %c0_192] : memref<5x128x128xbf16, #tpu.memory_space<vmem>>, vector<1x128x128xbf16>
    %213 = vector.shape_cast %212 : vector<1x128x128xbf16> to vector<128x128xbf16>
    %cst_193 = arith.constant dense<0.000000e+00> : vector<16x128xf32>
    %214 = tpu.matmul %211, %213, %cst_193 {dimension_numbers = #tpu.dot_dimension_numbers<[1], [0], [0], [1], [0, 0, 1, 1], [], []>} : vector<16x128xbf16>, vector<128x128xbf16>, vector<16x128xf32> -> vector<16x128xf32>
    %215 = arith.addf %210, %214 : vector<16x128xf32>
    %c0_194 = arith.constant 0 : index
    %c0_195 = arith.constant 0 : index
    %216 = vector.load %arg13[%c0_194, %c0_195] : memref<1x128xf32, #tpu.memory_space<vmem>>, vector<1x128xf32>
    %217 = vector.broadcast %216 : vector<1x128xf32> to vector<16x128xf32>
    %218 = arith.mulf %215, %217 : vector<16x128xf32>
    %c0_196 = arith.constant 0 : index
    %c0_197 = arith.constant 0 : index
    %219 = vector.load %arg18[%c0_196, %c0_197] : memref<1x128xf32, #tpu.memory_space<vmem>>, vector<1x128xf32>
    %220 = vector.broadcast %219 : vector<1x128xf32> to vector<16x128xf32>
    %221 = arith.addf %218, %220 : vector<16x128xf32>
    %c0_198 = arith.constant 0 : index
    %c0_199 = arith.constant 0 : index
    %c0_200 = arith.constant 0 : index
    %222 = vector.load %arg3[%c0_198, %c0_199, %c0_200] : memref<1x16x128xf32, #tpu.memory_space<vmem>>, vector<1x16x128xf32>
    %223 = vector.shape_cast %222 : vector<1x16x128xf32> to vector<16x128xf32>
    %224 = arith.addf %221, %223 : vector<16x128xf32>
    %c0_201 = arith.constant 0 : index
    %c0_202 = arith.constant 0 : index
    %c0_203 = arith.constant 0 : index
    %225 = vector.load %arg19[%c0_201, %c0_202, %c0_203] : memref<1x16x128xf32, #tpu.memory_space<vmem>>, vector<1x16x128xf32>
    %226 = vector.shape_cast %225 : vector<1x16x128xf32> to vector<16x128xf32>
    %227 = vector.shape_cast %224 : vector<16x128xf32> to vector<1x16x128xf32>
    tpu.vector_store %arg19[%c0_201, %c0_202, %c0_203], %227 {strides = array<i32>} : memref<1x16x128xf32, #tpu.memory_space<vmem>>, vector<1x16x128xf32>,
    return
  }
  func.func @transform_0(%arg0: i32, %arg1: i32) -> (i32, i32, i32, i32) {
    %c0_i32 = arith.constant 0 : i32
    %c0_i32_0 = arith.constant 0 : i32
    %c0_i32_1 = arith.constant 0 : i32
    return %arg0, %arg1, %c0_i32, %c0_i32_0 : i32, i32, i32, i32
  }
  func.func @transform_1(%arg0: i32, %arg1: i32) -> (i32, i32, i32) {
    %c0_i32 = arith.constant 0 : i32
    %c0_i32_0 = arith.constant 0 : i32
    return %arg0, %arg1, %c0_i32 : i32, i32, i32
  }
  func.func @transform_2(%arg0: i32, %arg1: i32) -> (i32, i32, i32) {
    %c0_i32 = arith.constant 0 : i32
    %c0_i32_0 = arith.constant 0 : i32
    %c0_i32_1 = arith.constant 0 : i32
    %c0_i32_2 = arith.constant 0 : i32
    return %c0_i32, %c0_i32_0, %c0_i32_1 : i32, i32, i32
  }
  func.func @transform_3(%arg0: i32, %arg1: i32) -> (i32, i32, i32) {
    %c0_i32 = arith.constant 0 : i32
    %c0_i32_0 = arith.constant 0 : i32
    %c0_i32_1 = arith.constant 0 : i32
    %c0_i32_2 = arith.constant 0 : i32
    return %c0_i32, %c0_i32_0, %c0_i32_1 : i32, i32, i32
  }
  func.func @transform_4(%arg0: i32, %arg1: i32) -> (i32, i32, i32) {
    %c0_i32 = arith.constant 0 : i32
    %c0_i32_0 = arith.constant 0 : i32
    %c0_i32_1 = arith.constant 0 : i32
    %c0_i32_2 = arith.constant 0 : i32
    return %c0_i32, %c0_i32_0, %c0_i32_1 : i32, i32, i32
  }
  func.func @transform_5(%arg0: i32, %arg1: i32) -> (i32, i32, i32) {
    %c0_i32 = arith.constant 0 : i32
    %c0_i32_0 = arith.constant 0 : i32
    %c0_i32_1 = arith.constant 0 : i32
    %c0_i32_2 = arith.constant 0 : i32
    return %c0_i32, %c0_i32_0, %c0_i32_1 : i32, i32, i32
  }
  func.func @transform_6(%arg0: i32, %arg1: i32) -> (i32, i32, i32) {
    %c0_i32 = arith.constant 0 : i32
    %c0_i32_0 = arith.constant 0 : i32
    %c0_i32_1 = arith.constant 0 : i32
    %c0_i32_2 = arith.constant 0 : i32
    return %c0_i32, %c0_i32_0, %c0_i32_1 : i32, i32, i32
  }
  func.func @transform_7(%arg0: i32, %arg1: i32) -> (i32, i32) {
    %c0_i32 = arith.constant 0 : i32
    %c0_i32_0 = arith.constant 0 : i32
    %c0_i32_1 = arith.constant 0 : i32
    return %c0_i32, %c0_i32_0 : i32, i32
  }
  func.func @transform_8(%arg0: i32, %arg1: i32) -> (i32, i32) {
    %c0_i32 = arith.constant 0 : i32
    %c0_i32_0 = arith.constant 0 : i32
    %c0_i32_1 = arith.constant 0 : i32
    return %c0_i32, %c0_i32_0 : i32, i32
  }
  func.func @transform_9(%arg0: i32, %arg1: i32) -> (i32, i32) {
    %c0_i32 = arith.constant 0 : i32
    %c0_i32_0 = arith.constant 0 : i32
    %c0_i32_1 = arith.constant 0 : i32
    return %c0_i32, %c0_i32_0 : i32, i32
  }
  func.func @transform_10(%arg0: i32, %arg1: i32) -> (i32, i32) {
    %c0_i32 = arith.constant 0 : i32
    %c0_i32_0 = arith.constant 0 : i32
    %c0_i32_1 = arith.constant 0 : i32
    return %c0_i32, %c0_i32_0 : i32, i32
  }
  func.func @transform_11(%arg0: i32, %arg1: i32) -> (i32, i32) {
    %c0_i32 = arith.constant 0 : i32
    %c0_i32_0 = arith.constant 0 : i32
    %c0_i32_1 = arith.constant 0 : i32
    return %c0_i32, %c0_i32_0 : i32, i32
  }
  func.func @transform_12(%arg0: i32, %arg1: i32) -> (i32, i32) {
    %c0_i32 = arith.constant 0 : i32
    %c0_i32_0 = arith.constant 0 : i32
    %c0_i32_1 = arith.constant 0 : i32
    return %c0_i32, %c0_i32_0 : i32, i32
  }
  func.func @transform_13(%arg0: i32, %arg1: i32) -> (i32, i32) {
    %c0_i32 = arith.constant 0 : i32
    %c0_i32_0 = arith.constant 0 : i32
    %c0_i32_1 = arith.constant 0 : i32
    return %c0_i32, %c0_i32_0 : i32, i32
  }
  func.func @transform_14(%arg0: i32, %arg1: i32) -> (i32, i32) {
    %c0_i32 = arith.constant 0 : i32
    %c0_i32_0 = arith.constant 0 : i32
    %c0_i32_1 = arith.constant 0 : i32
    return %c0_i32, %c0_i32_0 : i32, i32
  }
  func.func @transform_15(%arg0: i32, %arg1: i32) -> (i32, i32) {
    %c0_i32 = arith.constant 0 : i32
    %c0_i32_0 = arith.constant 0 : i32
    %c0_i32_1 = arith.constant 0 : i32
    return %c0_i32, %c0_i32_0 : i32, i32
  }
  func.func @transform_16(%arg0: i32, %arg1: i32) -> (i32, i32) {
    %c0_i32 = arith.constant 0 : i32
    %c0_i32_0 = arith.constant 0 : i32
    %c0_i32_1 = arith.constant 0 : i32
    return %c0_i32, %c0_i32_0 : i32, i32
  }
  func.func @transform_17(%arg0: i32, %arg1: i32) -> (i32, i32, i32) {
    %c0_i32 = arith.constant 0 : i32
    %c0_i32_0 = arith.constant 0 : i32
    return %arg0, %arg1, %c0_i32 : i32, i32, i32
  }
}

</mosaic_0001>

<llo_original>
// kernel: tpu_custom_call.1
$region0: #{tpu_custom_call.1}
  #allocation0 [shape = 'u32[]', space=smem, size = 0x4, offset = 0x4, fixed_abs, tag = 'smem constant byte address 0x4 - core index']
  #allocation1 [shape = 'u32[144,128]{1,0:T(1,128)}', space=vmem, size = 0x12000, scoped, tag = 'internal scratch']
  #allocation2 [shape = 'bf16[32,128]{1,0:T(16,128)(2,1)}', space=vmem, size = 0x2000, scoped, tag = 'scratch operand']
  #allocation3 [shape = 'bf16[32,128]{1,0:T(16,128)(2,1)}', space=vmem, size = 0x2000, scoped, tag = 'scratch operand']
  %s0 = inlined_call_operand.hbm [shape: bf16[2,1,36,128], index: 0, kind: input, shape index: {}]
  %s1 = inlined_call_operand.hbm [shape: f32[2,16,128], index: 1, kind: input, shape index: {}]
  %s2 = inlined_call_operand.hbm [shape: bf16[5,128,128], index: 2, kind: input, shape index: {}]
  %s3 = inlined_call_operand.hbm [shape: bf16[5,128,128], index: 3, kind: input, shape index: {}]
  %s4 = inlined_call_operand.hbm [shape: bf16[5,128,128], index: 4, kind: input, shape index: {}]
  %s5 = inlined_call_operand.hbm [shape: bf16[5,128,128], index: 5, kind: input, shape index: {}]
  %s6 = inlined_call_operand.hbm [shape: bf16[5,128,128], index: 6, kind: input, shape index: {}]
  %s7 = inlined_call_operand.hbm [shape: f32[1,128], index: 7, kind: input, shape index: {}]
  %s8 = inlined_call_operand.hbm [shape: f32[1,128], index: 8, kind: input, shape index: {}]
  %s9 = inlined_call_operand.hbm [shape: f32[1,128], index: 9, kind: input, shape index: {}]
  %s10 = inlined_call_operand.hbm [shape: f32[1,128], index: 10, kind: input, shape index: {}]
  %s11 = inlined_call_operand.hbm [shape: f32[1,128], index: 11, kind: input, shape index: {}]
  %s12 = inlined_call_operand.hbm [shape: f32[1,128], index: 12, kind: input, shape index: {}]
  %s13 = inlined_call_operand.hbm [shape: f32[1,128], index: 13, kind: input, shape index: {}]
  %s14 = inlined_call_operand.hbm [shape: f32[1,128], index: 14, kind: input, shape index: {}]
  %s15 = inlined_call_operand.hbm [shape: f32[1,128], index: 15, kind: input, shape index: {}]
  %s16 = inlined_call_operand.hbm [shape: f32[1,128], index: 16, kind: input, shape index: {}]
  %s17 = inlined_call_operand.hbm [shape: f32[2,16,128], index: 17, kind: output, shape index: {}]
  %s18 = sld [smem:[#allocation0]]
  $region169: #{tpu_custom_call.1} parent=0
    _
  %s20 = ssub.s32 1, %s18
  %s21 = scalar_select 0, %s20, %s18
  $region1: #{tpu_custom_call.1} parent=0
    #allocation4 [shape = 'u8[20480]{0}', space=vmem, size = 0x5000, scoped, tag = 'input window, operand 0']
    #allocation5 [shape = 's32[2]{0}', space=sflag, size = 0x8, scoped, tag = 'scoped memory for tpu_custom_call.1']
    #allocation6 [shape = 's32[2]{0}', space=sflag, size = 0x8, scoped, tag = 'scoped memory for tpu_custom_call.1']
    #allocation7 [shape = 'u8[16384]{0}', space=vmem, size = 0x4000, scoped, tag = 'input window, operand 1']
    #allocation8 [shape = 's32[2]{0}', space=sflag, size = 0x8, scoped, tag = 'scoped memory for tpu_custom_call.1']
    #allocation9 [shape = 'u8[163840]{0}', space=vmem, size = 0x28000, scoped, tag = 'input window, operand 2, single buffered']
    #allocation10 [shape = 'u8[163840]{0}', space=vmem, size = 0x28000, scoped, tag = 'input window, operand 3, single buffered']
    #allocation11 [shape = 's32[1]{0}', space=sflag, size = 0x4, scoped, tag = 'scoped memory for tpu_custom_call.1']
    #allocation12 [shape = 'u8[163840]{0}', space=vmem, size = 0x28000, scoped, tag = 'input window, operand 4, single buffered']
    #allocation13 [shape = 'u8[163840]{0}', space=vmem, size = 0x28000, scoped, tag = 'input window, operand 5, single buffered']
    #allocation14 [shape = 's32[1]{0}', space=sflag, size = 0x4, scoped, tag = 'scoped memory for tpu_custom_call.1']
    #allocation15 [shape = 'u8[163840]{0}', space=vmem, size = 0x28000, scoped, tag = 'input window, operand 6, single buffered']
    #allocation16 [shape = 'u8[512]{0}', space=vmem, size = 0x400, scoped, tag = 'input window, operand 7, single buffered']
    #allocation17 [shape = 's32[1]{0}', space=sflag, size = 0x4, scoped, tag = 'scoped memory for tpu_custom_call.1']
    #allocation18 [shape = 'u8[512]{0}', space=vmem, size = 0x400, scoped, tag = 'input window, operand 8, single buffered']
    #allocation19 [shape = 'u8[512]{0}', space=vmem, size = 0x400, scoped, tag = 'input window, operand 9, single buffered']
    #allocation20 [shape = 's32[1]{0}', space=sflag, size = 0x4, scoped, tag = 'scoped memory for tpu_custom_call.1']
    #allocation21 [shape = 'u8[512]{0}', space=vmem, size = 0x400, scoped, tag = 'input window, operand 10, single buffered']
    #allocation22 [shape = 'u8[512]{0}', space=vmem, size = 0x400, scoped, tag = 'input window, operand 11, single buffered']
    #allocation23 [shape = 's32[1]{0}', space=sflag, size = 0x4, scoped, tag = 'scoped memory for tpu_custom_call.1']
    #allocation24 [shape = 'u8[512]{0}', space=vmem, size = 0x400, scoped, tag = 'input window, operand 12, single buffered']
    #allocation25 [shape = 'u8[512]{0}', space=vmem, size = 0x400, scoped, tag = 'input window, operand 13, single buffered']
    #allocation26 [shape = 's32[1]{0}', space=sflag, size = 0x4, scoped, tag = 'scoped memory for tpu_custom_call.1']
    #allocation27 [shape = 'u8[512]{0}', space=vmem, size = 0x400, scoped, tag = 'input window, operand 14, single buffered']
    #allocation28 [shape = 'u8[512]{0}', space=vmem, size = 0x400, scoped, tag = 'input window, operand 15, single buffered']
    #allocation29 [shape = 's32[1]{0}', space=sflag, size = 0x4, scoped, tag = 'scoped memory for tpu_custom_call.1']
    #allocation30 [shape = 'u8[512]{0}', space=vmem, size = 0x400, scoped, tag = 'input window, operand 16, single buffered']
    #allocation31 [shape = 'u8[16384]{0}', space=vmem, size = 0x4000, scoped, tag = 'output window, operand 0']
    %22 = vsyncpa [#allocation5], 0
    %s23 = scalar_lea.sflag [#allocation5], 1
    %24 = vsyncpa %s23, 0
    %25 = vsyncpa [#allocation8], 0
    %s26 = scalar_lea.sflag [#allocation8], 1
    %27 = vsyncpa %s26, 0
    %28 = vsyncpa [#allocation11], 0
    %29 = vsyncpa [#allocation14], 0
    %30 = vsyncpa [#allocation17], 0
    %31 = vsyncpa [#allocation20], 0
    %32 = vsyncpa [#allocation23], 0
    %33 = vsyncpa [#allocation26], 0
    %34 = vsyncpa [#allocation29], 0
    %35 = vsyncpa [#allocation6], 0
    %s36 = scalar_lea.sflag [#allocation6], 1
    %37 = vsyncpa %s36, 0
    loop: start=0, step=1, limit=4
    $region2: #{tpu_custom_call.1} parent=1 // loop_pre_header
      _
    $region3: #{tpu_custom_call.1} parent=1 // loop_header
      %s39 = sphi 0, %s43
      %p40 = scmp.ge.s32.totalorder %s39, 4
      %s46 = sphi 0, %s58
      %s47 = sphi 0, %s54
      %s48 = sphi 0, %s46
      %s49 = sphi 0, %s47
      %s50 = sphi 0, %s48
      %s51 = sphi 0, %s49
      %s63 = sphi 0, %s65
      %s66 = sphi 0, %s63
      %s67 = sphi 0, %s66
      %s83 = sphi 0, %s67
      %s91 = sphi 0, %s93
      %s94 = sphi 0, %s91
      %s95 = sphi 0, %s94
      %s111 = sphi 0, %s95
      %s115 = sphi 0, %s115
      %s117 = sphi 0, %s115
      %s118 = sphi 0, %s117
      %s132 = sphi 0, %s118
      %s136 = sphi 0, %s136
      %s138 = sphi 0, %s136
      %s139 = sphi 0, %s138
      %s153 = sphi 0, %s139
      %s157 = sphi 0, %s157
      %s159 = sphi 0, %s157
      %s160 = sphi 0, %s159
      %s174 = sphi 0, %s160
      %s178 = sphi 0, %s178
      %s180 = sphi 0, %s178
      %s181 = sphi 0, %s180
      %s195 = sphi 0, %s181
      %s199 = sphi 0, %s199
      %s201 = sphi 0, %s199
      %s202 = sphi 0, %s201
      %s216 = sphi 0, %s202
      %s220 = sphi 0, %s220
      %s222 = sphi 0, %s220
      %s223 = sphi 0, %s222
      %s237 = sphi 0, %s223
      %s241 = sphi 0, %s241
      %s243 = sphi 0, %s241
      %s244 = sphi 0, %s243
      %s258 = sphi 0, %s244
      %s262 = sphi 0, %s262
      %s264 = sphi 0, %s262
      %s265 = sphi 0, %s264
      %s279 = sphi 0, %s265
      %s283 = sphi 0, %s283
      %s285 = sphi 0, %s283
      %s286 = sphi 0, %s285
      %s300 = sphi 0, %s286
      %s304 = sphi 0, %s304
      %s306 = sphi 0, %s304
      %s307 = sphi 0, %s306
      %s321 = sphi 0, %s307
      %s325 = sphi 0, %s325
      %s327 = sphi 0, %s325
      %s328 = sphi 0, %s327
      %s342 = sphi 0, %s328
      %s346 = sphi 0, %s346
      %s348 = sphi 0, %s346
      %s349 = sphi 0, %s348
      %s363 = sphi 0, %s349
      %s367 = sphi 0, %s367
      %s369 = sphi 0, %s367
      %s370 = sphi 0, %s369
      %s384 = sphi 0, %s370
      %s388 = sphi 0, %s388
      %s390 = sphi 0, %s388
      %s391 = sphi 0, %s390
      %s405 = sphi 0, %s391
      %s409 = sphi 0, %s409
      %s411 = sphi 0, %s409
      %s412 = sphi 0, %s411
      %s426 = sphi 0, %s412
      %s434 = sphi 0, %s436
      %s437 = sphi 0, %s434
      %s438 = sphi 0, %s437
      %s454 = sphi 0, %s438
    $region4: #{tpu_custom_call.1} parent=1 // loop_header_branch
      %42 = sbr.rel (%p40) target = $region8
    $region5: #{tpu_custom_call.1} parent=1 // loop_body
      %s44 = ssub.s32 %s39, 1
      %s45 = ssub.s32 %s39, 2
      %s52 = sadd.s32 1, %s47
      %p53 = scmp.ge.s32.totalorder %s52, 1
      %s54 = scalar_select %p53, 0, %s52
      %s55 = sadd.s32 1, %s46
      %s56 = scalar_select %p53, %s55, %s46
      %p57 = scmp.ge.s32.totalorder %s56, 2
      %s58 = scalar_select %p57, 0, %s56
      %s59 = ssub.s32 %s46, %s58
      %s60 = ssub.s32 %s47, %s54
      %s61 = sor.u32 %s59, %s60
      %p62 = scmp.eq.s32.totalorder %s61, 0
      %s64 = sadd.s32 %s63, 1
      %s65 = scalar_select %p62, %s63, %s64
      %p68 = pneg %p62
      %p69 = scmp.eq.s32.totalorder %s39, 1
      %p70 = por %p68, %p69
      %p71 = scmp.ne.s32.totalorder %s63, %s66
      %p72 = scmp.eq.s32.totalorder %s39, 0
      %p73 = por %p71, %p72
      %p74 = scmp.ne.s32.totalorder %s63, %s66
      %p75 = scmp.eq.s32.totalorder %s44, 1
      %p76 = por %p74, %p75
      %p77 = scmp.ne.s32.totalorder %s66, %s67
      %p78 = scmp.eq.s32.totalorder %s44, 0
      %p79 = por %p77, %p78
      %p80 = scmp.ne.s32.totalorder %s66, %s67
      %p81 = scmp.eq.s32.totalorder %s45, 1
      %p82 = por %p80, %p81
      %p84 = scmp.ne.s32.totalorder %s67, %s83
      %p85 = scmp.eq.s32.totalorder %s45, 0
      %p86 = por %p84, %p85
      %s87 = ssub.s32 %s46, %s58
      %s88 = ssub.s32 %s47, %s54
      %s89 = sor.u32 %s87, %s88
      %p90 = scmp.eq.s32.totalorder %s89, 0
      %s92 = sadd.s32 %s91, 1
      %s93 = scalar_select %p90, %s91, %s92
      %p96 = pneg %p90
      %p97 = scmp.eq.s32.totalorder %s39, 1
      %p98 = por %p96, %p97
      %p99 = scmp.ne.s32.totalorder %s91, %s94
      %p100 = scmp.eq.s32.totalorder %s39, 0
      %p101 = por %p99, %p100
      %p102 = scmp.ne.s32.totalorder %s91, %s94
      %p103 = scmp.eq.s32.totalorder %s44, 1
      %p104 = por %p102, %p103
      %p105 = scmp.ne.s32.totalorder %s94, %s95
      %p106 = scmp.eq.s32.totalorder %s44, 0
      %p107 = por %p105, %p106
      %p108 = scmp.ne.s32.totalorder %s94, %s95
      %p109 = scmp.eq.s32.totalorder %s45, 1
      %p110 = por %p108, %p109
      %p112 = scmp.ne.s32.totalorder %s95, %s111
      %p113 = scmp.eq.s32.totalorder %s45, 0
      %p114 = por %p112, %p113
      %s116 = sadd.s32 %s115, 1
      %p119 = scmp.eq.s32.totalorder %s39, 1
      %p120 = scmp.ne.s32.totalorder %s115, %s117
      %p121 = scmp.eq.s32.totalorder %s39, 0
      %p122 = por %p120, %p121
      %p123 = scmp.ne.s32.totalorder %s115, %s117
      %p124 = scmp.eq.s32.totalorder %s44, 1
      %p125 = por %p123, %p124
      %p126 = scmp.ne.s32.totalorder %s117, %s118
      %p127 = scmp.eq.s32.totalorder %s44, 0
      %p128 = por %p126, %p127
      %p129 = scmp.ne.s32.totalorder %s117, %s118
      %p130 = scmp.eq.s32.totalorder %s45, 1
      %p131 = por %p129, %p130
      %p133 = scmp.ne.s32.totalorder %s118, %s132
      %p134 = scmp.eq.s32.totalorder %s45, 0
      %p135 = por %p133, %p134
      %s137 = sadd.s32 %s136, 1
      %p140 = scmp.eq.s32.totalorder %s39, 1
      %p141 = scmp.ne.s32.totalorder %s136, %s138
      %p142 = scmp.eq.s32.totalorder %s39, 0
      %p143 = por %p141, %p142
      %p144 = scmp.ne.s32.totalorder %s136, %s138
      %p145 = scmp.eq.s32.totalorder %s44, 1
      %p146 = por %p144, %p145
      %p147 = scmp.ne.s32.totalorder %s138, %s139
      %p148 = scmp.eq.s32.totalorder %s44, 0
      %p149 = por %p147, %p148
      %p150 = scmp.ne.s32.totalorder %s138, %s139
      %p151 = scmp.eq.s32.totalorder %s45, 1
      %p152 = por %p150, %p151
      %p154 = scmp.ne.s32.totalorder %s139, %s153
      %p155 = scmp.eq.s32.totalorder %s45, 0
      %p156 = por %p154, %p155
      %s158 = sadd.s32 %s157, 1
      %p161 = scmp.eq.s32.totalorder %s39, 1
      %p162 = scmp.ne.s32.totalorder %s157, %s159
      %p163 = scmp.eq.s32.totalorder %s39, 0
      %p164 = por %p162, %p163
      %p165 = scmp.ne.s32.totalorder %s157, %s159
      %p166 = scmp.eq.s32.totalorder %s44, 1
      %p167 = por %p165, %p166
      %p168 = scmp.ne.s32.totalorder %s159, %s160
      %p169 = scmp.eq.s32.totalorder %s44, 0
      %p170 = por %p168, %p169
      %p171 = scmp.ne.s32.totalorder %s159, %s160
      %p172 = scmp.eq.s32.totalorder %s45, 1
      %p173 = por %p171, %p172
      %p175 = scmp.ne.s32.totalorder %s160, %s174
      %p176 = scmp.eq.s32.totalorder %s45, 0
      %p177 = por %p175, %p176
      %s179 = sadd.s32 %s178, 1
      %p182 = scmp.eq.s32.totalorder %s39, 1
      %p183 = scmp.ne.s32.totalorder %s178, %s180
      %p184 = scmp.eq.s32.totalorder %s39, 0
      %p185 = por %p183, %p184
      %p186 = scmp.ne.s32.totalorder %s178, %s180
      %p187 = scmp.eq.s32.totalorder %s44, 1
      %p188 = por %p186, %p187
      %p189 = scmp.ne.s32.totalorder %s180, %s181
      %p190 = scmp.eq.s32.totalorder %s44, 0
      %p191 = por %p189, %p190
      %p192 = scmp.ne.s32.totalorder %s180, %s181
      %p193 = scmp.eq.s32.totalorder %s45, 1
      %p194 = por %p192, %p193
      %p196 = scmp.ne.s32.totalorder %s181, %s195
      %p197 = scmp.eq.s32.totalorder %s45, 0
      %p198 = por %p196, %p197
      %s200 = sadd.s32 %s199, 1
      %p203 = scmp.eq.s32.totalorder %s39, 1
      %p204 = scmp.ne.s32.totalorder %s199, %s201
      %p205 = scmp.eq.s32.totalorder %s39, 0
      %p206 = por %p204, %p205
      %p207 = scmp.ne.s32.totalorder %s199, %s201
      %p208 = scmp.eq.s32.totalorder %s44, 1
      %p209 = por %p207, %p208
      %p210 = scmp.ne.s32.totalorder %s201, %s202
      %p211 = scmp.eq.s32.totalorder %s44, 0
      %p212 = por %p210, %p211
      %p213 = scmp.ne.s32.totalorder %s201, %s202
      %p214 = scmp.eq.s32.totalorder %s45, 1
      %p215 = por %p213, %p214
      %p217 = scmp.ne.s32.totalorder %s202, %s216
      %p218 = scmp.eq.s32.totalorder %s45, 0
      %p219 = por %p217, %p218
      %s221 = sadd.s32 %s220, 1
      %p224 = scmp.eq.s32.totalorder %s39, 1
      %p225 = scmp.ne.s32.totalorder %s220, %s222
      %p226 = scmp.eq.s32.totalorder %s39, 0
      %p227 = por %p225, %p226
      %p228 = scmp.ne.s32.totalorder %s220, %s222
      %p229 = scmp.eq.s32.totalorder %s44, 1
      %p230 = por %p228, %p229
      %p231 = scmp.ne.s32.totalorder %s222, %s223
      %p232 = scmp.eq.s32.totalorder %s44, 0
      %p233 = por %p231, %p232
      %p234 = scmp.ne.s32.totalorder %s222, %s223
      %p235 = scmp.eq.s32.totalorder %s45, 1
      %p236 = por %p234, %p235
      %p238 = scmp.ne.s32.totalorder %s223, %s237
      %p239 = scmp.eq.s32.totalorder %s45, 0
      %p240 = por %p238, %p239
      %s242 = sadd.s32 %s241, 1
      %p245 = scmp.eq.s32.totalorder %s39, 1
      %p246 = scmp.ne.s32.totalorder %s241, %s243
      %p247 = scmp.eq.s32.totalorder %s39, 0
      %p248 = por %p246, %p247
      %p249 = scmp.ne.s32.totalorder %s241, %s243
      %p250 = scmp.eq.s32.totalorder %s44, 1
      %p251 = por %p249, %p250
      %p252 = scmp.ne.s32.totalorder %s243, %s244
      %p253 = scmp.eq.s32.totalorder %s44, 0
      %p254 = por %p252, %p253
      %p255 = scmp.ne.s32.totalorder %s243, %s244
      %p256 = scmp.eq.s32.totalorder %s45, 1
      %p257 = por %p255, %p256
      %p259 = scmp.ne.s32.totalorder %s244, %s258
      %p260 = scmp.eq.s32.totalorder %s45, 0
      %p261 = por %p259, %p260
      %s263 = sadd.s32 %s262, 1
      %p266 = scmp.eq.s32.totalorder %s39, 1
      %p267 = scmp.ne.s32.totalorder %s262, %s264
      %p268 = scmp.eq.s32.totalorder %s39, 0
      %p269 = por %p267, %p268
      %p270 = scmp.ne.s32.totalorder %s262, %s264
      %p271 = scmp.eq.s32.totalorder %s44, 1
      %p272 = por %p270, %p271
      %p273 = scmp.ne.s32.totalorder %s264, %s265
      %p274 = scmp.eq.s32.totalorder %s44, 0
      %p275 = por %p273, %p274
      %p276 = scmp.ne.s32.totalorder %s264, %s265
      %p277 = scmp.eq.s32.totalorder %s45, 1
      %p278 = por %p276, %p277
      %p280 = scmp.ne.s32.totalorder %s265, %s279
      %p281 = scmp.eq.s32.totalorder %s45, 0
      %p282 = por %p280, %p281
      %s284 = sadd.s32 %s283, 1
      %p287 = scmp.eq.s32.totalorder %s39, 1
      %p288 = scmp.ne.s32.totalorder %s283, %s285
      %p289 = scmp.eq.s32.totalorder %s39, 0
      %p290 = por %p288, %p289
      %p291 = scmp.ne.s32.totalorder %s283, %s285
      %p292 = scmp.eq.s32.totalorder %s44, 1
      %p293 = por %p291, %p292
      %p294 = scmp.ne.s32.totalorder %s285, %s286
      %p295 = scmp.eq.s32.totalorder %s44, 0
      %p296 = por %p294, %p295
      %p297 = scmp.ne.s32.totalorder %s285, %s286
      %p298 = scmp.eq.s32.totalorder %s45, 1
      %p299 = por %p297, %p298
      %p301 = scmp.ne.s32.totalorder %s286, %s300
      %p302 = scmp.eq.s32.totalorder %s45, 0
      %p303 = por %p301, %p302
      %s305 = sadd.s32 %s304, 1
      %p308 = scmp.eq.s32.totalorder %s39, 1
      %p309 = scmp.ne.s32.totalorder %s304, %s306
      %p310 = scmp.eq.s32.totalorder %s39, 0
      %p311 = por %p309, %p310
      %p312 = scmp.ne.s32.totalorder %s304, %s306
      %p313 = scmp.eq.s32.totalorder %s44, 1
      %p314 = por %p312, %p313
      %p315 = scmp.ne.s32.totalorder %s306, %s307
      %p316 = scmp.eq.s32.totalorder %s44, 0
      %p317 = por %p315, %p316
      %p318 = scmp.ne.s32.totalorder %s306, %s307
      %p319 = scmp.eq.s32.totalorder %s45, 1
      %p320 = por %p318, %p319
      %p322 = scmp.ne.s32.totalorder %s307, %s321
      %p323 = scmp.eq.s32.totalorder %s45, 0
      %p324 = por %p322, %p323
      %s326 = sadd.s32 %s325, 1
      %p329 = scmp.eq.s32.totalorder %s39, 1
      %p330 = scmp.ne.s32.totalorder %s325, %s327
      %p331 = scmp.eq.s32.totalorder %s39, 0
      %p332 = por %p330, %p331
      %p333 = scmp.ne.s32.totalorder %s325, %s327
      %p334 = scmp.eq.s32.totalorder %s44, 1
      %p335 = por %p333, %p334
      %p336 = scmp.ne.s32.totalorder %s327, %s328
      %p337 = scmp.eq.s32.totalorder %s44, 0
      %p338 = por %p336, %p337
      %p339 = scmp.ne.s32.totalorder %s327, %s328
      %p340 = scmp.eq.s32.totalorder %s45, 1
      %p341 = por %p339, %p340
      %p343 = scmp.ne.s32.totalorder %s328, %s342
      %p344 = scmp.eq.s32.totalorder %s45, 0
      %p345 = por %p343, %p344
      %s347 = sadd.s32 %s346, 1
      %p350 = scmp.eq.s32.totalorder %s39, 1
      %p351 = scmp.ne.s32.totalorder %s346, %s348
      %p352 = scmp.eq.s32.totalorder %s39, 0
      %p353 = por %p351, %p352
      %p354 = scmp.ne.s32.totalorder %s346, %s348
      %p355 = scmp.eq.s32.totalorder %s44, 1
      %p356 = por %p354, %p355
      %p357 = scmp.ne.s32.totalorder %s348, %s349
      %p358 = scmp.eq.s32.totalorder %s44, 0
      %p359 = por %p357, %p358
      %p360 = scmp.ne.s32.totalorder %s348, %s349
      %p361 = scmp.eq.s32.totalorder %s45, 1
      %p362 = por %p360, %p361
      %p364 = scmp.ne.s32.totalorder %s349, %s363
      %p365 = scmp.eq.s32.totalorder %s45, 0
      %p366 = por %p364, %p365
      %s368 = sadd.s32 %s367, 1
      %p371 = scmp.eq.s32.totalorder %s39, 1
      %p372 = scmp.ne.s32.totalorder %s367, %s369
      %p373 = scmp.eq.s32.totalorder %s39, 0
      %p374 = por %p372, %p373
      %p375 = scmp.ne.s32.totalorder %s367, %s369
      %p376 = scmp.eq.s32.totalorder %s44, 1
      %p377 = por %p375, %p376
      %p378 = scmp.ne.s32.totalorder %s369, %s370
      %p379 = scmp.eq.s32.totalorder %s44, 0
      %p380 = por %p378, %p379
      %p381 = scmp.ne.s32.totalorder %s369, %s370
      %p382 = scmp.eq.s32.totalorder %s45, 1
      %p383 = por %p381, %p382
      %p385 = scmp.ne.s32.totalorder %s370, %s384
      %p386 = scmp.eq.s32.totalorder %s45, 0
      %p387 = por %p385, %p386
      %s389 = sadd.s32 %s388, 1
      %p392 = scmp.eq.s32.totalorder %s39, 1
      %p393 = scmp.ne.s32.totalorder %s388, %s390
      %p394 = scmp.eq.s32.totalorder %s39, 0
      %p395 = por %p393, %p394
      %p396 = scmp.ne.s32.totalorder %s388, %s390
      %p397 = scmp.eq.s32.totalorder %s44, 1
      %p398 = por %p396, %p397
      %p399 = scmp.ne.s32.totalorder %s390, %s391
      %p400 = scmp.eq.s32.totalorder %s44, 0
      %p401 = por %p399, %p400
      %p402 = scmp.ne.s32.totalorder %s390, %s391
      %p403 = scmp.eq.s32.totalorder %s45, 1
      %p404 = por %p402, %p403
      %p406 = scmp.ne.s32.totalorder %s391, %s405
      %p407 = scmp.eq.s32.totalorder %s45, 0
      %p408 = por %p406, %p407
      %s410 = sadd.s32 %s409, 1
      %p413 = scmp.eq.s32.totalorder %s39, 1
      %p414 = scmp.ne.s32.totalorder %s409, %s411
      %p415 = scmp.eq.s32.totalorder %s39, 0
      %p416 = por %p414, %p415
      %p417 = scmp.ne.s32.totalorder %s409, %s411
      %p418 = scmp.eq.s32.totalorder %s44, 1
      %p419 = por %p417, %p418
      %p420 = scmp.ne.s32.totalorder %s411, %s412
      %p421 = scmp.eq.s32.totalorder %s44, 0
      %p422 = por %p420, %p421
      %p423 = scmp.ne.s32.totalorder %s411, %s412
      %p424 = scmp.eq.s32.totalorder %s45, 1
      %p425 = por %p423, %p424
      %p427 = scmp.ne.s32.totalorder %s412, %s426
      %p428 = scmp.eq.s32.totalorder %s45, 0
      %p429 = por %p427, %p428
      %s430 = ssub.s32 %s46, %s58
      %s431 = ssub.s32 %s47, %s54
      %s432 = sor.u32 %s430, %s431
      %p433 = scmp.eq.s32.totalorder %s432, 0
      %s435 = sadd.s32 %s434, 1
      %s436 = scalar_select %p433, %s434, %s435
      %p439 = pneg %p433
      %p440 = scmp.eq.s32.totalorder %s39, 1
      %p441 = por %p439, %p440
      %p442 = scmp.ne.s32.totalorder %s434, %s437
      %p443 = scmp.eq.s32.totalorder %s39, 0
      %p444 = por %p442, %p443
      %p445 = scmp.ne.s32.totalorder %s434, %s437
      %p446 = scmp.eq.s32.totalorder %s44, 1
      %p447 = por %p445, %p446
      %p448 = scmp.ne.s32.totalorder %s437, %s438
      %p449 = scmp.eq.s32.totalorder %s44, 0
      %p450 = por %p448, %p449
      %p451 = scmp.ne.s32.totalorder %s437, %s438
      %p452 = scmp.eq.s32.totalorder %s45, 1
      %p453 = por %p451, %p452
      %p455 = scmp.ne.s32.totalorder %s438, %s454
      %p456 = scmp.eq.s32.totalorder %s45, 0
      %p457 = por %p455, %p456
      %p458 = scmp.le.s32.totalorder 1, %s39
      %p459 = scmp.lt.s32.totalorder %s39, 3
      %p460 = pnand %p458, %p459
      %p461 = pneg %p460
      // Predicated region
      $region9: #{tpu_custom_call.1} parent=5 // pred_check
        _
      $region10: #{tpu_custom_call.1} parent=5 // pred_check_branch
        %463 = sbr.rel (%p460) target = $region12
      $region11: #{tpu_custom_call.1} parent=5 // pred_region
        %s464 = ssub.s32 %s39, 1
        // Predicated region
        $region13: #{tpu_custom_call.1} parent=11 // pred_check
          %p465 = pneg %p128
        $region14: #{tpu_custom_call.1} parent=11 // pred_check_branch
          %467 = sbr.rel (%p465) target = $region16
        $region15: #{tpu_custom_call.1} parent=11 // pred_region
          %s469 = ssub.s32 5120, 5120
          %470 = vsyncadd [#allocation8], %s469
          %s471 = sshll.u32 [#allocation9], 4
          %s472 = int_to_ptr.vmem [resolvable:$true] %s471
          %477 = dma.hbm_to_vmem [thread:$0]  %s2, 5120, %s472, [#allocation8], 64, 64, 4
        $region16: #{tpu_custom_call.1} parent=11 // pred_fallthru
          _
        // Predicated region
        $region17: #{tpu_custom_call.1} parent=11 // pred_check
          %p478 = pneg %p149
        $region18: #{tpu_custom_call.1} parent=11 // pred_check_branch
          %480 = sbr.rel (%p478) target = $region20
        $region19: #{tpu_custom_call.1} parent=11 // pred_region
          %s482 = ssub.s32 5120, 5120
          %483 = vsyncadd [#allocation11], %s482
          %s484 = sshll.u32 [#allocation10], 4
          %s485 = int_to_ptr.vmem [resolvable:$true] %s484
          %490 = dma.hbm_to_vmem [thread:$0]  %s3, 5120, %s485, [#allocation11], 64, 64, 4
        $region20: #{tpu_custom_call.1} parent=11 // pred_fallthru
          _
        // Predicated region
        $region21: #{tpu_custom_call.1} parent=11 // pred_check
          %p491 = pneg %p170
        $region22: #{tpu_custom_call.1} parent=11 // pred_check_branch
          %493 = sbr.rel (%p491) target = $region24
        $region23: #{tpu_custom_call.1} parent=11 // pred_region
          %s495 = ssub.s32 5120, 5120
          %496 = vsyncadd [#allocation11], %s495
          %s497 = sshll.u32 [#allocation12], 4
          %s498 = int_to_ptr.vmem [resolvable:$true] %s497
          %503 = dma.hbm_to_vmem [thread:$0]  %s4, 5120, %s498, [#allocation11], 64, 64, 4
        $region24: #{tpu_custom_call.1} parent=11 // pred_fallthru
          _
        // Predicated region
        $region25: #{tpu_custom_call.1} parent=11 // pred_check
          %p504 = pneg %p191
        $region26: #{tpu_custom_call.1} parent=11 // pred_check_branch
          %506 = sbr.rel (%p504) target = $region28
        $region27: #{tpu_custom_call.1} parent=11 // pred_region
          %s508 = ssub.s32 5120, 5120
          %509 = vsyncadd [#allocation14], %s508
          %s510 = sshll.u32 [#allocation13], 4
          %s511 = int_to_ptr.vmem [resolvable:$true] %s510
          %516 = dma.hbm_to_vmem [thread:$0]  %s5, 5120, %s511, [#allocation14], 64, 64, 4
        $region28: #{tpu_custom_call.1} parent=11 // pred_fallthru
          _
        // Predicated region
        $region29: #{tpu_custom_call.1} parent=11 // pred_check
          %p517 = pneg %p212
        $region30: #{tpu_custom_call.1} parent=11 // pred_check_branch
          %519 = sbr.rel (%p517) target = $region32
        $region31: #{tpu_custom_call.1} parent=11 // pred_region
          %s521 = ssub.s32 5120, 5120
          %522 = vsyncadd [#allocation14], %s521
          %s523 = sshll.u32 [#allocation15], 4
          %s524 = int_to_ptr.vmem [resolvable:$true] %s523
          %529 = dma.hbm_to_vmem [thread:$0]  %s6, 5120, %s524, [#allocation14], 64, 64, 4
        $region32: #{tpu_custom_call.1} parent=11 // pred_fallthru
          _
        // Predicated region
        $region33: #{tpu_custom_call.1} parent=11 // pred_check
          %p530 = pneg %p233
        $region34: #{tpu_custom_call.1} parent=11 // pred_check_branch
          %532 = sbr.rel (%p530) target = $region36
        $region35: #{tpu_custom_call.1} parent=11 // pred_region
          %s534 = ssub.s32 16, 16
          %535 = vsyncadd [#allocation17], %s534
          %s537 = sshll.u32 [#allocation16], 4
          %s538 = int_to_ptr.vmem [resolvable:$true] %s537
          %540 = dma.hbm_to_vmem [thread:$0]  %s7, 16, %s538, [#allocation17]
        $region36: #{tpu_custom_call.1} parent=11 // pred_fallthru
          _
        // Predicated region
        $region37: #{tpu_custom_call.1} parent=11 // pred_check
          %p541 = pneg %p254
        $region38: #{tpu_custom_call.1} parent=11 // pred_check_branch
          %543 = sbr.rel (%p541) target = $region40
        $region39: #{tpu_custom_call.1} parent=11 // pred_region
          %s545 = ssub.s32 16, 16
          %546 = vsyncadd [#allocation17], %s545
          %s548 = sshll.u32 [#allocation18], 4
          %s549 = int_to_ptr.vmem [resolvable:$true] %s548
          %551 = dma.hbm_to_vmem [thread:$0]  %s8, 16, %s549, [#allocation17]
        $region40: #{tpu_custom_call.1} parent=11 // pred_fallthru
          _
        // Predicated region
        $region41: #{tpu_custom_call.1} parent=11 // pred_check
          %p552 = pneg %p275
        $region42: #{tpu_custom_call.1} parent=11 // pred_check_branch
          %554 = sbr.rel (%p552) target = $region44
        $region43: #{tpu_custom_call.1} parent=11 // pred_region
          %s556 = ssub.s32 16, 16
          %557 = vsyncadd [#allocation20], %s556
          %s559 = sshll.u32 [#allocation19], 4
          %s560 = int_to_ptr.vmem [resolvable:$true] %s559
          %562 = dma.hbm_to_vmem [thread:$0]  %s9, 16, %s560, [#allocation20]
        $region44: #{tpu_custom_call.1} parent=11 // pred_fallthru
          _
        // Predicated region
        $region45: #{tpu_custom_call.1} parent=11 // pred_check
          %p563 = pneg %p296
        $region46: #{tpu_custom_call.1} parent=11 // pred_check_branch
          %565 = sbr.rel (%p563) target = $region48
        $region47: #{tpu_custom_call.1} parent=11 // pred_region
          %s567 = ssub.s32 16, 16
          %568 = vsyncadd [#allocation20], %s567
          %s570 = sshll.u32 [#allocation21], 4
          %s571 = int_to_ptr.vmem [resolvable:$true] %s570
          %573 = dma.hbm_to_vmem [thread:$0]  %s10, 16, %s571, [#allocation20]
        $region48: #{tpu_custom_call.1} parent=11 // pred_fallthru
          _
        // Predicated region
        $region49: #{tpu_custom_call.1} parent=11 // pred_check
          %p574 = pneg %p317
        $region50: #{tpu_custom_call.1} parent=11 // pred_check_branch
          %576 = sbr.rel (%p574) target = $region52
        $region51: #{tpu_custom_call.1} parent=11 // pred_region
          %s578 = ssub.s32 16, 16
          %579 = vsyncadd [#allocation23], %s578
          %s581 = sshll.u32 [#allocation22], 4
          %s582 = int_to_ptr.vmem [resolvable:$true] %s581
          %584 = dma.hbm_to_vmem [thread:$0]  %s11, 16, %s582, [#allocation23]
        $region52: #{tpu_custom_call.1} parent=11 // pred_fallthru
          _
        // Predicated region
        $region53: #{tpu_custom_call.1} parent=11 // pred_check
          %p585 = pneg %p338
        $region54: #{tpu_custom_call.1} parent=11 // pred_check_branch
          %587 = sbr.rel (%p585) target = $region56
        $region55: #{tpu_custom_call.1} parent=11 // pred_region
          %s589 = ssub.s32 16, 16
          %590 = vsyncadd [#allocation23], %s589
          %s592 = sshll.u32 [#allocation24], 4
          %s593 = int_to_ptr.vmem [resolvable:$true] %s592
          %595 = dma.hbm_to_vmem [thread:$0]  %s12, 16, %s593, [#allocation23]
        $region56: #{tpu_custom_call.1} parent=11 // pred_fallthru
          _
        // Predicated region
        $region57: #{tpu_custom_call.1} parent=11 // pred_check
          %p596 = pneg %p359
        $region58: #{tpu_custom_call.1} parent=11 // pred_check_branch
          %598 = sbr.rel (%p596) target = $region60
        $region59: #{tpu_custom_call.1} parent=11 // pred_region
          %s600 = ssub.s32 16, 16
          %601 = vsyncadd [#allocation26], %s600
          %s603 = sshll.u32 [#allocation25], 4
          %s604 = int_to_ptr.vmem [resolvable:$true] %s603
          %606 = dma.hbm_to_vmem [thread:$0]  %s13, 16, %s604, [#allocation26]
        $region60: #{tpu_custom_call.1} parent=11 // pred_fallthru
          _
        // Predicated region
        $region61: #{tpu_custom_call.1} parent=11 // pred_check
          %p607 = pneg %p380
        $region62: #{tpu_custom_call.1} parent=11 // pred_check_branch
          %609 = sbr.rel (%p607) target = $region64
        $region63: #{tpu_custom_call.1} parent=11 // pred_region
          %s611 = ssub.s32 16, 16
          %612 = vsyncadd [#allocation26], %s611
          %s614 = sshll.u32 [#allocation27], 4
          %s615 = int_to_ptr.vmem [resolvable:$true] %s614
          %617 = dma.hbm_to_vmem [thread:$0]  %s14, 16, %s615, [#allocation26]
        $region64: #{tpu_custom_call.1} parent=11 // pred_fallthru
          _
        // Predicated region
        $region65: #{tpu_custom_call.1} parent=11 // pred_check
          %p618 = pneg %p401
        $region66: #{tpu_custom_call.1} parent=11 // pred_check_branch
          %620 = sbr.rel (%p618) target = $region68
        $region67: #{tpu_custom_call.1} parent=11 // pred_region
          %s622 = ssub.s32 16, 16
          %623 = vsyncadd [#allocation29], %s622
          %s625 = sshll.u32 [#allocation28], 4
          %s626 = int_to_ptr.vmem [resolvable:$true] %s625
          %628 = dma.hbm_to_vmem [thread:$0]  %s15, 16, %s626, [#allocation29]
        $region68: #{tpu_custom_call.1} parent=11 // pred_fallthru
          _
        // Predicated region
        $region69: #{tpu_custom_call.1} parent=11 // pred_check
          %p629 = pneg %p422
        $region70: #{tpu_custom_call.1} parent=11 // pred_check_branch
          %631 = sbr.rel (%p629) target = $region72
        $region71: #{tpu_custom_call.1} parent=11 // pred_region
          %s633 = ssub.s32 16, 16
          %634 = vsyncadd [#allocation29], %s633
          %s636 = sshll.u32 [#allocation30], 4
          %s637 = int_to_ptr.vmem [resolvable:$true] %s636
          %639 = dma.hbm_to_vmem [thread:$0]  %s16, 16, %s637, [#allocation29]
        $region72: #{tpu_custom_call.1} parent=11 // pred_fallthru
          _
      $region12: #{tpu_custom_call.1} parent=5 // pred_fallthru
        _
      %p640 = scmp.lt.s32.totalorder %s39, 2
      // Predicated region
      $region73: #{tpu_custom_call.1} parent=5 // pred_check
        %p641 = pneg %p640
      $region74: #{tpu_custom_call.1} parent=5 // pred_check_branch
        %643 = sbr.rel (%p641) target = $region76
      $region75: #{tpu_custom_call.1} parent=5 // pred_region
        // Predicated region
        $region77: #{tpu_custom_call.1} parent=75 // pred_check
          %p644 = pneg %p73
        $region78: #{tpu_custom_call.1} parent=75 // pred_check_branch
          %646 = sbr.rel (%p644) target = $region80
        $region79: #{tpu_custom_call.1} parent=75 // pred_region
          %s647 = sand.u32 %s63, 1
          %s648 = scalar_lea.sflag [#allocation5], %s647
          %s649 = sand.u32 %s63, 1
          %s650 = smul.addr %s649, 20
          %s651 = scalar_lea.vmem [#allocation4], %s650
          %s653 = ssub.s32 320, 320
          %654 = vsyncadd %s648, %s653
          %s655 = smul.addr %s47, 5
          %s656 = smul.addr %s46, 5
          %s657 = sadd.s32 %s655, %s656
          %s658 = smul.addr %s657, 64
          %s659 = scalar_lea.hbm %s0, %s658
          %s660 = sshll.u32 %s651, 4
          %s661 = int_to_ptr.vmem [resolvable:$true] %s660
          %666 = dma.hbm_to_vmem [thread:$0]  %s659, 320, %s661, %s648, 64, 64, 4
        $region80: #{tpu_custom_call.1} parent=75 // pred_fallthru
          _
        // Predicated region
        $region81: #{tpu_custom_call.1} parent=75 // pred_check
          %p667 = pneg %p101
        $region82: #{tpu_custom_call.1} parent=75 // pred_check_branch
          %669 = sbr.rel (%p667) target = $region84
        $region83: #{tpu_custom_call.1} parent=75 // pred_region
          %s670 = sand.u32 %s39, 1
          %s671 = scalar_lea.sflag [#allocation8], %s670
          %s672 = sand.u32 %s91, 1
          %s673 = smul.addr %s672, 16
          %s674 = scalar_lea.vmem [#allocation7], %s673
          %s675 = smul.u32 2, %s47
          %s677 = ssub.s32 256, 256
          %678 = vsyncadd %s671, %s677
          %s679 = smul.addr %s46, 2
          %s680 = sadd.s32 %s675, %s679
          %s681 = smul.addr %s680, 128
          %s682 = scalar_lea.hbm %s1, %s681
          %s683 = sshll.u32 %s674, 4
          %s684 = int_to_ptr.vmem [resolvable:$true] %s683
          %689 = dma.hbm_to_vmem [thread:$0]  %s682, 256, %s684, %s671, 128, 128, 8
        $region84: #{tpu_custom_call.1} parent=75 // pred_fallthru
          _
      $region76: #{tpu_custom_call.1} parent=5 // pred_fallthru
        _
      %p690 = scmp.le.s32.totalorder 1, %s39
      %p691 = scmp.lt.s32.totalorder %s39, 3
      %p692 = pnand %p690, %p691
      %p693 = pneg %p692
      // Predicated region
      $region85: #{tpu_custom_call.1} parent=5 // pred_check
        _
      $region86: #{tpu_custom_call.1} parent=5 // pred_check_branch
        %695 = sbr.rel (%p692) target = $region88
      $region87: #{tpu_custom_call.1} parent=5 // pred_region
        %s696 = ssub.s32 %s39, 1
        %s697 = sand.u32 %s66, 1
        %s698 = scalar_lea.sflag [#allocation5], %s697
        %s699 = sand.u32 %s66, 1
        %s700 = smul.addr %s699, 20
        %s701 = scalar_lea.vmem [#allocation4], %s700
        // Predicated region
        $region89: #{tpu_custom_call.1} parent=87 // pred_check
          %p702 = pneg %p79
        $region90: #{tpu_custom_call.1} parent=87 // pred_check_branch
          %704 = sbr.rel (%p702) target = $region92
        $region91: #{tpu_custom_call.1} parent=87 // pred_region
          %705 = dma.done %s698, 320
        $region92: #{tpu_custom_call.1} parent=87 // pred_fallthru
          _
        %s706 = sand.u32 %s44, 1
        %s707 = scalar_lea.sflag [#allocation8], %s706
        %s708 = sand.u32 %s94, 1
        %s709 = smul.addr %s708, 16
        %s710 = scalar_lea.vmem [#allocation7], %s709
        // Predicated region
        $region93: #{tpu_custom_call.1} parent=87 // pred_check
          %p711 = pneg %p107
        $region94: #{tpu_custom_call.1} parent=87 // pred_check_branch
          %713 = sbr.rel (%p711) target = $region96
        $region95: #{tpu_custom_call.1} parent=87 // pred_region
          %714 = dma.done %s707, 256
        $region96: #{tpu_custom_call.1} parent=87 // pred_fallthru
          _
        // Predicated region
        $region97: #{tpu_custom_call.1} parent=87 // pred_check
          %p715 = pneg %p128
        $region98: #{tpu_custom_call.1} parent=87 // pred_check_branch
          %717 = sbr.rel (%p715) target = $region100
        $region99: #{tpu_custom_call.1} parent=87 // pred_region
          %718 = dma.done [#allocation8], 5120
        $region100: #{tpu_custom_call.1} parent=87 // pred_fallthru
          _
        // Predicated region
        $region101: #{tpu_custom_call.1} parent=87 // pred_check
          %p719 = pneg %p149
        $region102: #{tpu_custom_call.1} parent=87 // pred_check_branch
          %721 = sbr.rel (%p719) target = $region104
        $region103: #{tpu_custom_call.1} parent=87 // pred_region
          %722 = dma.done [#allocation11], 5120
        $region104: #{tpu_custom_call.1} parent=87 // pred_fallthru
          _
        // Predicated region
        $region105: #{tpu_custom_call.1} parent=87 // pred_check
          %p723 = pneg %p170
        $region106: #{tpu_custom_call.1} parent=87 // pred_check_branch
          %725 = sbr.rel (%p723) target = $region108
        $region107: #{tpu_custom_call.1} parent=87 // pred_region
          %726 = dma.done [#allocation11], 5120
        $region108: #{tpu_custom_call.1} parent=87 // pred_fallthru
          _
        // Predicated region
        $region109: #{tpu_custom_call.1} parent=87 // pred_check
          %p727 = pneg %p191
        $region110: #{tpu_custom_call.1} parent=87 // pred_check_branch
          %729 = sbr.rel (%p727) target = $region112
        $region111: #{tpu_custom_call.1} parent=87 // pred_region
          %730 = dma.done [#allocation14], 5120
        $region112: #{tpu_custom_call.1} parent=87 // pred_fallthru
          _
        // Predicated region
        $region113: #{tpu_custom_call.1} parent=87 // pred_check
          %p731 = pneg %p212
        $region114: #{tpu_custom_call.1} parent=87 // pred_check_branch
          %733 = sbr.rel (%p731) target = $region116
        $region115: #{tpu_custom_call.1} parent=87 // pred_region
          %734 = dma.done [#allocation14], 5120
        $region116: #{tpu_custom_call.1} parent=87 // pred_fallthru
          _
        // Predicated region
        $region117: #{tpu_custom_call.1} parent=87 // pred_check
          %p735 = pneg %p233
        $region118: #{tpu_custom_call.1} parent=87 // pred_check_branch
          %737 = sbr.rel (%p735) target = $region120
        $region119: #{tpu_custom_call.1} parent=87 // pred_region
          %738 = dma.done [#allocation17], 16
        $region120: #{tpu_custom_call.1} parent=87 // pred_fallthru
          _
        // Predicated region
        $region121: #{tpu_custom_call.1} parent=87 // pred_check
          %p739 = pneg %p254
        $region122: #{tpu_custom_call.1} parent=87 // pred_check_branch
          %741 = sbr.rel (%p739) target = $region124
        $region123: #{tpu_custom_call.1} parent=87 // pred_region
          %742 = dma.done [#allocation17], 16
        $region124: #{tpu_custom_call.1} parent=87 // pred_fallthru
          _
        // Predicated region
        $region125: #{tpu_custom_call.1} parent=87 // pred_check
          %p743 = pneg %p275
        $region126: #{tpu_custom_call.1} parent=87 // pred_check_branch
          %745 = sbr.rel (%p743) target = $region128
        $region127: #{tpu_custom_call.1} parent=87 // pred_region
          %746 = dma.done [#allocation20], 16
        $region128: #{tpu_custom_call.1} parent=87 // pred_fallthru
          _
        // Predicated region
        $region129: #{tpu_custom_call.1} parent=87 // pred_check
          %p747 = pneg %p296
        $region130: #{tpu_custom_call.1} parent=87 // pred_check_branch
          %749 = sbr.rel (%p747) target = $region132
        $region131: #{tpu_custom_call.1} parent=87 // pred_region
          %750 = dma.done [#allocation20], 16
        $region132: #{tpu_custom_call.1} parent=87 // pred_fallthru
          _
        // Predicated region
        $region133: #{tpu_custom_call.1} parent=87 // pred_check
          %p751 = pneg %p317
        $region134: #{tpu_custom_call.1} parent=87 // pred_check_branch
          %753 = sbr.rel (%p751) target = $region136
        $region135: #{tpu_custom_call.1} parent=87 // pred_region
          %754 = dma.done [#allocation23], 16
        $region136: #{tpu_custom_call.1} parent=87 // pred_fallthru
          _
        // Predicated region
        $region137: #{tpu_custom_call.1} parent=87 // pred_check
          %p755 = pneg %p338
        $region138: #{tpu_custom_call.1} parent=87 // pred_check_branch
          %757 = sbr.rel (%p755) target = $region140
        $region139: #{tpu_custom_call.1} parent=87 // pred_region
          %758 = dma.done [#allocation23], 16
        $region140: #{tpu_custom_call.1} parent=87 // pred_fallthru
          _
        // Predicated region
        $region141: #{tpu_custom_call.1} parent=87 // pred_check
          %p759 = pneg %p359
        $region142: #{tpu_custom_call.1} parent=87 // pred_check_branch
          %761 = sbr.rel (%p759) target = $region144
        $region143: #{tpu_custom_call.1} parent=87 // pred_region
          %762 = dma.done [#allocation26], 16
        $region144: #{tpu_custom_call.1} parent=87 // pred_fallthru
          _
        // Predicated region
        $region145: #{tpu_custom_call.1} parent=87 // pred_check
          %p763 = pneg %p380
        $region146: #{tpu_custom_call.1} parent=87 // pred_check_branch
          %765 = sbr.rel (%p763) target = $region148
        $region147: #{tpu_custom_call.1} parent=87 // pred_region
          %766 = dma.done [#allocation26], 16
        $region148: #{tpu_custom_call.1} parent=87 // pred_fallthru
          _
        // Predicated region
        $region149: #{tpu_custom_call.1} parent=87 // pred_check
          %p767 = pneg %p401
        $region150: #{tpu_custom_call.1} parent=87 // pred_check_branch
          %769 = sbr.rel (%p767) target = $region152
        $region151: #{tpu_custom_call.1} parent=87 // pred_region
          %770 = dma.done [#allocation29], 16
        $region152: #{tpu_custom_call.1} parent=87 // pred_fallthru
          _
        // Predicated region
        $region153: #{tpu_custom_call.1} parent=87 // pred_check
          %p771 = pneg %p422
        $region154: #{tpu_custom_call.1} parent=87 // pred_check_branch
          %773 = sbr.rel (%p771) target = $region156
        $region155: #{tpu_custom_call.1} parent=87 // pred_region
          %774 = dma.done [#allocation29], 16
        $region156: #{tpu_custom_call.1} parent=87 // pred_fallthru
          _
        %s775 = sand.u32 %s66, 1
        %s776 = scalar_lea.sflag [#allocation5], %s775
        %s777 = sand.u32 %s66, 1
        %s778 = smul.addr %s777, 20
        %s779 = scalar_lea.vmem [#allocation4], %s778
        %p780 = pneg %p79
        %p781 = pneg %p76
        %s782 = sand.u32 %s44, 1
        %s783 = scalar_lea.sflag [#allocation8], %s782
        %s784 = sand.u32 %s94, 1
        %s785 = smul.addr %s784, 16
        %s786 = scalar_lea.vmem [#allocation7], %s785
        %p787 = pneg %p107
        %p788 = pneg %p104
        %p789 = pneg %p128
        %p790 = pneg %p125
        %p791 = pneg %p149
        %p792 = pneg %p146
        %p793 = pneg %p170
        %p794 = pneg %p167
        %p795 = pneg %p191
        %p796 = pneg %p188
        %p797 = pneg %p212
        %p798 = pneg %p209
        %p799 = pneg %p233
        %p800 = pneg %p230
        %p801 = pneg %p254
        %p802 = pneg %p251
        %p803 = pneg %p275
        %p804 = pneg %p272
        %p805 = pneg %p296
        %p806 = pneg %p293
        %p807 = pneg %p317
        %p808 = pneg %p314
        %p809 = pneg %p338
        %p810 = pneg %p335
        %p811 = pneg %p359
        %p812 = pneg %p356
        %p813 = pneg %p380
        %p814 = pneg %p377
        %p815 = pneg %p401
        %p816 = pneg %p398
        %p817 = pneg %p422
        %p818 = pneg %p419
        %p819 = pneg %p450
        %p820 = pneg %p447
        %s821 = sand.u32 %s437, 1
        %s822 = scalar_lea.sflag [#allocation6], %s821
        %s823 = sand.u32 %s437, 1
        %s824 = smul.addr %s823, 16
        %s825 = scalar_lea.vmem [#allocation31], %s824
        %s826 = smul.u32 2, %s49
        %s827 = smul.u32 2, %s49
        %s829 = smul.u32 %s49, 16
        %v830 = vld [vmem:[%s701] sm:$0xf]
        %v831 = vld [vmem:[%s701 + $0x4] sm:$0xf]
        %v832 = vld [vmem:[%s701 + $0x8] sm:$0xf]
        %v833 = vld [vmem:[%s701 + $0xc] sm:$0xf]
        %v834 = vld [vmem:[#allocation9] sm:$0xf]
        %v835 = vld [vmem:[#allocation9 + $0x4] sm:$0xf]
        %v836 = vld [vmem:[#allocation9 + $0x8] sm:$0xf]
        %v837 = vld [vmem:[#allocation9 + $0xc] sm:$0xf]
        %v838 = vld [vmem:[#allocation9 + $0x10] sm:$0xf]
        %v839 = vld [vmem:[#allocation9 + $0x14] sm:$0xf]
        %v840 = vld [vmem:[#allocation9 + $0x18] sm:$0xf]
        %v841 = vld [vmem:[#allocation9 + $0x1c] sm:$0xf]
        %v842 = vld [vmem:[#allocation9 + $0x20] sm:$0xf]
        %v843 = vld [vmem:[#allocation9 + $0x24] sm:$0xf]
        %v844 = vld [vmem:[#allocation9 + $0x28] sm:$0xf]
        %v845 = vld [vmem:[#allocation9 + $0x2c] sm:$0xf]
        %v846 = vld [vmem:[#allocation9 + $0x30] sm:$0xf]
        %v847 = vld [vmem:[#allocation9 + $0x34] sm:$0xf]
        %v848 = vld [vmem:[#allocation9 + $0x38] sm:$0xf]
        %v849 = vld [vmem:[#allocation9 + $0x3c] sm:$0xf]
        %v850 = vld [vmem:[%s701 + $0x10] sm:$0x1]
        %s851 = scalar_lea.vmem [#allocation9], 64
        %v852 = vld [vmem:[%s851] sm:$0xf]
        %v853 = vld [vmem:[%s851 + $0x4] sm:$0xf]
        %v854 = vld [vmem:[%s851 + $0x8] sm:$0xf]
        %v855 = vld [vmem:[%s851 + $0xc] sm:$0xf]
        %v856 = vld [vmem:[%s851 + $0x10] sm:$0xf]
        %v857 = vld [vmem:[%s851 + $0x14] sm:$0xf]
        %v858 = vld [vmem:[%s851 + $0x18] sm:$0xf]
        %v859 = vld [vmem:[%s851 + $0x1c] sm:$0xf]
        %v860 = vld [vmem:[%s851 + $0x20] sm:$0xf]
        %v861 = vld [vmem:[%s851 + $0x24] sm:$0xf]
        %v862 = vld [vmem:[%s851 + $0x28] sm:$0xf]
        %v863 = vld [vmem:[%s851 + $0x2c] sm:$0xf]
        %v864 = vld [vmem:[%s851 + $0x30] sm:$0xf]
        %v865 = vld [vmem:[%s851 + $0x34] sm:$0xf]
        %v866 = vld [vmem:[%s851 + $0x38] sm:$0xf]
        %v867 = vld [vmem:[%s851 + $0x3c] sm:$0xf]
        %v873 = vunpack.c.l.b16 %v830
        %v874 = vunpack.c.l.b16 %v831
        %v875 = vunpack.c.l.b16 %v832
        %v876 = vunpack.c.l.b16 %v833
        %v877 = vunpack.c.l.b16 %v850
        %v878 = vpack.c.b16 %v874, %v873
        %v879 = vpack.c.b16 %v876, %v875
        %v880 = vpack.c.b16 %v877, %v877
        %vm881 = vsmask.f32 7424
        %v883 = vshrl.u32 %v878, 16
        %v885 = vshll.u32 %v878, 16
        %v887 = vrot.slane %v885, 1
        %v888 = vor.u32 %v883, %v887
        %v890 = vshll.u32 %v879, 16
        %v892 = vrot.slane %v890, 1
        %v893 = vsel %vm881, %v888, %v892
        %v894 = vshrl.u32 %v879, 16
        %v896 = vor.u32 %v894, %v892
        %v898 = vshll.u32 %v880, 16
        %v900 = vrot.slane %v898, 1
        %v901 = vsel %vm881, %v896, %v900
        %v920 = vunpack.c.l.b16 %v852
        %v921 = vunpack.c.l.b16 %v853
        %v922 = vunpack.c.l.b16 %v854
        %v923 = vunpack.c.l.b16 %v855
        %v924 = vunpack.c.l.b16 %v856
        %v925 = vunpack.c.l.b16 %v857
        %v926 = vunpack.c.l.b16 %v858
        %v927 = vunpack.c.l.b16 %v859
        %v928 = vunpack.c.l.b16 %v860
        %v929 = vunpack.c.l.b16 %v861
        %v930 = vunpack.c.l.b16 %v862
        %v931 = vunpack.c.l.b16 %v863
        %v932 = vunpack.c.l.b16 %v864
        %v933 = vunpack.c.l.b16 %v865
        %v934 = vunpack.c.l.b16 %v866
        %v935 = vunpack.c.l.b16 %v867
        %v936 = vpack.c.b16 %v921, %v920
        %v937 = vpack.c.b16 %v923, %v922
        %v938 = vpack.c.b16 %v925, %v924
        %v939 = vpack.c.b16 %v927, %v926
        %v940 = vpack.c.b16 %v929, %v928
        %v941 = vpack.c.b16 %v931, %v930
        %v942 = vpack.c.b16 %v933, %v932
        %v943 = vpack.c.b16 %v935, %v934
        %952 = vmatprep.subr.bf16.mxu0 0
        %953 = vmatpush1.bf16.msra.mxu0 %v936
        %954 = vmatprep.subr.bf16.mxu0 0
        %955 = vmatpush1.bf16.msra.mxu0 %v937
        %956 = vmatprep.subr.bf16.mxu0 0
        %957 = vmatpush1.bf16.msra.mxu0 %v938
        %958 = vmatprep.subr.bf16.mxu0 0
        %959 = vmatpush1.bf16.msra.mxu0 %v939
        %960 = vmatprep.subr.bf16.mxu0 0
        %961 = vmatpush1.bf16.msra.mxu0 %v940
        %962 = vmatprep.subr.bf16.mxu0 0
        %963 = vmatpush1.bf16.msra.mxu0 %v941
        %964 = vmatprep.subr.bf16.mxu0 0
        %965 = vmatpush1.bf16.msra.mxu0 %v942
        %966 = vmatprep.subr.bf16.mxu0 0
        %967 = vmatpush1.bf16.msra.mxu0 %v943
        %968 = vmatprep.subr.bf16.mxu0 0
        %969 = vmatpush1.bf16.msra.mxu0 0
        %970 = vmatprep.subr.bf16.mxu0 0
        %971 = vmatpush1.bf16.msra.mxu0 0
        %972 = vmatprep.subr.bf16.mxu0 0
        %973 = vmatpush1.bf16.msra.mxu0 0
        %974 = vmatprep.subr.bf16.mxu0 0
        %975 = vmatpush1.bf16.msra.mxu0 0
        %976 = vmatprep.subr.bf16.mxu0 0
        %977 = vmatpush1.bf16.msra.mxu0 0
        %978 = vmatprep.subr.bf16.mxu0 0
        %979 = vmatpush1.bf16.msra.mxu0 0
        %980 = vmatprep.subr.bf16.mxu0 0
        %981 = vmatpush1.bf16.msra.mxu0 0
        %982 = vmatprep.subr.bf16.mxu0 0
        %983 = vmatpush1.bf16.msra.mxu0 0
        %984 = vmatprep.mubr.bf16.mxu0 0
        %985 = vmatmul.mubr.bf16.gmra.mrb[0].mxu0 %v893
        %v986 = vpop.f32.mrb[0].mxu0
        %v987 = vadd.f32 0.0, %v986
        %v988 = vpop.f32.mrb[0].mxu0
        %v989 = vpop.f32.mrb[0].mxu0
        %v990 = vadd.f32 0.0, %v989
        %v991 = vpop.f32.mrb[0].mxu0
        %992 = vmatprep.mubr.bf16.mxu0 0
        %993 = vmatmul.mubr.bf16.gmra.mrb[0].mxu0 %v901
        %v994 = vpop.f32.mrb[0].mxu0
        %v995 = vadd.f32 0.0, %v994
        %v996 = vpop.f32.mrb[0].mxu0
        %v997 = vpop.f32.mrb[0].mxu0
        %v998 = vadd.f32 0.0, %v997
        %v999 = vpop.f32.mrb[0].mxu0
        %1000 = vdwg.mxu0
        %v1019 = vunpack.c.l.b16 %v834
        %v1020 = vunpack.c.l.b16 %v835
        %v1021 = vunpack.c.l.b16 %v836
        %v1022 = vunpack.c.l.b16 %v837
        %v1023 = vunpack.c.l.b16 %v838
        %v1024 = vunpack.c.l.b16 %v839
        %v1025 = vunpack.c.l.b16 %v840
        %v1026 = vunpack.c.l.b16 %v841
        %v1027 = vunpack.c.l.b16 %v842
        %v1028 = vunpack.c.l.b16 %v843
        %v1029 = vunpack.c.l.b16 %v844
        %v1030 = vunpack.c.l.b16 %v845
        %v1031 = vunpack.c.l.b16 %v846
        %v1032 = vunpack.c.l.b16 %v847
        %v1033 = vunpack.c.l.b16 %v848
        %v1034 = vunpack.c.l.b16 %v849
        %v1035 = vpack.c.b16 %v1020, %v1019
        %v1036 = vpack.c.b16 %v1022, %v1021
        %v1037 = vpack.c.b16 %v1024, %v1023
        %v1038 = vpack.c.b16 %v1026, %v1025
        %v1039 = vpack.c.b16 %v1028, %v1027
        %v1040 = vpack.c.b16 %v1030, %v1029
        %v1041 = vpack.c.b16 %v1032, %v1031
        %v1042 = vpack.c.b16 %v1034, %v1033
        %1051 = vmatprep.subr.bf16.mxu0 0
        %1052 = vmatpush1.bf16.msra.mxu0 %v1035
        %1053 = vmatprep.subr.bf16.mxu0 0
        %1054 = vmatpush1.bf16.msra.mxu0 %v1036
        %1055 = vmatprep.subr.bf16.mxu0 0
        %1056 = vmatpush1.bf16.msra.mxu0 %v1037
        %1057 = vmatprep.subr.bf16.mxu0 0
        %1058 = vmatpush1.bf16.msra.mxu0 %v1038
        %1059 = vmatprep.subr.bf16.mxu0 0
        %1060 = vmatpush1.bf16.msra.mxu0 %v1039
        %1061 = vmatprep.subr.bf16.mxu0 0
        %1062 = vmatpush1.bf16.msra.mxu0 %v1040
        %1063 = vmatprep.subr.bf16.mxu0 0
        %1064 = vmatpush1.bf16.msra.mxu0 %v1041
        %1065 = vmatprep.subr.bf16.mxu0 0
        %1066 = vmatpush1.bf16.msra.mxu0 %v1042
        %1067 = vmatprep.subr.bf16.mxu0 0
        %1068 = vmatpush1.bf16.msra.mxu0 0
        %1069 = vmatprep.subr.bf16.mxu0 0
        %1070 = vmatpush1.bf16.msra.mxu0 0
        %1071 = vmatprep.subr.bf16.mxu0 0
        %1072 = vmatpush1.bf16.msra.mxu0 0
        %1073 = vmatprep.subr.bf16.mxu0 0
        %1074 = vmatpush1.bf16.msra.mxu0 0
        %1075 = vmatprep.subr.bf16.mxu0 0
        %1076 = vmatpush1.bf16.msra.mxu0 0
        %1077 = vmatprep.subr.bf16.mxu0 0
        %1078 = vmatpush1.bf16.msra.mxu0 0
        %1079 = vmatprep.subr.bf16.mxu0 0
        %1080 = vmatpush1.bf16.msra.mxu0 0
        %1081 = vmatprep.subr.bf16.mxu0 0
        %1082 = vmatpush1.bf16.msra.mxu0 0
        %1083 = vmatprep.mubr.bf16.mxu0 0
        %1084 = vmatmul.mubr.bf16.gmra.mrb[0].mxu0 %v878
        %v1085 = vpop.f32.mrb[0].mxu0
        %v1086 = vadd.f32 %v987, %v1085
        %v1087 = vpop.f32.mrb[0].mxu0
        %v1088 = vpop.f32.mrb[0].mxu0
        %v1089 = vadd.f32 %v990, %v1088
        %v1090 = vpop.f32.mrb[0].mxu0
        %1091 = vmatprep.mubr.bf16.mxu0 0
        %1092 = vmatmul.mubr.bf16.gmra.mrb[0].mxu0 %v879
        %v1093 = vpop.f32.mrb[0].mxu0
        %v1094 = vadd.f32 %v995, %v1093
        %v1095 = vpop.f32.mrb[0].mxu0
        %v1096 = vpop.f32.mrb[0].mxu0
        %v1097 = vadd.f32 %v998, %v1096
        %v1098 = vpop.f32.mrb[0].mxu0
        %1099 = vdwg.mxu0
        %v1100 = vld [vmem:[%s701] sm:$0xe]
        %s1101 = scalar_lea.vmem [#allocation9], 128
        %v1102 = vld [vmem:[%s1101] sm:$0xf]
        %v1103 = vld [vmem:[%s1101 + $0x4] sm:$0xf]
        %v1104 = vld [vmem:[%s1101 + $0x8] sm:$0xf]
        %v1105 = vld [vmem:[%s1101 + $0xc] sm:$0xf]
        %v1106 = vld [vmem:[%s1101 + $0x10] sm:$0xf]
        %v1107 = vld [vmem:[%s1101 + $0x14] sm:$0xf]
        %v1108 = vld [vmem:[%s1101 + $0x18] sm:$0xf]
        %v1109 = vld [vmem:[%s1101 + $0x1c] sm:$0xf]
        %v1110 = vld [vmem:[%s1101 + $0x20] sm:$0xf]
        %v1111 = vld [vmem:[%s1101 + $0x24] sm:$0xf]
        %v1112 = vld [vmem:[%s1101 + $0x28] sm:$0xf]
        %v1113 = vld [vmem:[%s1101 + $0x2c] sm:$0xf]
        %v1114 = vld [vmem:[%s1101 + $0x30] sm:$0xf]
        %v1115 = vld [vmem:[%s1101 + $0x34] sm:$0xf]
        %v1116 = vld [vmem:[%s1101 + $0x38] sm:$0xf]
        %v1117 = vld [vmem:[%s1101 + $0x3c] sm:$0xf]
        %v1119 = vunpack.c.l.b16 %v1100
        %v1120 = vpack.c.b16 %v874, %v1119
        %vm1121 = vcmask 1046528
        %v1122 = vrot.slane %v1120, 1
        %v1123 = vrot.slane %v879, 1
        %v1124 = vsel %vm1121, %v1122, %v1123
        %v1125 = vrot.slane %v880, 1
        %v1126 = vsel %vm1121, %v1123, %v1125
        %v1145 = vunpack.c.l.b16 %v1102
        %v1146 = vunpack.c.l.b16 %v1103
        %v1147 = vunpack.c.l.b16 %v1104
        %v1148 = vunpack.c.l.b16 %v1105
        %v1149 = vunpack.c.l.b16 %v1106
        %v1150 = vunpack.c.l.b16 %v1107
        %v1151 = vunpack.c.l.b16 %v1108
        %v1152 = vunpack.c.l.b16 %v1109
        %v1153 = vunpack.c.l.b16 %v1110
        %v1154 = vunpack.c.l.b16 %v1111
        %v1155 = vunpack.c.l.b16 %v1112
        %v1156 = vunpack.c.l.b16 %v1113
        %v1157 = vunpack.c.l.b16 %v1114
        %v1158 = vunpack.c.l.b16 %v1115
        %v1159 = vunpack.c.l.b16 %v1116
        %v1160 = vunpack.c.l.b16 %v1117
        %v1161 = vpack.c.b16 %v1146, %v1145
        %v1162 = vpack.c.b16 %v1148, %v1147
        %v1163 = vpack.c.b16 %v1150, %v1149
        %v1164 = vpack.c.b16 %v1152, %v1151
        %v1165 = vpack.c.b16 %v1154, %v1153
        %v1166 = vpack.c.b16 %v1156, %v1155
        %v1167 = vpack.c.b16 %v1158, %v1157
        %v1168 = vpack.c.b16 %v1160, %v1159
        %1177 = vmatprep.subr.bf16.mxu0 0
        %1178 = vmatpush1.bf16.msra.mxu0 %v1161
        %1179 = vmatprep.subr.bf16.mxu0 0
        %1180 = vmatpush1.bf16.msra.mxu0 %v1162
        %1181 = vmatprep.subr.bf16.mxu0 0
        %1182 = vmatpush1.bf16.msra.mxu0 %v1163
        %1183 = vmatprep.subr.bf16.mxu0 0
        %1184 = vmatpush1.bf16.msra.mxu0 %v1164
        %1185 = vmatprep.subr.bf16.mxu0 0
        %1186 = vmatpush1.bf16.msra.mxu0 %v1165
        %1187 = vmatprep.subr.bf16.mxu0 0
        %1188 = vmatpush1.bf16.msra.mxu0 %v1166
        %1189 = vmatprep.subr.bf16.mxu0 0
        %1190 = vmatpush1.bf16.msra.mxu0 %v1167
        %1191 = vmatprep.subr.bf16.mxu0 0
        %1192 = vmatpush1.bf16.msra.mxu0 %v1168
        %1193 = vmatprep.subr.bf16.mxu0 0
        %1194 = vmatpush1.bf16.msra.mxu0 0
        %1195 = vmatprep.subr.bf16.mxu0 0
        %1196 = vmatpush1.bf16.msra.mxu0 0
        %1197 = vmatprep.subr.bf16.mxu0 0
        %1198 = vmatpush1.bf16.msra.mxu0 0
        %1199 = vmatprep.subr.bf16.mxu0 0
        %1200 = vmatpush1.bf16.msra.mxu0 0
        %1201 = vmatprep.subr.bf16.mxu0 0
        %1202 = vmatpush1.bf16.msra.mxu0 0
        %1203 = vmatprep.subr.bf16.mxu0 0
        %1204 = vmatpush1.bf16.msra.mxu0 0
        %1205 = vmatprep.subr.bf16.mxu0 0
        %1206 = vmatpush1.bf16.msra.mxu0 0
        %1207 = vmatprep.subr.bf16.mxu0 0
        %1208 = vmatpush1.bf16.msra.mxu0 0
        %1209 = vmatprep.mubr.bf16.mxu0 0
        %1210 = vmatmul.mubr.bf16.gmra.mrb[0].mxu0 %v1124
        %v1211 = vpop.f32.mrb[0].mxu0
        %v1212 = vadd.f32 0.0, %v1211
        %v1213 = vpop.f32.mrb[0].mxu0
        %v1214 = vpop.f32.mrb[0].mxu0
        %v1215 = vadd.f32 0.0, %v1214
        %v1216 = vpop.f32.mrb[0].mxu0
        %1217 = vmatprep.mubr.bf16.mxu0 0
        %1218 = vmatmul.mubr.bf16.gmra.mrb[0].mxu0 %v1126
        %v1219 = vpop.f32.mrb[0].mxu0
        %v1220 = vadd.f32 0.0, %v1219
        %v1221 = vpop.f32.mrb[0].mxu0
        %v1222 = vpop.f32.mrb[0].mxu0
        %v1223 = vadd.f32 0.0, %v1222
        %v1224 = vpop.f32.mrb[0].mxu0
        %1225 = vdwg.mxu0
        %v1226 = vadd.f32 %v1086, %v1212
        %v1227 = vadd.f32 %v1089, %v1215
        %v1228 = vadd.f32 %v1094, %v1220
        %v1229 = vadd.f32 %v1097, %v1223
        %v1230 = vld [vmem:[%s701 + $0x10] sm:$0x3]
        %s1231 = scalar_lea.vmem [#allocation9], 192
        %v1232 = vld [vmem:[%s1231] sm:$0xf]
        %v1233 = vld [vmem:[%s1231 + $0x4] sm:$0xf]
        %v1234 = vld [vmem:[%s1231 + $0x8] sm:$0xf]
        %v1235 = vld [vmem:[%s1231 + $0xc] sm:$0xf]
        %v1236 = vld [vmem:[%s1231 + $0x10] sm:$0xf]
        %v1237 = vld [vmem:[%s1231 + $0x14] sm:$0xf]
        %v1238 = vld [vmem:[%s1231 + $0x18] sm:$0xf]
        %v1239 = vld [vmem:[%s1231 + $0x1c] sm:$0xf]
        %v1240 = vld [vmem:[%s1231 + $0x20] sm:$0xf]
        %v1241 = vld [vmem:[%s1231 + $0x24] sm:$0xf]
        %v1242 = vld [vmem:[%s1231 + $0x28] sm:$0xf]
        %v1243 = vld [vmem:[%s1231 + $0x2c] sm:$0xf]
        %v1244 = vld [vmem:[%s1231 + $0x30] sm:$0xf]
        %v1245 = vld [vmem:[%s1231 + $0x34] sm:$0xf]
        %v1246 = vld [vmem:[%s1231 + $0x38] sm:$0xf]
        %v1247 = vld [vmem:[%s1231 + $0x3c] sm:$0xf]
        %v1249 = vunpack.c.l.b16 %v1230
        %v1250 = vpack.c.b16 %v1249, %v1249
        %vm1251 = vsmask.f32 6400
        %v1253 = vshrl.u32 %v1120, 16
        %v1255 = vrot.slane %v1253, 1
        %v1256 = vshll.u32 %v1120, 16
        %v1258 = vrot.slane %v1256, 2
        %v1259 = vor.u32 %v1255, %v1258
        %v1260 = vrot.slane %v894, 1
        %v1261 = vrot.slane %v890, 2
        %v1262 = vor.u32 %v1260, %v1261
        %v1263 = vsel %vm1251, %v1259, %v1262
        %v1265 = vshrl.u32 %v1250, 16
        %v1267 = vrot.slane %v1265, 1
        %v1268 = vshll.u32 %v1250, 16
        %v1270 = vrot.slane %v1268, 2
        %v1271 = vor.u32 %v1267, %v1270
        %v1272 = vsel %vm1251, %v1262, %v1271
        %v1291 = vunpack.c.l.b16 %v1232
        %v1292 = vunpack.c.l.b16 %v1233
        %v1293 = vunpack.c.l.b16 %v1234
        %v1294 = vunpack.c.l.b16 %v1235
        %v1295 = vunpack.c.l.b16 %v1236
        %v1296 = vunpack.c.l.b16 %v1237
        %v1297 = vunpack.c.l.b16 %v1238
        %v1298 = vunpack.c.l.b16 %v1239
        %v1299 = vunpack.c.l.b16 %v1240
        %v1300 = vunpack.c.l.b16 %v1241
        %v1301 = vunpack.c.l.b16 %v1242
        %v1302 = vunpack.c.l.b16 %v1243
        %v1303 = vunpack.c.l.b16 %v1244
        %v1304 = vunpack.c.l.b16 %v1245
        %v1305 = vunpack.c.l.b16 %v1246
        %v1306 = vunpack.c.l.b16 %v1247
        %v1307 = vpack.c.b16 %v1292, %v1291
        %v1308 = vpack.c.b16 %v1294, %v1293
        %v1309 = vpack.c.b16 %v1296, %v1295
        %v1310 = vpack.c.b16 %v1298, %v1297
        %v1311 = vpack.c.b16 %v1300, %v1299
        %v1312 = vpack.c.b16 %v1302, %v1301
        %v1313 = vpack.c.b16 %v1304, %v1303
        %v1314 = vpack.c.b16 %v1306, %v1305
        %1323 = vmatprep.subr.bf16.mxu0 0
        %1324 = vmatpush1.bf16.msra.mxu0 %v1307
        %1325 = vmatprep.subr.bf16.mxu0 0
        %1326 = vmatpush1.bf16.msra.mxu0 %v1308
        %1327 = vmatprep.subr.bf16.mxu0 0
        %1328 = vmatpush1.bf16.msra.mxu0 %v1309
        %1329 = vmatprep.subr.bf16.mxu0 0
        %1330 = vmatpush1.bf16.msra.mxu0 %v1310
        %1331 = vmatprep.subr.bf16.mxu0 0
        %1332 = vmatpush1.bf16.msra.mxu0 %v1311
        %1333 = vmatprep.subr.bf16.mxu0 0
        %1334 = vmatpush1.bf16.msra.mxu0 %v1312
        %1335 = vmatprep.subr.bf16.mxu0 0
        %1336 = vmatpush1.bf16.msra.mxu0 %v1313
        %1337 = vmatprep.subr.bf16.mxu0 0
        %1338 = vmatpush1.bf16.msra.mxu0 %v1314
        %1339 = vmatprep.subr.bf16.mxu0 0
        %1340 = vmatpush1.bf16.msra.mxu0 0
        %1341 = vmatprep.subr.bf16.mxu0 0
        %1342 = vmatpush1.bf16.msra.mxu0 0
        %1343 = vmatprep.subr.bf16.mxu0 0
        %1344 = vmatpush1.bf16.msra.mxu0 0
        %1345 = vmatprep.subr.bf16.mxu0 0
        %1346 = vmatpush1.bf16.msra.mxu0 0
        %1347 = vmatprep.subr.bf16.mxu0 0
        %1348 = vmatpush1.bf16.msra.mxu0 0
        %1349 = vmatprep.subr.bf16.mxu0 0
        %1350 = vmatpush1.bf16.msra.mxu0 0
        %1351 = vmatprep.subr.bf16.mxu0 0
        %1352 = vmatpush1.bf16.msra.mxu0 0
        %1353 = vmatprep.subr.bf16.mxu0 0
        %1354 = vmatpush1.bf16.msra.mxu0 0
        %1355 = vmatprep.mubr.bf16.mxu0 0
        %1356 = vmatmul.mubr.bf16.gmra.mrb[0].mxu0 %v1263
        %v1357 = vpop.f32.mrb[0].mxu0
        %v1358 = vadd.f32 0.0, %v1357
        %v1359 = vpop.f32.mrb[0].mxu0
        %v1360 = vpop.f32.mrb[0].mxu0
        %v1361 = vadd.f32 0.0, %v1360
        %v1362 = vpop.f32.mrb[0].mxu0
        %1363 = vmatprep.mubr.bf16.mxu0 0
        %1364 = vmatmul.mubr.bf16.gmra.mrb[0].mxu0 %v1272
        %v1365 = vpop.f32.mrb[0].mxu0
        %v1366 = vadd.f32 0.0, %v1365
        %v1367 = vpop.f32.mrb[0].mxu0
        %v1368 = vpop.f32.mrb[0].mxu0
        %v1369 = vadd.f32 0.0, %v1368
        %v1370 = vpop.f32.mrb[0].mxu0
        %1371 = vdwg.mxu0
        %v1372 = vadd.f32 %v1226, %v1358
        %v1373 = vadd.f32 %v1227, %v1361
        %v1374 = vadd.f32 %v1228, %v1366
        %v1375 = vadd.f32 %v1229, %v1369
        %v1376 = vld [vmem:[%s701] sm:$0xc]
        %s1377 = scalar_lea.vmem [#allocation9], 256
        %v1378 = vld [vmem:[%s1377] sm:$0xf]
        %v1379 = vld [vmem:[%s1377 + $0x4] sm:$0xf]
        %v1380 = vld [vmem:[%s1377 + $0x8] sm:$0xf]
        %v1381 = vld [vmem:[%s1377 + $0xc] sm:$0xf]
        %v1382 = vld [vmem:[%s1377 + $0x10] sm:$0xf]
        %v1383 = vld [vmem:[%s1377 + $0x14] sm:$0xf]
        %v1384 = vld [vmem:[%s1377 + $0x18] sm:$0xf]
        %v1385 = vld [vmem:[%s1377 + $0x1c] sm:$0xf]
        %v1386 = vld [vmem:[%s1377 + $0x20] sm:$0xf]
        %v1387 = vld [vmem:[%s1377 + $0x24] sm:$0xf]
        %v1388 = vld [vmem:[%s1377 + $0x28] sm:$0xf]
        %v1389 = vld [vmem:[%s1377 + $0x2c] sm:$0xf]
        %v1390 = vld [vmem:[%s1377 + $0x30] sm:$0xf]
        %v1391 = vld [vmem:[%s1377 + $0x34] sm:$0xf]
        %v1392 = vld [vmem:[%s1377 + $0x38] sm:$0xf]
        %v1393 = vld [vmem:[%s1377 + $0x3c] sm:$0xf]
        %v1395 = vunpack.c.l.b16 %v1376
        %v1396 = vpack.c.b16 %v874, %v1395
        %vm1397 = vcmask 1045504
        %v1398 = vrot.slane %v1396, 2
        %v1399 = vrot.slane %v879, 2
        %v1400 = vsel %vm1397, %v1398, %v1399
        %v1401 = vrot.slane %v1250, 2
        %v1402 = vsel %vm1397, %v1399, %v1401
        %v1421 = vunpack.c.l.b16 %v1378
        %v1422 = vunpack.c.l.b16 %v1379
        %v1423 = vunpack.c.l.b16 %v1380
        %v1424 = vunpack.c.l.b16 %v1381
        %v1425 = vunpack.c.l.b16 %v1382
        %v1426 = vunpack.c.l.b16 %v1383
        %v1427 = vunpack.c.l.b16 %v1384
        %v1428 = vunpack.c.l.b16 %v1385
        %v1429 = vunpack.c.l.b16 %v1386
        %v1430 = vunpack.c.l.b16 %v1387
        %v1431 = vunpack.c.l.b16 %v1388
        %v1432 = vunpack.c.l.b16 %v1389
        %v1433 = vunpack.c.l.b16 %v1390
        %v1434 = vunpack.c.l.b16 %v1391
        %v1435 = vunpack.c.l.b16 %v1392
        %v1436 = vunpack.c.l.b16 %v1393
        %v1437 = vpack.c.b16 %v1422, %v1421
        %v1438 = vpack.c.b16 %v1424, %v1423
        %v1439 = vpack.c.b16 %v1426, %v1425
        %v1440 = vpack.c.b16 %v1428, %v1427
        %v1441 = vpack.c.b16 %v1430, %v1429
        %v1442 = vpack.c.b16 %v1432, %v1431
        %v1443 = vpack.c.b16 %v1434, %v1433
        %v1444 = vpack.c.b16 %v1436, %v1435
        %1453 = vmatprep.subr.bf16.mxu0 0
        %1454 = vmatpush1.bf16.msra.mxu0 %v1437
        %1455 = vmatprep.subr.bf16.mxu0 0
        %1456 = vmatpush1.bf16.msra.mxu0 %v1438
        %1457 = vmatprep.subr.bf16.mxu0 0
        %1458 = vmatpush1.bf16.msra.mxu0 %v1439
        %1459 = vmatprep.subr.bf16.mxu0 0
        %1460 = vmatpush1.bf16.msra.mxu0 %v1440
        %1461 = vmatprep.subr.bf16.mxu0 0
        %1462 = vmatpush1.bf16.msra.mxu0 %v1441
        %1463 = vmatprep.subr.bf16.mxu0 0
        %1464 = vmatpush1.bf16.msra.mxu0 %v1442
        %1465 = vmatprep.subr.bf16.mxu0 0
        %1466 = vmatpush1.bf16.msra.mxu0 %v1443
        %1467 = vmatprep.subr.bf16.mxu0 0
        %1468 = vmatpush1.bf16.msra.mxu0 %v1444
        %1469 = vmatprep.subr.bf16.mxu0 0
        %1470 = vmatpush1.bf16.msra.mxu0 0
        %1471 = vmatprep.subr.bf16.mxu0 0
        %1472 = vmatpush1.bf16.msra.mxu0 0
        %1473 = vmatprep.subr.bf16.mxu0 0
        %1474 = vmatpush1.bf16.msra.mxu0 0
        %1475 = vmatprep.subr.bf16.mxu0 0
        %1476 = vmatpush1.bf16.msra.mxu0 0
        %1477 = vmatprep.subr.bf16.mxu0 0
        %1478 = vmatpush1.bf16.msra.mxu0 0
        %1479 = vmatprep.subr.bf16.mxu0 0
        %1480 = vmatpush1.bf16.msra.mxu0 0
        %1481 = vmatprep.subr.bf16.mxu0 0
        %1482 = vmatpush1.bf16.msra.mxu0 0
        %1483 = vmatprep.subr.bf16.mxu0 0
        %1484 = vmatpush1.bf16.msra.mxu0 0
        %1485 = vmatprep.mubr.bf16.mxu0 0
        %1486 = vmatmul.mubr.bf16.gmra.mrb[0].mxu0 %v1400
        %v1487 = vpop.f32.mrb[0].mxu0
        %v1488 = vadd.f32 0.0, %v1487
        %v1489 = vpop.f32.mrb[0].mxu0
        %v1490 = vpop.f32.mrb[0].mxu0
        %v1491 = vadd.f32 0.0, %v1490
        %v1492 = vpop.f32.mrb[0].mxu0
        %1493 = vmatprep.mubr.bf16.mxu0 0
        %1494 = vmatmul.mubr.bf16.gmra.mrb[0].mxu0 %v1402
        %v1495 = vpop.f32.mrb[0].mxu0
        %v1496 = vadd.f32 0.0, %v1495
        %v1497 = vpop.f32.mrb[0].mxu0
        %v1498 = vpop.f32.mrb[0].mxu0
        %v1499 = vadd.f32 0.0, %v1498
        %v1500 = vpop.f32.mrb[0].mxu0
        %1501 = vdwg.mxu0
        %v1502 = vadd.f32 %v1372, %v1488
        %v1503 = vadd.f32 %v1373, %v1491
        %v1504 = vadd.f32 %v1374, %v1496
        %v1505 = vadd.f32 %v1375, %v1499
        %v1506 = vld [vmem:[#allocation16] sm:$0x1]
        %v1508 = vlaneseq
        %v1509 = vshrl.u32 %v1508, 7
        %v1510 = vsub.s32 0, %v1509
        %v1511 = vrot.slane %v1506, %v1510
        %v1513 = vmul.f32 %v1502, %v1511
        %v1514 = vmul.f32 %v1503, %v1511
        %v1515 = vmul.f32 %v1504, %v1511
        %v1516 = vmul.f32 %v1505, %v1511
        %v1517 = vld [vmem:[#allocation24] sm:$0x1]
        %v1519 = vlaneseq
        %v1520 = vshrl.u32 %v1519, 7
        %v1521 = vsub.s32 0, %v1520
        %v1522 = vrot.slane %v1517, %v1521
        %v1524 = vadd.f32 %v1513, %v1522
        %v1525 = vadd.f32 %v1514, %v1522
        %v1526 = vadd.f32 %v1515, %v1522
        %v1527 = vadd.f32 %v1516, %v1522
        %v1528 = vtanh.pop %v1524
        %v1529 = vtanh.pop %v1525
        %v1530 = vtanh.pop %v1526
        %v1531 = vtanh.pop %v1527
        %s1532 = ssub.s32 %s829, 8
        %v1533 = vlaneseq
        %v1534 = vshrl.u32 %v1533, 7
        %v1535 = vadd.s32 %v1534, 8
        %v1536 = vadd.s32 %v1534, 16
        %v1537 = vadd.s32 %v1534, 24
        %v1538 = vstv %s1532
        %v1539 = vadd.s32 %v1538, %v1534
        %v1540 = vadd.s32 %v1538, %v1535
        %v1541 = vadd.s32 %v1538, %v1536
        %v1542 = vadd.s32 %v1538, %v1537
        %vm1543 = vcmp.ge.s32.totalorder %v1539, 0
        %vm1544 = vcmp.ge.s32.totalorder %v1540, 0
        %vm1545 = vcmp.ge.s32.totalorder %v1541, 0
        %vm1546 = vcmp.ge.s32.totalorder %v1542, 0
        %vm1547 = vcmp.lt.s32.totalorder %v1539, 16
        %vm1548 = vcmp.lt.s32.totalorder %v1540, 16
        %vm1549 = vcmp.lt.s32.totalorder %v1541, 16
        %vm1550 = vcmp.lt.s32.totalorder %v1542, 16
        %vm1551 = vmand %vm1543, %vm1547
        %vm1552 = vmand %vm1544, %vm1548
        %vm1553 = vmand %vm1545, %vm1549
        %vm1554 = vmand %vm1546, %vm1550
        %v1555 = vsel %vm1551, %v1528, 0.0
        %v1556 = vsel %vm1552, %v1529, 0.0
        %v1557 = vsel %vm1553, %v1530, 0.0
        %v1558 = vsel %vm1554, %v1531, 0.0
        %v1559 = vpack.c.bf16 %v1556, %v1555
        %v1560 = vpack.c.bf16 %v1558, %v1557
        %1561 = vst [vmem:[#allocation2] sm:$0xff] %v1559
        %1562 = vst [vmem:[#allocation2 + $0x8] sm:$0xff] %v1560
        %v1563 = vld [vmem:[#allocation2] sm:$0xff]
        %v1564 = vld [vmem:[#allocation2 + $0x8] sm:$0x3f]
        %v1565 = vld [vmem:[#allocation10] sm:$0xf]
        %v1566 = vld [vmem:[#allocation10 + $0x4] sm:$0xf]
        %v1567 = vld [vmem:[#allocation10 + $0x8] sm:$0xf]
        %v1568 = vld [vmem:[#allocation10 + $0xc] sm:$0xf]
        %v1569 = vld [vmem:[#allocation10 + $0x10] sm:$0xf]
        %v1570 = vld [vmem:[#allocation10 + $0x14] sm:$0xf]
        %v1571 = vld [vmem:[#allocation10 + $0x18] sm:$0xf]
        %v1572 = vld [vmem:[#allocation10 + $0x1c] sm:$0xf]
        %v1573 = vld [vmem:[#allocation10 + $0x20] sm:$0xf]
        %v1574 = vld [vmem:[#allocation10 + $0x24] sm:$0xf]
        %v1575 = vld [vmem:[#allocation10 + $0x28] sm:$0xf]
        %v1576 = vld [vmem:[#allocation10 + $0x2c] sm:$0xf]
        %v1577 = vld [vmem:[#allocation10 + $0x30] sm:$0xf]
        %v1578 = vld [vmem:[#allocation10 + $0x34] sm:$0xf]
        %v1579 = vld [vmem:[#allocation10 + $0x38] sm:$0xf]
        %v1580 = vld [vmem:[#allocation10 + $0x3c] sm:$0xf]
        %v1581 = vld [vmem:[#allocation2 + $0x8] sm:$0x7f]
        %s1582 = scalar_lea.vmem [#allocation10], 64
        %v1583 = vld [vmem:[%s1582] sm:$0xf]
        %v1584 = vld [vmem:[%s1582 + $0x4] sm:$0xf]
        %v1585 = vld [vmem:[%s1582 + $0x8] sm:$0xf]
        %v1586 = vld [vmem:[%s1582 + $0xc] sm:$0xf]
        %v1587 = vld [vmem:[%s1582 + $0x10] sm:$0xf]
        %v1588 = vld [vmem:[%s1582 + $0x14] sm:$0xf]
        %v1589 = vld [vmem:[%s1582 + $0x18] sm:$0xf]
        %v1590 = vld [vmem:[%s1582 + $0x1c] sm:$0xf]
        %v1591 = vld [vmem:[%s1582 + $0x20] sm:$0xf]
        %v1592 = vld [vmem:[%s1582 + $0x24] sm:$0xf]
        %v1593 = vld [vmem:[%s1582 + $0x28] sm:$0xf]
        %v1594 = vld [vmem:[%s1582 + $0x2c] sm:$0xf]
        %v1595 = vld [vmem:[%s1582 + $0x30] sm:$0xf]
        %v1596 = vld [vmem:[%s1582 + $0x34] sm:$0xf]
        %v1597 = vld [vmem:[%s1582 + $0x38] sm:$0xf]
        %v1598 = vld [vmem:[%s1582 + $0x3c] sm:$0xf]
        %v1600 = vshrl.u32 %v1563, 16
        %v1602 = vshll.u32 %v1563, 16
        %v1604 = vrot.slane %v1602, 1
        %v1605 = vor.u32 %v1600, %v1604
        %v1607 = vshll.u32 %v1581, 16
        %v1609 = vrot.slane %v1607, 1
        %v1610 = vsel %vm881, %v1605, %v1609
        %v1611 = vshrl.u32 %v1581, 16
        %v1613 = vor.u32 %v1611, %v1609
        %v1632 = vunpack.c.l.b16 %v1583
        %v1633 = vunpack.c.l.b16 %v1584
        %v1634 = vunpack.c.l.b16 %v1585
        %v1635 = vunpack.c.l.b16 %v1586
        %v1636 = vunpack.c.l.b16 %v1587
        %v1637 = vunpack.c.l.b16 %v1588
        %v1638 = vunpack.c.l.b16 %v1589
        %v1639 = vunpack.c.l.b16 %v1590
        %v1640 = vunpack.c.l.b16 %v1591
        %v1641 = vunpack.c.l.b16 %v1592
        %v1642 = vunpack.c.l.b16 %v1593
        %v1643 = vunpack.c.l.b16 %v1594
        %v1644 = vunpack.c.l.b16 %v1595
        %v1645 = vunpack.c.l.b16 %v1596
        %v1646 = vunpack.c.l.b16 %v1597
        %v1647 = vunpack.c.l.b16 %v1598
        %v1648 = vpack.c.b16 %v1633, %v1632
        %v1649 = vpack.c.b16 %v1635, %v1634
        %v1650 = vpack.c.b16 %v1637, %v1636
        %v1651 = vpack.c.b16 %v1639, %v1638
        %v1652 = vpack.c.b16 %v1641, %v1640
        %v1653 = vpack.c.b16 %v1643, %v1642
        %v1654 = vpack.c.b16 %v1645, %v1644
        %v1655 = vpack.c.b16 %v1647, %v1646
        %1664 = vmatprep.subr.bf16.mxu0 0
        %1665 = vmatpush1.bf16.msra.mxu0 %v1648
        %1666 = vmatprep.subr.bf16.mxu0 0
        %1667 = vmatpush1.bf16.msra.mxu0 %v1649
        %1668 = vmatprep.subr.bf16.mxu0 0
        %1669 = vmatpush1.bf16.msra.mxu0 %v1650
        %1670 = vmatprep.subr.bf16.mxu0 0
        %1671 = vmatpush1.bf16.msra.mxu0 %v1651
        %1672 = vmatprep.subr.bf16.mxu0 0
        %1673 = vmatpush1.bf16.msra.mxu0 %v1652
        %1674 = vmatprep.subr.bf16.mxu0 0
        %1675 = vmatpush1.bf16.msra.mxu0 %v1653
        %1676 = vmatprep.subr.bf16.mxu0 0
        %1677 = vmatpush1.bf16.msra.mxu0 %v1654
        %1678 = vmatprep.subr.bf16.mxu0 0
        %1679 = vmatpush1.bf16.msra.mxu0 %v1655
        %1680 = vmatprep.subr.bf16.mxu0 0
        %1681 = vmatpush1.bf16.msra.mxu0 0
        %1682 = vmatprep.subr.bf16.mxu0 0
        %1683 = vmatpush1.bf16.msra.mxu0 0
        %1684 = vmatprep.subr.bf16.mxu0 0
        %1685 = vmatpush1.bf16.msra.mxu0 0
        %1686 = vmatprep.subr.bf16.mxu0 0
        %1687 = vmatpush1.bf16.msra.mxu0 0
        %1688 = vmatprep.subr.bf16.mxu0 0
        %1689 = vmatpush1.bf16.msra.mxu0 0
        %1690 = vmatprep.subr.bf16.mxu0 0
        %1691 = vmatpush1.bf16.msra.mxu0 0
        %1692 = vmatprep.subr.bf16.mxu0 0
        %1693 = vmatpush1.bf16.msra.mxu0 0
        %1694 = vmatprep.subr.bf16.mxu0 0
        %1695 = vmatpush1.bf16.msra.mxu0 0
        %1696 = vmatprep.mubr.bf16.mxu0 0
        %1697 = vmatmul.mubr.bf16.gmra.mrb[0].mxu0 %v1610
        %v1698 = vpop.f32.mrb[0].mxu0
        %v1699 = vadd.f32 0.0, %v1698
        %v1700 = vpop.f32.mrb[0].mxu0
        %v1701 = vpop.f32.mrb[0].mxu0
        %v1702 = vadd.f32 0.0, %v1701
        %v1703 = vpop.f32.mrb[0].mxu0
        %1704 = vmatprep.mubr.bf16.mxu0 0
        %1705 = vmatmul.mubr.bf16.gmra.mrb[0].mxu0 %v1613
        %v1706 = vpop.f32.mrb[0].mxu0
        %v1707 = vadd.f32 0.0, %v1706
        %v1708 = vpop.f32.mrb[0].mxu0
        %v1709 = vpop.f32.mrb[0].mxu0
        %v1710 = vadd.f32 0.0, %v1709
        %v1711 = vpop.f32.mrb[0].mxu0
        %1712 = vdwg.mxu0
        %v1729 = vunpack.c.l.b16 %v1565
        %v1730 = vunpack.c.l.b16 %v1566
        %v1731 = vunpack.c.l.b16 %v1567
        %v1732 = vunpack.c.l.b16 %v1568
        %v1733 = vunpack.c.l.b16 %v1569
        %v1734 = vunpack.c.l.b16 %v1570
        %v1735 = vunpack.c.l.b16 %v1571
        %v1736 = vunpack.c.l.b16 %v1572
        %v1737 = vunpack.c.l.b16 %v1573
        %v1738 = vunpack.c.l.b16 %v1574
        %v1739 = vunpack.c.l.b16 %v1575
        %v1740 = vunpack.c.l.b16 %v1576
        %v1741 = vunpack.c.l.b16 %v1577
        %v1742 = vunpack.c.l.b16 %v1578
        %v1743 = vunpack.c.l.b16 %v1579
        %v1744 = vunpack.c.l.b16 %v1580
        %v1745 = vpack.c.b16 %v1730, %v1729
        %v1746 = vpack.c.b16 %v1732, %v1731
        %v1747 = vpack.c.b16 %v1734, %v1733
        %v1748 = vpack.c.b16 %v1736, %v1735
        %v1749 = vpack.c.b16 %v1738, %v1737
        %v1750 = vpack.c.b16 %v1740, %v1739
        %v1751 = vpack.c.b16 %v1742, %v1741
        %v1752 = vpack.c.b16 %v1744, %v1743
        %1761 = vmatprep.subr.bf16.mxu0 0
        %1762 = vmatpush1.bf16.msra.mxu0 %v1745
        %1763 = vmatprep.subr.bf16.mxu0 0
        %1764 = vmatpush1.bf16.msra.mxu0 %v1746
        %1765 = vmatprep.subr.bf16.mxu0 0
        %1766 = vmatpush1.bf16.msra.mxu0 %v1747
        %1767 = vmatprep.subr.bf16.mxu0 0
        %1768 = vmatpush1.bf16.msra.mxu0 %v1748
        %1769 = vmatprep.subr.bf16.mxu0 0
        %1770 = vmatpush1.bf16.msra.mxu0 %v1749
        %1771 = vmatprep.subr.bf16.mxu0 0
        %1772 = vmatpush1.bf16.msra.mxu0 %v1750
        %1773 = vmatprep.subr.bf16.mxu0 0
        %1774 = vmatpush1.bf16.msra.mxu0 %v1751
        %1775 = vmatprep.subr.bf16.mxu0 0
        %1776 = vmatpush1.bf16.msra.mxu0 %v1752
        %1777 = vmatprep.subr.bf16.mxu0 0
        %1778 = vmatpush1.bf16.msra.mxu0 0
        %1779 = vmatprep.subr.bf16.mxu0 0
        %1780 = vmatpush1.bf16.msra.mxu0 0
        %1781 = vmatprep.subr.bf16.mxu0 0
        %1782 = vmatpush1.bf16.msra.mxu0 0
        %1783 = vmatprep.subr.bf16.mxu0 0
        %1784 = vmatpush1.bf16.msra.mxu0 0
        %1785 = vmatprep.subr.bf16.mxu0 0
        %1786 = vmatpush1.bf16.msra.mxu0 0
        %1787 = vmatprep.subr.bf16.mxu0 0
        %1788 = vmatpush1.bf16.msra.mxu0 0
        %1789 = vmatprep.subr.bf16.mxu0 0
        %1790 = vmatpush1.bf16.msra.mxu0 0
        %1791 = vmatprep.subr.bf16.mxu0 0
        %1792 = vmatpush1.bf16.msra.mxu0 0
        %1793 = vmatprep.mubr.bf16.mxu0 0
        %1794 = vmatmul.mubr.bf16.gmra.mrb[0].mxu0 %v1563
        %v1795 = vpop.f32.mrb[0].mxu0
        %v1796 = vadd.f32 %v1699, %v1795
        %v1797 = vpop.f32.mrb[0].mxu0
        %v1798 = vpop.f32.mrb[0].mxu0
        %v1799 = vadd.f32 %v1702, %v1798
        %v1800 = vpop.f32.mrb[0].mxu0
        %1801 = vmatprep.mubr.bf16.mxu0 0
        %1802 = vmatmul.mubr.bf16.gmra.mrb[0].mxu0 %v1564
        %v1803 = vpop.f32.mrb[0].mxu0
        %v1804 = vadd.f32 %v1707, %v1803
        %v1805 = vpop.f32.mrb[0].mxu0
        %v1806 = vpop.f32.mrb[0].mxu0
        %v1807 = vadd.f32 %v1710, %v1806
        %v1808 = vpop.f32.mrb[0].mxu0
        %1809 = vdwg.mxu0
        %v1810 = vld [vmem:[#allocation2] sm:$0xfe]
        %s1811 = scalar_lea.vmem [#allocation10], 128
        %v1812 = vld [vmem:[%s1811] sm:$0xf]
        %v1813 = vld [vmem:[%s1811 + $0x4] sm:$0xf]
        %v1814 = vld [vmem:[%s1811 + $0x8] sm:$0xf]
        %v1815 = vld [vmem:[%s1811 + $0xc] sm:$0xf]
        %v1816 = vld [vmem:[%s1811 + $0x10] sm:$0xf]
        %v1817 = vld [vmem:[%s1811 + $0x14] sm:$0xf]
        %v1818 = vld [vmem:[%s1811 + $0x18] sm:$0xf]
        %v1819 = vld [vmem:[%s1811 + $0x1c] sm:$0xf]
        %v1820 = vld [vmem:[%s1811 + $0x20] sm:$0xf]
        %v1821 = vld [vmem:[%s1811 + $0x24] sm:$0xf]
        %v1822 = vld [vmem:[%s1811 + $0x28] sm:$0xf]
        %v1823 = vld [vmem:[%s1811 + $0x2c] sm:$0xf]
        %v1824 = vld [vmem:[%s1811 + $0x30] sm:$0xf]
        %v1825 = vld [vmem:[%s1811 + $0x34] sm:$0xf]
        %v1826 = vld [vmem:[%s1811 + $0x38] sm:$0xf]
        %v1827 = vld [vmem:[%s1811 + $0x3c] sm:$0xf]
        %v1830 = vrot.slane %v1810, 1
        %v1831 = vrot.slane %v1581, 1
        %v1832 = vsel %vm1121, %v1830, %v1831
        %v1851 = vunpack.c.l.b16 %v1812
        %v1852 = vunpack.c.l.b16 %v1813
        %v1853 = vunpack.c.l.b16 %v1814
        %v1854 = vunpack.c.l.b16 %v1815
        %v1855 = vunpack.c.l.b16 %v1816
        %v1856 = vunpack.c.l.b16 %v1817
        %v1857 = vunpack.c.l.b16 %v1818
        %v1858 = vunpack.c.l.b16 %v1819
        %v1859 = vunpack.c.l.b16 %v1820
        %v1860 = vunpack.c.l.b16 %v1821
        %v1861 = vunpack.c.l.b16 %v1822
        %v1862 = vunpack.c.l.b16 %v1823
        %v1863 = vunpack.c.l.b16 %v1824
        %v1864 = vunpack.c.l.b16 %v1825
        %v1865 = vunpack.c.l.b16 %v1826
        %v1866 = vunpack.c.l.b16 %v1827
        %v1867 = vpack.c.b16 %v1852, %v1851
        %v1868 = vpack.c.b16 %v1854, %v1853
        %v1869 = vpack.c.b16 %v1856, %v1855
        %v1870 = vpack.c.b16 %v1858, %v1857
        %v1871 = vpack.c.b16 %v1860, %v1859
        %v1872 = vpack.c.b16 %v1862, %v1861
        %v1873 = vpack.c.b16 %v1864, %v1863
        %v1874 = vpack.c.b16 %v1866, %v1865
        %1883 = vmatprep.subr.bf16.mxu0 0
        %1884 = vmatpush1.bf16.msra.mxu0 %v1867
        %1885 = vmatprep.subr.bf16.mxu0 0
        %1886 = vmatpush1.bf16.msra.mxu0 %v1868
        %1887 = vmatprep.subr.bf16.mxu0 0
        %1888 = vmatpush1.bf16.msra.mxu0 %v1869
        %1889 = vmatprep.subr.bf16.mxu0 0
        %1890 = vmatpush1.bf16.msra.mxu0 %v1870
        %1891 = vmatprep.subr.bf16.mxu0 0
        %1892 = vmatpush1.bf16.msra.mxu0 %v1871
        %1893 = vmatprep.subr.bf16.mxu0 0
        %1894 = vmatpush1.bf16.msra.mxu0 %v1872
        %1895 = vmatprep.subr.bf16.mxu0 0
        %1896 = vmatpush1.bf16.msra.mxu0 %v1873
        %1897 = vmatprep.subr.bf16.mxu0 0
        %1898 = vmatpush1.bf16.msra.mxu0 %v1874
        %1899 = vmatprep.subr.bf16.mxu0 0
        %1900 = vmatpush1.bf16.msra.mxu0 0
        %1901 = vmatprep.subr.bf16.mxu0 0
        %1902 = vmatpush1.bf16.msra.mxu0 0
        %1903 = vmatprep.subr.bf16.mxu0 0
        %1904 = vmatpush1.bf16.msra.mxu0 0
        %1905 = vmatprep.subr.bf16.mxu0 0
        %1906 = vmatpush1.bf16.msra.mxu0 0
        %1907 = vmatprep.subr.bf16.mxu0 0
        %1908 = vmatpush1.bf16.msra.mxu0 0
        %1909 = vmatprep.subr.bf16.mxu0 0
        %1910 = vmatpush1.bf16.msra.mxu0 0
        %1911 = vmatprep.subr.bf16.mxu0 0
        %1912 = vmatpush1.bf16.msra.mxu0 0
        %1913 = vmatprep.subr.bf16.mxu0 0
        %1914 = vmatpush1.bf16.msra.mxu0 0
        %1915 = vmatprep.mubr.bf16.mxu0 0
        %1916 = vmatmul.mubr.bf16.gmra.mrb[0].mxu0 %v1832
        %v1917 = vpop.f32.mrb[0].mxu0
        %v1918 = vadd.f32 0.0, %v1917
        %v1919 = vpop.f32.mrb[0].mxu0
        %v1920 = vpop.f32.mrb[0].mxu0
        %v1921 = vadd.f32 0.0, %v1920
        %v1922 = vpop.f32.mrb[0].mxu0
        %1923 = vmatprep.mubr.bf16.mxu0 0
        %1924 = vmatmul.mubr.bf16.gmra.mrb[0].mxu0 %v1831
        %v1925 = vpop.f32.mrb[0].mxu0
        %v1926 = vadd.f32 0.0, %v1925
        %v1927 = vpop.f32.mrb[0].mxu0
        %v1928 = vpop.f32.mrb[0].mxu0
        %v1929 = vadd.f32 0.0, %v1928
        %v1930 = vpop.f32.mrb[0].mxu0
        %1931 = vdwg.mxu0
        %v1932 = vadd.f32 %v1796, %v1918
        %v1933 = vadd.f32 %v1799, %v1921
        %v1934 = vadd.f32 %v1804, %v1926
        %v1935 = vadd.f32 %v1807, %v1929
        %v1936 = vld [vmem:[#allocation2 + $0x8] sm:$0xff]
        %s1937 = scalar_lea.vmem [#allocation10], 192
        %v1938 = vld [vmem:[%s1937] sm:$0xf]
        %v1939 = vld [vmem:[%s1937 + $0x4] sm:$0xf]
        %v1940 = vld [vmem:[%s1937 + $0x8] sm:$0xf]
        %v1941 = vld [vmem:[%s1937 + $0xc] sm:$0xf]
        %v1942 = vld [vmem:[%s1937 + $0x10] sm:$0xf]
        %v1943 = vld [vmem:[%s1937 + $0x14] sm:$0xf]
        %v1944 = vld [vmem:[%s1937 + $0x18] sm:$0xf]
        %v1945 = vld [vmem:[%s1937 + $0x1c] sm:$0xf]
        %v1946 = vld [vmem:[%s1937 + $0x20] sm:$0xf]
        %v1947 = vld [vmem:[%s1937 + $0x24] sm:$0xf]
        %v1948 = vld [vmem:[%s1937 + $0x28] sm:$0xf]
        %v1949 = vld [vmem:[%s1937 + $0x2c] sm:$0xf]
        %v1950 = vld [vmem:[%s1937 + $0x30] sm:$0xf]
        %v1951 = vld [vmem:[%s1937 + $0x34] sm:$0xf]
        %v1952 = vld [vmem:[%s1937 + $0x38] sm:$0xf]
        %v1953 = vld [vmem:[%s1937 + $0x3c] sm:$0xf]
        %v1955 = vshrl.u32 %v1810, 16
        %v1957 = vrot.slane %v1955, 1
        %v1958 = vshll.u32 %v1810, 16
        %v1960 = vrot.slane %v1958, 2
        %v1961 = vor.u32 %v1957, %v1960
        %v1963 = vshrl.u32 %v1936, 16
        %v1965 = vrot.slane %v1963, 1
        %v1966 = vshll.u32 %v1936, 16
        %v1968 = vrot.slane %v1966, 2
        %v1969 = vor.u32 %v1965, %v1968
        %v1970 = vsel %vm1251, %v1961, %v1969
        %v1989 = vunpack.c.l.b16 %v1938
        %v1990 = vunpack.c.l.b16 %v1939
        %v1991 = vunpack.c.l.b16 %v1940
        %v1992 = vunpack.c.l.b16 %v1941
        %v1993 = vunpack.c.l.b16 %v1942
        %v1994 = vunpack.c.l.b16 %v1943
        %v1995 = vunpack.c.l.b16 %v1944
        %v1996 = vunpack.c.l.b16 %v1945
        %v1997 = vunpack.c.l.b16 %v1946
        %v1998 = vunpack.c.l.b16 %v1947
        %v1999 = vunpack.c.l.b16 %v1948
        %v2000 = vunpack.c.l.b16 %v1949
        %v2001 = vunpack.c.l.b16 %v1950
        %v2002 = vunpack.c.l.b16 %v1951
        %v2003 = vunpack.c.l.b16 %v1952
        %v2004 = vunpack.c.l.b16 %v1953
        %v2005 = vpack.c.b16 %v1990, %v1989
        %v2006 = vpack.c.b16 %v1992, %v1991
        %v2007 = vpack.c.b16 %v1994, %v1993
        %v2008 = vpack.c.b16 %v1996, %v1995
        %v2009 = vpack.c.b16 %v1998, %v1997
        %v2010 = vpack.c.b16 %v2000, %v1999
        %v2011 = vpack.c.b16 %v2002, %v2001
        %v2012 = vpack.c.b16 %v2004, %v2003
        %2021 = vmatprep.subr.bf16.mxu0 0
        %2022 = vmatpush1.bf16.msra.mxu0 %v2005
        %2023 = vmatprep.subr.bf16.mxu0 0
        %2024 = vmatpush1.bf16.msra.mxu0 %v2006
        %2025 = vmatprep.subr.bf16.mxu0 0
        %2026 = vmatpush1.bf16.msra.mxu0 %v2007
        %2027 = vmatprep.subr.bf16.mxu0 0
        %2028 = vmatpush1.bf16.msra.mxu0 %v2008
        %2029 = vmatprep.subr.bf16.mxu0 0
        %2030 = vmatpush1.bf16.msra.mxu0 %v2009
        %2031 = vmatprep.subr.bf16.mxu0 0
        %2032 = vmatpush1.bf16.msra.mxu0 %v2010
        %2033 = vmatprep.subr.bf16.mxu0 0
        %2034 = vmatpush1.bf16.msra.mxu0 %v2011
        %2035 = vmatprep.subr.bf16.mxu0 0
        %2036 = vmatpush1.bf16.msra.mxu0 %v2012
        %2037 = vmatprep.subr.bf16.mxu0 0
        %2038 = vmatpush1.bf16.msra.mxu0 0
        %2039 = vmatprep.subr.bf16.mxu0 0
        %2040 = vmatpush1.bf16.msra.mxu0 0
        %2041 = vmatprep.subr.bf16.mxu0 0
        %2042 = vmatpush1.bf16.msra.mxu0 0
        %2043 = vmatprep.subr.bf16.mxu0 0
        %2044 = vmatpush1.bf16.msra.mxu0 0
        %2045 = vmatprep.subr.bf16.mxu0 0
        %2046 = vmatpush1.bf16.msra.mxu0 0
        %2047 = vmatprep.subr.bf16.mxu0 0
        %2048 = vmatpush1.bf16.msra.mxu0 0
        %2049 = vmatprep.subr.bf16.mxu0 0
        %2050 = vmatpush1.bf16.msra.mxu0 0
        %2051 = vmatprep.subr.bf16.mxu0 0
        %2052 = vmatpush1.bf16.msra.mxu0 0
        %2053 = vmatprep.mubr.bf16.mxu0 0
        %2054 = vmatmul.mubr.bf16.gmra.mrb[0].mxu0 %v1970
        %v2055 = vpop.f32.mrb[0].mxu0
        %v2056 = vadd.f32 0.0, %v2055
        %v2057 = vpop.f32.mrb[0].mxu0
        %v2058 = vpop.f32.mrb[0].mxu0
        %v2059 = vadd.f32 0.0, %v2058
        %v2060 = vpop.f32.mrb[0].mxu0
        %2061 = vmatprep.mubr.bf16.mxu0 0
        %2062 = vmatmul.mubr.bf16.gmra.mrb[0].mxu0 %v1969
        %v2063 = vpop.f32.mrb[0].mxu0
        %v2064 = vadd.f32 0.0, %v2063
        %v2065 = vpop.f32.mrb[0].mxu0
        %v2066 = vpop.f32.mrb[0].mxu0
        %v2067 = vadd.f32 0.0, %v2066
        %v2068 = vpop.f32.mrb[0].mxu0
        %2069 = vdwg.mxu0
        %v2070 = vadd.f32 %v1932, %v2056
        %v2071 = vadd.f32 %v1933, %v2059
        %v2072 = vadd.f32 %v1934, %v2064
        %v2073 = vadd.f32 %v1935, %v2067
        %v2074 = vld [vmem:[#allocation2] sm:$0xfc]
        %s2075 = scalar_lea.vmem [#allocation10], 256
        %v2076 = vld [vmem:[%s2075] sm:$0xf]
        %v2077 = vld [vmem:[%s2075 + $0x4] sm:$0xf]
        %v2078 = vld [vmem:[%s2075 + $0x8] sm:$0xf]
        %v2079 = vld [vmem:[%s2075 + $0xc] sm:$0xf]
        %v2080 = vld [vmem:[%s2075 + $0x10] sm:$0xf]
        %v2081 = vld [vmem:[%s2075 + $0x14] sm:$0xf]
        %v2082 = vld [vmem:[%s2075 + $0x18] sm:$0xf]
        %v2083 = vld [vmem:[%s2075 + $0x1c] sm:$0xf]
        %v2084 = vld [vmem:[%s2075 + $0x20] sm:$0xf]
        %v2085 = vld [vmem:[%s2075 + $0x24] sm:$0xf]
        %v2086 = vld [vmem:[%s2075 + $0x28] sm:$0xf]
        %v2087 = vld [vmem:[%s2075 + $0x2c] sm:$0xf]
        %v2088 = vld [vmem:[%s2075 + $0x30] sm:$0xf]
        %v2089 = vld [vmem:[%s2075 + $0x34] sm:$0xf]
        %v2090 = vld [vmem:[%s2075 + $0x38] sm:$0xf]
        %v2091 = vld [vmem:[%s2075 + $0x3c] sm:$0xf]
        %v2094 = vrot.slane %v2074, 2
        %v2095 = vrot.slane %v1936, 2
        %v2096 = vsel %vm1397, %v2094, %v2095
        %v2115 = vunpack.c.l.b16 %v2076
        %v2116 = vunpack.c.l.b16 %v2077
        %v2117 = vunpack.c.l.b16 %v2078
        %v2118 = vunpack.c.l.b16 %v2079
        %v2119 = vunpack.c.l.b16 %v2080
        %v2120 = vunpack.c.l.b16 %v2081
        %v2121 = vunpack.c.l.b16 %v2082
        %v2122 = vunpack.c.l.b16 %v2083
        %v2123 = vunpack.c.l.b16 %v2084
        %v2124 = vunpack.c.l.b16 %v2085
        %v2125 = vunpack.c.l.b16 %v2086
        %v2126 = vunpack.c.l.b16 %v2087
        %v2127 = vunpack.c.l.b16 %v2088
        %v2128 = vunpack.c.l.b16 %v2089
        %v2129 = vunpack.c.l.b16 %v2090
        %v2130 = vunpack.c.l.b16 %v2091
        %v2131 = vpack.c.b16 %v2116, %v2115
        %v2132 = vpack.c.b16 %v2118, %v2117
        %v2133 = vpack.c.b16 %v2120, %v2119
        %v2134 = vpack.c.b16 %v2122, %v2121
        %v2135 = vpack.c.b16 %v2124, %v2123
        %v2136 = vpack.c.b16 %v2126, %v2125
        %v2137 = vpack.c.b16 %v2128, %v2127
        %v2138 = vpack.c.b16 %v2130, %v2129
        %2147 = vmatprep.subr.bf16.mxu0 0
        %2148 = vmatpush1.bf16.msra.mxu0 %v2131
        %2149 = vmatprep.subr.bf16.mxu0 0
        %2150 = vmatpush1.bf16.msra.mxu0 %v2132
        %2151 = vmatprep.subr.bf16.mxu0 0
        %2152 = vmatpush1.bf16.msra.mxu0 %v2133
        %2153 = vmatprep.subr.bf16.mxu0 0
        %2154 = vmatpush1.bf16.msra.mxu0 %v2134
        %2155 = vmatprep.subr.bf16.mxu0 0
        %2156 = vmatpush1.bf16.msra.mxu0 %v2135
        %2157 = vmatprep.subr.bf16.mxu0 0
        %2158 = vmatpush1.bf16.msra.mxu0 %v2136
        %2159 = vmatprep.subr.bf16.mxu0 0
        %2160 = vmatpush1.bf16.msra.mxu0 %v2137
        %2161 = vmatprep.subr.bf16.mxu0 0
        %2162 = vmatpush1.bf16.msra.mxu0 %v2138
        %2163 = vmatprep.subr.bf16.mxu0 0
        %2164 = vmatpush1.bf16.msra.mxu0 0
        %2165 = vmatprep.subr.bf16.mxu0 0
        %2166 = vmatpush1.bf16.msra.mxu0 0
        %2167 = vmatprep.subr.bf16.mxu0 0
        %2168 = vmatpush1.bf16.msra.mxu0 0
        %2169 = vmatprep.subr.bf16.mxu0 0
        %2170 = vmatpush1.bf16.msra.mxu0 0
        %2171 = vmatprep.subr.bf16.mxu0 0
        %2172 = vmatpush1.bf16.msra.mxu0 0
        %2173 = vmatprep.subr.bf16.mxu0 0
        %2174 = vmatpush1.bf16.msra.mxu0 0
        %2175 = vmatprep.subr.bf16.mxu0 0
        %2176 = vmatpush1.bf16.msra.mxu0 0
        %2177 = vmatprep.subr.bf16.mxu0 0
        %2178 = vmatpush1.bf16.msra.mxu0 0
        %2179 = vmatprep.mubr.bf16.mxu0 0
        %2180 = vmatmul.mubr.bf16.gmra.mrb[0].mxu0 %v2096
        %v2181 = vpop.f32.mrb[0].mxu0
        %v2182 = vadd.f32 0.0, %v2181
        %v2183 = vpop.f32.mrb[0].mxu0
        %v2184 = vpop.f32.mrb[0].mxu0
        %v2185 = vadd.f32 0.0, %v2184
        %v2186 = vpop.f32.mrb[0].mxu0
        %2187 = vmatprep.mubr.bf16.mxu0 0
        %2188 = vmatmul.mubr.bf16.gmra.mrb[0].mxu0 %v2095
        %v2189 = vpop.f32.mrb[0].mxu0
        %v2190 = vadd.f32 0.0, %v2189
        %v2191 = vpop.f32.mrb[0].mxu0
        %v2192 = vpop.f32.mrb[0].mxu0
        %v2193 = vadd.f32 0.0, %v2192
        %v2194 = vpop.f32.mrb[0].mxu0
        %2195 = vdwg.mxu0
        %v2196 = vadd.f32 %v2070, %v2182
        %v2197 = vadd.f32 %v2071, %v2185
        %v2198 = vadd.f32 %v2072, %v2190
        %v2199 = vadd.f32 %v2073, %v2193
        %v2200 = vld [vmem:[#allocation18] sm:$0x1]
        %v2202 = vlaneseq
        %v2203 = vshrl.u32 %v2202, 7
        %v2204 = vsub.s32 0, %v2203
        %v2205 = vrot.slane %v2200, %v2204
        %v2207 = vmul.f32 %v2196, %v2205
        %v2208 = vmul.f32 %v2197, %v2205
        %v2209 = vmul.f32 %v2198, %v2205
        %v2210 = vmul.f32 %v2199, %v2205
        %v2211 = vld [vmem:[#allocation25] sm:$0x1]
        %v2213 = vlaneseq
        %v2214 = vshrl.u32 %v2213, 7
        %v2215 = vsub.s32 0, %v2214
        %v2216 = vrot.slane %v2211, %v2215
        %v2218 = vadd.f32 %v2207, %v2216
        %v2219 = vadd.f32 %v2208, %v2216
        %v2220 = vadd.f32 %v2209, %v2216
        %v2221 = vadd.f32 %v2210, %v2216
        %v2222 = vtanh.pop %v2218
        %v2223 = vtanh.pop %v2219
        %v2224 = vtanh.pop %v2220
        %v2225 = vtanh.pop %v2221
        %s2226 = ssub.s32 %s829, 6
        %v2227 = vstv %s2226
        %v2228 = vadd.s32 %v2227, %v1534
        %v2229 = vadd.s32 %v2227, %v1535
        %v2230 = vadd.s32 %v2227, %v1536
        %v2231 = vadd.s32 %v2227, %v1537
        %vm2232 = vcmp.ge.s32.totalorder %v2228, 0
        %vm2233 = vcmp.ge.s32.totalorder %v2229, 0
        %vm2234 = vcmp.ge.s32.totalorder %v2230, 0
        %vm2235 = vcmp.ge.s32.totalorder %v2231, 0
        %vm2236 = vcmp.lt.s32.totalorder %v2228, 16
        %vm2237 = vcmp.lt.s32.totalorder %v2229, 16
        %vm2238 = vcmp.lt.s32.totalorder %v2230, 16
        %vm2239 = vcmp.lt.s32.totalorder %v2231, 16
        %vm2240 = vmand %vm2232, %vm2236
        %vm2241 = vmand %vm2233, %vm2237
        %vm2242 = vmand %vm2234, %vm2238
        %vm2243 = vmand %vm2235, %vm2239
        %v2244 = vsel %vm2240, %v2222, 0.0
        %v2245 = vsel %vm2241, %v2223, 0.0
        %v2246 = vsel %vm2242, %v2224, 0.0
        %v2247 = vsel %vm2243, %v2225, 0.0
        %v2248 = vpack.c.bf16 %v2245, %v2244
        %v2249 = vpack.c.bf16 %v2247, %v2246
        %2250 = vst [vmem:[#allocation3] sm:$0xff] %v2248
        %2251 = vst [vmem:[#allocation3 + $0x8] sm:$0x3f] %v2249
        %v2252 = vld [vmem:[#allocation3] sm:$0xff]
        %v2253 = vld [vmem:[#allocation3 + $0x8] sm:$0xf]
        %v2254 = vld [vmem:[#allocation12] sm:$0xf]
        %v2255 = vld [vmem:[#allocation12 + $0x4] sm:$0xf]
        %v2256 = vld [vmem:[#allocation12 + $0x8] sm:$0xf]
        %v2257 = vld [vmem:[#allocation12 + $0xc] sm:$0xf]
        %v2258 = vld [vmem:[#allocation12 + $0x10] sm:$0xf]
        %v2259 = vld [vmem:[#allocation12 + $0x14] sm:$0xf]
        %v2260 = vld [vmem:[#allocation12 + $0x18] sm:$0xf]
        %v2261 = vld [vmem:[#allocation12 + $0x1c] sm:$0xf]
        %v2262 = vld [vmem:[#allocation12 + $0x20] sm:$0xf]
        %v2263 = vld [vmem:[#allocation12 + $0x24] sm:$0xf]
        %v2264 = vld [vmem:[#allocation12 + $0x28] sm:$0xf]
        %v2265 = vld [vmem:[#allocation12 + $0x2c] sm:$0xf]
        %v2266 = vld [vmem:[#allocation12 + $0x30] sm:$0xf]
        %v2267 = vld [vmem:[#allocation12 + $0x34] sm:$0xf]
        %v2268 = vld [vmem:[#allocation12 + $0x38] sm:$0xf]
        %v2269 = vld [vmem:[#allocation12 + $0x3c] sm:$0xf]
        %v2270 = vld [vmem:[#allocation3 + $0x8] sm:$0x1f]
        %s2271 = scalar_lea.vmem [#allocation12], 64
        %v2272 = vld [vmem:[%s2271] sm:$0xf]
        %v2273 = vld [vmem:[%s2271 + $0x4] sm:$0xf]
        %v2274 = vld [vmem:[%s2271 + $0x8] sm:$0xf]
        %v2275 = vld [vmem:[%s2271 + $0xc] sm:$0xf]
        %v2276 = vld [vmem:[%s2271 + $0x10] sm:$0xf]
        %v2277 = vld [vmem:[%s2271 + $0x14] sm:$0xf]
        %v2278 = vld [vmem:[%s2271 + $0x18] sm:$0xf]
        %v2279 = vld [vmem:[%s2271 + $0x1c] sm:$0xf]
        %v2280 = vld [vmem:[%s2271 + $0x20] sm:$0xf]
        %v2281 = vld [vmem:[%s2271 + $0x24] sm:$0xf]
        %v2282 = vld [vmem:[%s2271 + $0x28] sm:$0xf]
        %v2283 = vld [vmem:[%s2271 + $0x2c] sm:$0xf]
        %v2284 = vld [vmem:[%s2271 + $0x30] sm:$0xf]
        %v2285 = vld [vmem:[%s2271 + $0x34] sm:$0xf]
        %v2286 = vld [vmem:[%s2271 + $0x38] sm:$0xf]
        %v2287 = vld [vmem:[%s2271 + $0x3c] sm:$0xf]
        %v2289 = vshrl.u32 %v2252, 16
        %v2291 = vshll.u32 %v2252, 16
        %v2293 = vrot.slane %v2291, 1
        %v2294 = vor.u32 %v2289, %v2293
        %v2296 = vshll.u32 %v2270, 16
        %v2298 = vrot.slane %v2296, 1
        %v2299 = vsel %vm881, %v2294, %v2298
        %v2300 = vshrl.u32 %v2270, 16
        %v2302 = vor.u32 %v2300, %v2298
        %v2321 = vunpack.c.l.b16 %v2272
        %v2322 = vunpack.c.l.b16 %v2273
        %v2323 = vunpack.c.l.b16 %v2274
        %v2324 = vunpack.c.l.b16 %v2275
        %v2325 = vunpack.c.l.b16 %v2276
        %v2326 = vunpack.c.l.b16 %v2277
        %v2327 = vunpack.c.l.b16 %v2278
        %v2328 = vunpack.c.l.b16 %v2279
        %v2329 = vunpack.c.l.b16 %v2280
        %v2330 = vunpack.c.l.b16 %v2281
        %v2331 = vunpack.c.l.b16 %v2282
        %v2332 = vunpack.c.l.b16 %v2283
        %v2333 = vunpack.c.l.b16 %v2284
        %v2334 = vunpack.c.l.b16 %v2285
        %v2335 = vunpack.c.l.b16 %v2286
        %v2336 = vunpack.c.l.b16 %v2287
        %v2337 = vpack.c.b16 %v2322, %v2321
        %v2338 = vpack.c.b16 %v2324, %v2323
        %v2339 = vpack.c.b16 %v2326, %v2325
        %v2340 = vpack.c.b16 %v2328, %v2327
        %v2341 = vpack.c.b16 %v2330, %v2329
        %v2342 = vpack.c.b16 %v2332, %v2331
        %v2343 = vpack.c.b16 %v2334, %v2333
        %v2344 = vpack.c.b16 %v2336, %v2335
        %2353 = vmatprep.subr.bf16.mxu0 0
        %2354 = vmatpush1.bf16.msra.mxu0 %v2337
        %2355 = vmatprep.subr.bf16.mxu0 0
        %2356 = vmatpush1.bf16.msra.mxu0 %v2338
        %2357 = vmatprep.subr.bf16.mxu0 0
        %2358 = vmatpush1.bf16.msra.mxu0 %v2339
        %2359 = vmatprep.subr.bf16.mxu0 0
        %2360 = vmatpush1.bf16.msra.mxu0 %v2340
        %2361 = vmatprep.subr.bf16.mxu0 0
        %2362 = vmatpush1.bf16.msra.mxu0 %v2341
        %2363 = vmatprep.subr.bf16.mxu0 0
        %2364 = vmatpush1.bf16.msra.mxu0 %v2342
        %2365 = vmatprep.subr.bf16.mxu0 0
        %2366 = vmatpush1.bf16.msra.mxu0 %v2343
        %2367 = vmatprep.subr.bf16.mxu0 0
        %2368 = vmatpush1.bf16.msra.mxu0 %v2344
        %2369 = vmatprep.subr.bf16.mxu0 0
        %2370 = vmatpush1.bf16.msra.mxu0 0
        %2371 = vmatprep.subr.bf16.mxu0 0
        %2372 = vmatpush1.bf16.msra.mxu0 0
        %2373 = vmatprep.subr.bf16.mxu0 0
        %2374 = vmatpush1.bf16.msra.mxu0 0
        %2375 = vmatprep.subr.bf16.mxu0 0
        %2376 = vmatpush1.bf16.msra.mxu0 0
        %2377 = vmatprep.subr.bf16.mxu0 0
        %2378 = vmatpush1.bf16.msra.mxu0 0
        %2379 = vmatprep.subr.bf16.mxu0 0
        %2380 = vmatpush1.bf16.msra.mxu0 0
        %2381 = vmatprep.subr.bf16.mxu0 0
        %2382 = vmatpush1.bf16.msra.mxu0 0
        %2383 = vmatprep.subr.bf16.mxu0 0
        %2384 = vmatpush1.bf16.msra.mxu0 0
        %2385 = vmatprep.mubr.bf16.mxu0 0
        %2386 = vmatmul.mubr.bf16.gmra.mrb[0].mxu0 %v2299
        %v2387 = vpop.f32.mrb[0].mxu0
        %v2388 = vadd.f32 0.0, %v2387
        %v2389 = vpop.f32.mrb[0].mxu0
        %v2390 = vpop.f32.mrb[0].mxu0
        %v2391 = vadd.f32 0.0, %v2390
        %v2392 = vpop.f32.mrb[0].mxu0
        %2393 = vmatprep.mubr.bf16.mxu0 0
        %2394 = vmatmul.mubr.bf16.gmra.mrb[0].mxu0 %v2302
        %v2395 = vpop.f32.mrb[0].mxu0
        %v2396 = vadd.f32 0.0, %v2395
        %v2397 = vpop.f32.mrb[0].mxu0
        %v2398 = vpop.f32.mrb[0].mxu0
        %v2399 = vpop.f32.mrb[0].mxu0
        %2400 = vdwg.mxu0
        %v2417 = vunpack.c.l.b16 %v2254
        %v2418 = vunpack.c.l.b16 %v2255
        %v2419 = vunpack.c.l.b16 %v2256
        %v2420 = vunpack.c.l.b16 %v2257
        %v2421 = vunpack.c.l.b16 %v2258
        %v2422 = vunpack.c.l.b16 %v2259
        %v2423 = vunpack.c.l.b16 %v2260
        %v2424 = vunpack.c.l.b16 %v2261
        %v2425 = vunpack.c.l.b16 %v2262
        %v2426 = vunpack.c.l.b16 %v2263
        %v2427 = vunpack.c.l.b16 %v2264
        %v2428 = vunpack.c.l.b16 %v2265
        %v2429 = vunpack.c.l.b16 %v2266
        %v2430 = vunpack.c.l.b16 %v2267
        %v2431 = vunpack.c.l.b16 %v2268
        %v2432 = vunpack.c.l.b16 %v2269
        %v2433 = vpack.c.b16 %v2418, %v2417
        %v2434 = vpack.c.b16 %v2420, %v2419
        %v2435 = vpack.c.b16 %v2422, %v2421
        %v2436 = vpack.c.b16 %v2424, %v2423
        %v2437 = vpack.c.b16 %v2426, %v2425
        %v2438 = vpack.c.b16 %v2428, %v2427
        %v2439 = vpack.c.b16 %v2430, %v2429
        %v2440 = vpack.c.b16 %v2432, %v2431
        %2449 = vmatprep.subr.bf16.mxu0 0
        %2450 = vmatpush1.bf16.msra.mxu0 %v2433
        %2451 = vmatprep.subr.bf16.mxu0 0
        %2452 = vmatpush1.bf16.msra.mxu0 %v2434
        %2453 = vmatprep.subr.bf16.mxu0 0
        %2454 = vmatpush1.bf16.msra.mxu0 %v2435
        %2455 = vmatprep.subr.bf16.mxu0 0
        %2456 = vmatpush1.bf16.msra.mxu0 %v2436
        %2457 = vmatprep.subr.bf16.mxu0 0
        %2458 = vmatpush1.bf16.msra.mxu0 %v2437
        %2459 = vmatprep.subr.bf16.mxu0 0
        %2460 = vmatpush1.bf16.msra.mxu0 %v2438
        %2461 = vmatprep.subr.bf16.mxu0 0
        %2462 = vmatpush1.bf16.msra.mxu0 %v2439
        %2463 = vmatprep.subr.bf16.mxu0 0
        %2464 = vmatpush1.bf16.msra.mxu0 %v2440
        %2465 = vmatprep.subr.bf16.mxu0 0
        %2466 = vmatpush1.bf16.msra.mxu0 0
        %2467 = vmatprep.subr.bf16.mxu0 0
        %2468 = vmatpush1.bf16.msra.mxu0 0
        %2469 = vmatprep.subr.bf16.mxu0 0
        %2470 = vmatpush1.bf16.msra.mxu0 0
        %2471 = vmatprep.subr.bf16.mxu0 0
        %2472 = vmatpush1.bf16.msra.mxu0 0
        %2473 = vmatprep.subr.bf16.mxu0 0
        %2474 = vmatpush1.bf16.msra.mxu0 0
        %2475 = vmatprep.subr.bf16.mxu0 0
        %2476 = vmatpush1.bf16.msra.mxu0 0
        %2477 = vmatprep.subr.bf16.mxu0 0
        %2478 = vmatpush1.bf16.msra.mxu0 0
        %2479 = vmatprep.subr.bf16.mxu0 0
        %2480 = vmatpush1.bf16.msra.mxu0 0
        %2481 = vmatprep.mubr.bf16.mxu0 0
        %2482 = vmatmul.mubr.bf16.gmra.mrb[0].mxu0 %v2252
        %v2483 = vpop.f32.mrb[0].mxu0
        %v2484 = vadd.f32 %v2388, %v2483
        %v2485 = vpop.f32.mrb[0].mxu0
        %v2486 = vpop.f32.mrb[0].mxu0
        %v2487 = vadd.f32 %v2391, %v2486
        %v2488 = vpop.f32.mrb[0].mxu0
        %2489 = vmatprep.mubr.bf16.mxu0 0
        %2490 = vmatmul.mubr.bf16.gmra.mrb[0].mxu0 %v2253
        %v2491 = vpop.f32.mrb[0].mxu0
        %v2492 = vadd.f32 %v2396, %v2491
        %v2493 = vpop.f32.mrb[0].mxu0
        %v2494 = vpop.f32.mrb[0].mxu0
        %v2495 = vpop.f32.mrb[0].mxu0
        %2496 = vdwg.mxu0
        %v2497 = vld [vmem:[#allocation3] sm:$0xfe]
        %s2498 = scalar_lea.vmem [#allocation12], 128
        %v2499 = vld [vmem:[%s2498] sm:$0xf]
        %v2500 = vld [vmem:[%s2498 + $0x4] sm:$0xf]
        %v2501 = vld [vmem:[%s2498 + $0x8] sm:$0xf]
        %v2502 = vld [vmem:[%s2498 + $0xc] sm:$0xf]
        %v2503 = vld [vmem:[%s2498 + $0x10] sm:$0xf]
        %v2504 = vld [vmem:[%s2498 + $0x14] sm:$0xf]
        %v2505 = vld [vmem:[%s2498 + $0x18] sm:$0xf]
        %v2506 = vld [vmem:[%s2498 + $0x1c] sm:$0xf]
        %v2507 = vld [vmem:[%s2498 + $0x20] sm:$0xf]
        %v2508 = vld [vmem:[%s2498 + $0x24] sm:$0xf]
        %v2509 = vld [vmem:[%s2498 + $0x28] sm:$0xf]
        %v2510 = vld [vmem:[%s2498 + $0x2c] sm:$0xf]
        %v2511 = vld [vmem:[%s2498 + $0x30] sm:$0xf]
        %v2512 = vld [vmem:[%s2498 + $0x34] sm:$0xf]
        %v2513 = vld [vmem:[%s2498 + $0x38] sm:$0xf]
        %v2514 = vld [vmem:[%s2498 + $0x3c] sm:$0xf]
        %v2517 = vrot.slane %v2497, 1
        %v2518 = vrot.slane %v2270, 1
        %v2519 = vsel %vm1121, %v2517, %v2518
        %v2538 = vunpack.c.l.b16 %v2499
        %v2539 = vunpack.c.l.b16 %v2500
        %v2540 = vunpack.c.l.b16 %v2501
        %v2541 = vunpack.c.l.b16 %v2502
        %v2542 = vunpack.c.l.b16 %v2503
        %v2543 = vunpack.c.l.b16 %v2504
        %v2544 = vunpack.c.l.b16 %v2505
        %v2545 = vunpack.c.l.b16 %v2506
        %v2546 = vunpack.c.l.b16 %v2507
        %v2547 = vunpack.c.l.b16 %v2508
        %v2548 = vunpack.c.l.b16 %v2509
        %v2549 = vunpack.c.l.b16 %v2510
        %v2550 = vunpack.c.l.b16 %v2511
        %v2551 = vunpack.c.l.b16 %v2512
        %v2552 = vunpack.c.l.b16 %v2513
        %v2553 = vunpack.c.l.b16 %v2514
        %v2554 = vpack.c.b16 %v2539, %v2538
        %v2555 = vpack.c.b16 %v2541, %v2540
        %v2556 = vpack.c.b16 %v2543, %v2542
        %v2557 = vpack.c.b16 %v2545, %v2544
        %v2558 = vpack.c.b16 %v2547, %v2546
        %v2559 = vpack.c.b16 %v2549, %v2548
        %v2560 = vpack.c.b16 %v2551, %v2550
        %v2561 = vpack.c.b16 %v2553, %v2552
        %2570 = vmatprep.subr.bf16.mxu0 0
        %2571 = vmatpush1.bf16.msra.mxu0 %v2554
        %2572 = vmatprep.subr.bf16.mxu0 0
        %2573 = vmatpush1.bf16.msra.mxu0 %v2555
        %2574 = vmatprep.subr.bf16.mxu0 0
        %2575 = vmatpush1.bf16.msra.mxu0 %v2556
        %2576 = vmatprep.subr.bf16.mxu0 0
        %2577 = vmatpush1.bf16.msra.mxu0 %v2557
        %2578 = vmatprep.subr.bf16.mxu0 0
        %2579 = vmatpush1.bf16.msra.mxu0 %v2558
        %2580 = vmatprep.subr.bf16.mxu0 0
        %2581 = vmatpush1.bf16.msra.mxu0 %v2559
        %2582 = vmatprep.subr.bf16.mxu0 0
        %2583 = vmatpush1.bf16.msra.mxu0 %v2560
        %2584 = vmatprep.subr.bf16.mxu0 0
        %2585 = vmatpush1.bf16.msra.mxu0 %v2561
        %2586 = vmatprep.subr.bf16.mxu0 0
        %2587 = vmatpush1.bf16.msra.mxu0 0
        %2588 = vmatprep.subr.bf16.mxu0 0
        %2589 = vmatpush1.bf16.msra.mxu0 0
        %2590 = vmatprep.subr.bf16.mxu0 0
        %2591 = vmatpush1.bf16.msra.mxu0 0
        %2592 = vmatprep.subr.bf16.mxu0 0
        %2593 = vmatpush1.bf16.msra.mxu0 0
        %2594 = vmatprep.subr.bf16.mxu0 0
        %2595 = vmatpush1.bf16.msra.mxu0 0
        %2596 = vmatprep.subr.bf16.mxu0 0
        %2597 = vmatpush1.bf16.msra.mxu0 0
        %2598 = vmatprep.subr.bf16.mxu0 0
        %2599 = vmatpush1.bf16.msra.mxu0 0
        %2600 = vmatprep.subr.bf16.mxu0 0
        %2601 = vmatpush1.bf16.msra.mxu0 0
        %2602 = vmatprep.mubr.bf16.mxu0 0
        %2603 = vmatmul.mubr.bf16.gmra.mrb[0].mxu0 %v2519
        %v2604 = vpop.f32.mrb[0].mxu0
        %v2605 = vadd.f32 0.0, %v2604
        %v2606 = vpop.f32.mrb[0].mxu0
        %v2607 = vpop.f32.mrb[0].mxu0
        %v2608 = vadd.f32 0.0, %v2607
        %v2609 = vpop.f32.mrb[0].mxu0
        %2610 = vmatprep.mubr.bf16.mxu0 0
        %2611 = vmatmul.mubr.bf16.gmra.mrb[0].mxu0 %v2518
        %v2612 = vpop.f32.mrb[0].mxu0
        %v2613 = vadd.f32 0.0, %v2612
        %v2614 = vpop.f32.mrb[0].mxu0
        %v2615 = vpop.f32.mrb[0].mxu0
        %v2616 = vpop.f32.mrb[0].mxu0
        %2617 = vdwg.mxu0
        %v2618 = vadd.f32 %v2484, %v2605
        %v2619 = vadd.f32 %v2487, %v2608
        %v2620 = vadd.f32 %v2492, %v2613
        %v2621 = vld [vmem:[#allocation3 + $0x8] sm:$0x3f]
        %s2622 = scalar_lea.vmem [#allocation12], 192
        %v2623 = vld [vmem:[%s2622] sm:$0xf]
        %v2624 = vld [vmem:[%s2622 + $0x4] sm:$0xf]
        %v2625 = vld [vmem:[%s2622 + $0x8] sm:$0xf]
        %v2626 = vld [vmem:[%s2622 + $0xc] sm:$0xf]
        %v2627 = vld [vmem:[%s2622 + $0x10] sm:$0xf]
        %v2628 = vld [vmem:[%s2622 + $0x14] sm:$0xf]
        %v2629 = vld [vmem:[%s2622 + $0x18] sm:$0xf]
        %v2630 = vld [vmem:[%s2622 + $0x1c] sm:$0xf]
        %v2631 = vld [vmem:[%s2622 + $0x20] sm:$0xf]
        %v2632 = vld [vmem:[%s2622 + $0x24] sm:$0xf]
        %v2633 = vld [vmem:[%s2622 + $0x28] sm:$0xf]
        %v2634 = vld [vmem:[%s2622 + $0x2c] sm:$0xf]
        %v2635 = vld [vmem:[%s2622 + $0x30] sm:$0xf]
        %v2636 = vld [vmem:[%s2622 + $0x34] sm:$0xf]
        %v2637 = vld [vmem:[%s2622 + $0x38] sm:$0xf]
        %v2638 = vld [vmem:[%s2622 + $0x3c] sm:$0xf]
        %v2640 = vshrl.u32 %v2497, 16
        %v2642 = vrot.slane %v2640, 1
        %v2643 = vshll.u32 %v2497, 16
        %v2645 = vrot.slane %v2643, 2
        %v2646 = vor.u32 %v2642, %v2645
        %v2648 = vshrl.u32 %v2621, 16
        %v2650 = vrot.slane %v2648, 1
        %v2651 = vshll.u32 %v2621, 16
        %v2653 = vrot.slane %v2651, 2
        %v2654 = vor.u32 %v2650, %v2653
        %v2655 = vsel %vm1251, %v2646, %v2654
        %v2674 = vunpack.c.l.b16 %v2623
        %v2675 = vunpack.c.l.b16 %v2624
        %v2676 = vunpack.c.l.b16 %v2625
        %v2677 = vunpack.c.l.b16 %v2626
        %v2678 = vunpack.c.l.b16 %v2627
        %v2679 = vunpack.c.l.b16 %v2628
        %v2680 = vunpack.c.l.b16 %v2629
        %v2681 = vunpack.c.l.b16 %v2630
        %v2682 = vunpack.c.l.b16 %v2631
        %v2683 = vunpack.c.l.b16 %v2632
        %v2684 = vunpack.c.l.b16 %v2633
        %v2685 = vunpack.c.l.b16 %v2634
        %v2686 = vunpack.c.l.b16 %v2635
        %v2687 = vunpack.c.l.b16 %v2636
        %v2688 = vunpack.c.l.b16 %v2637
        %v2689 = vunpack.c.l.b16 %v2638
        %v2690 = vpack.c.b16 %v2675, %v2674
        %v2691 = vpack.c.b16 %v2677, %v2676
        %v2692 = vpack.c.b16 %v2679, %v2678
        %v2693 = vpack.c.b16 %v2681, %v2680
        %v2694 = vpack.c.b16 %v2683, %v2682
        %v2695 = vpack.c.b16 %v2685, %v2684
        %v2696 = vpack.c.b16 %v2687, %v2686
        %v2697 = vpack.c.b16 %v2689, %v2688
        %2706 = vmatprep.subr.bf16.mxu0 0
        %2707 = vmatpush1.bf16.msra.mxu0 %v2690
        %2708 = vmatprep.subr.bf16.mxu0 0
        %2709 = vmatpush1.bf16.msra.mxu0 %v2691
        %2710 = vmatprep.subr.bf16.mxu0 0
        %2711 = vmatpush1.bf16.msra.mxu0 %v2692
        %2712 = vmatprep.subr.bf16.mxu0 0
        %2713 = vmatpush1.bf16.msra.mxu0 %v2693
        %2714 = vmatprep.subr.bf16.mxu0 0
        %2715 = vmatpush1.bf16.msra.mxu0 %v2694
        %2716 = vmatprep.subr.bf16.mxu0 0
        %2717 = vmatpush1.bf16.msra.mxu0 %v2695
        %2718 = vmatprep.subr.bf16.mxu0 0
        %2719 = vmatpush1.bf16.msra.mxu0 %v2696
        %2720 = vmatprep.subr.bf16.mxu0 0
        %2721 = vmatpush1.bf16.msra.mxu0 %v2697
        %2722 = vmatprep.subr.bf16.mxu0 0
        %2723 = vmatpush1.bf16.msra.mxu0 0
        %2724 = vmatprep.subr.bf16.mxu0 0
        %2725 = vmatpush1.bf16.msra.mxu0 0
        %2726 = vmatprep.subr.bf16.mxu0 0
        %2727 = vmatpush1.bf16.msra.mxu0 0
        %2728 = vmatprep.subr.bf16.mxu0 0
        %2729 = vmatpush1.bf16.msra.mxu0 0
        %2730 = vmatprep.subr.bf16.mxu0 0
        %2731 = vmatpush1.bf16.msra.mxu0 0
        %2732 = vmatprep.subr.bf16.mxu0 0
        %2733 = vmatpush1.bf16.msra.mxu0 0
        %2734 = vmatprep.subr.bf16.mxu0 0
        %2735 = vmatpush1.bf16.msra.mxu0 0
        %2736 = vmatprep.subr.bf16.mxu0 0
        %2737 = vmatpush1.bf16.msra.mxu0 0
        %2738 = vmatprep.mubr.bf16.mxu0 0
        %2739 = vmatmul.mubr.bf16.gmra.mrb[0].mxu0 %v2655
        %v2740 = vpop.f32.mrb[0].mxu0
        %v2741 = vadd.f32 0.0, %v2740
        %v2742 = vpop.f32.mrb[0].mxu0
        %v2743 = vpop.f32.mrb[0].mxu0
        %v2744 = vadd.f32 0.0, %v2743
        %v2745 = vpop.f32.mrb[0].mxu0
        %2746 = vmatprep.mubr.bf16.mxu0 0
        %2747 = vmatmul.mubr.bf16.gmra.mrb[0].mxu0 %v2654
        %v2748 = vpop.f32.mrb[0].mxu0
        %v2749 = vadd.f32 0.0, %v2748
        %v2750 = vpop.f32.mrb[0].mxu0
        %v2751 = vpop.f32.mrb[0].mxu0
        %v2752 = vpop.f32.mrb[0].mxu0
        %2753 = vdwg.mxu0
        %v2754 = vadd.f32 %v2618, %v2741
        %v2755 = vadd.f32 %v2619, %v2744
        %v2756 = vadd.f32 %v2620, %v2749
        %v2757 = vld [vmem:[#allocation3] sm:$0xfc]
        %s2758 = scalar_lea.vmem [#allocation12], 256
        %v2759 = vld [vmem:[%s2758] sm:$0xf]
        %v2760 = vld [vmem:[%s2758 + $0x4] sm:$0xf]
        %v2761 = vld [vmem:[%s2758 + $0x8] sm:$0xf]
        %v2762 = vld [vmem:[%s2758 + $0xc] sm:$0xf]
        %v2763 = vld [vmem:[%s2758 + $0x10] sm:$0xf]
        %v2764 = vld [vmem:[%s2758 + $0x14] sm:$0xf]
        %v2765 = vld [vmem:[%s2758 + $0x18] sm:$0xf]
        %v2766 = vld [vmem:[%s2758 + $0x1c] sm:$0xf]
        %v2767 = vld [vmem:[%s2758 + $0x20] sm:$0xf]
        %v2768 = vld [vmem:[%s2758 + $0x24] sm:$0xf]
        %v2769 = vld [vmem:[%s2758 + $0x28] sm:$0xf]
        %v2770 = vld [vmem:[%s2758 + $0x2c] sm:$0xf]
        %v2771 = vld [vmem:[%s2758 + $0x30] sm:$0xf]
        %v2772 = vld [vmem:[%s2758 + $0x34] sm:$0xf]
        %v2773 = vld [vmem:[%s2758 + $0x38] sm:$0xf]
        %v2774 = vld [vmem:[%s2758 + $0x3c] sm:$0xf]
        %v2777 = vrot.slane %v2757, 2
        %v2778 = vrot.slane %v2621, 2
        %v2779 = vsel %vm1397, %v2777, %v2778
        %v2798 = vunpack.c.l.b16 %v2759
        %v2799 = vunpack.c.l.b16 %v2760
        %v2800 = vunpack.c.l.b16 %v2761
        %v2801 = vunpack.c.l.b16 %v2762
        %v2802 = vunpack.c.l.b16 %v2763
        %v2803 = vunpack.c.l.b16 %v2764
        %v2804 = vunpack.c.l.b16 %v2765
        %v2805 = vunpack.c.l.b16 %v2766
        %v2806 = vunpack.c.l.b16 %v2767
        %v2807 = vunpack.c.l.b16 %v2768
        %v2808 = vunpack.c.l.b16 %v2769
        %v2809 = vunpack.c.l.b16 %v2770
        %v2810 = vunpack.c.l.b16 %v2771
        %v2811 = vunpack.c.l.b16 %v2772
        %v2812 = vunpack.c.l.b16 %v2773
        %v2813 = vunpack.c.l.b16 %v2774
        %v2814 = vpack.c.b16 %v2799, %v2798
        %v2815 = vpack.c.b16 %v2801, %v2800
        %v2816 = vpack.c.b16 %v2803, %v2802
        %v2817 = vpack.c.b16 %v2805, %v2804
        %v2818 = vpack.c.b16 %v2807, %v2806
        %v2819 = vpack.c.b16 %v2809, %v2808
        %v2820 = vpack.c.b16 %v2811, %v2810
        %v2821 = vpack.c.b16 %v2813, %v2812
        %2830 = vmatprep.subr.bf16.mxu0 0
        %2831 = vmatpush1.bf16.msra.mxu0 %v2814
        %2832 = vmatprep.subr.bf16.mxu0 0
        %2833 = vmatpush1.bf16.msra.mxu0 %v2815
        %2834 = vmatprep.subr.bf16.mxu0 0
        %2835 = vmatpush1.bf16.msra.mxu0 %v2816
        %2836 = vmatprep.subr.bf16.mxu0 0
        %2837 = vmatpush1.bf16.msra.mxu0 %v2817
        %2838 = vmatprep.subr.bf16.mxu0 0
        %2839 = vmatpush1.bf16.msra.mxu0 %v2818
        %2840 = vmatprep.subr.bf16.mxu0 0
        %2841 = vmatpush1.bf16.msra.mxu0 %v2819
        %2842 = vmatprep.subr.bf16.mxu0 0
        %2843 = vmatpush1.bf16.msra.mxu0 %v2820
        %2844 = vmatprep.subr.bf16.mxu0 0
        %2845 = vmatpush1.bf16.msra.mxu0 %v2821
        %2846 = vmatprep.subr.bf16.mxu0 0
        %2847 = vmatpush1.bf16.msra.mxu0 0
        %2848 = vmatprep.subr.bf16.mxu0 0
        %2849 = vmatpush1.bf16.msra.mxu0 0
        %2850 = vmatprep.subr.bf16.mxu0 0
        %2851 = vmatpush1.bf16.msra.mxu0 0
        %2852 = vmatprep.subr.bf16.mxu0 0
        %2853 = vmatpush1.bf16.msra.mxu0 0
        %2854 = vmatprep.subr.bf16.mxu0 0
        %2855 = vmatpush1.bf16.msra.mxu0 0
        %2856 = vmatprep.subr.bf16.mxu0 0
        %2857 = vmatpush1.bf16.msra.mxu0 0
        %2858 = vmatprep.subr.bf16.mxu0 0
        %2859 = vmatpush1.bf16.msra.mxu0 0
        %2860 = vmatprep.subr.bf16.mxu0 0
        %2861 = vmatpush1.bf16.msra.mxu0 0
        %2862 = vmatprep.mubr.bf16.mxu0 0
        %2863 = vmatmul.mubr.bf16.gmra.mrb[0].mxu0 %v2779
        %v2864 = vpop.f32.mrb[0].mxu0
        %v2865 = vadd.f32 0.0, %v2864
        %v2866 = vpop.f32.mrb[0].mxu0
        %v2867 = vpop.f32.mrb[0].mxu0
        %v2868 = vadd.f32 0.0, %v2867
        %v2869 = vpop.f32.mrb[0].mxu0
        %2870 = vmatprep.mubr.bf16.mxu0 0
        %2871 = vmatmul.mubr.bf16.gmra.mrb[0].mxu0 %v2778
        %v2872 = vpop.f32.mrb[0].mxu0
        %v2873 = vadd.f32 0.0, %v2872
        %v2874 = vpop.f32.mrb[0].mxu0
        %v2875 = vpop.f32.mrb[0].mxu0
        %v2876 = vpop.f32.mrb[0].mxu0
        %2877 = vdwg.mxu0
        %v2878 = vadd.f32 %v2754, %v2865
        %v2879 = vadd.f32 %v2755, %v2868
        %v2880 = vadd.f32 %v2756, %v2873
        %v2881 = vld [vmem:[#allocation19] sm:$0x1]
        %v2883 = vlaneseq
        %v2884 = vshrl.u32 %v2883, 7
        %v2885 = vsub.s32 0, %v2884
        %v2886 = vrot.slane %v2881, %v2885
        %v2888 = vmul.f32 %v2878, %v2886
        %v2889 = vmul.f32 %v2879, %v2886
        %v2890 = vmul.f32 %v2880, %v2886
        %v2891 = vld [vmem:[#allocation27] sm:$0x1]
        %v2893 = vlaneseq
        %v2894 = vshrl.u32 %v2893, 7
        %v2895 = vsub.s32 0, %v2894
        %v2896 = vrot.slane %v2891, %v2895
        %v2898 = vadd.f32 %v2888, %v2896
        %v2899 = vadd.f32 %v2889, %v2896
        %v2900 = vadd.f32 %v2890, %v2896
        %v2901 = vtanh.pop %v2898
        %v2902 = vtanh.pop %v2899
        %v2903 = vtanh.pop %v2900
        %s2904 = ssub.s32 %s829, 4
        %v2905 = vstv %s2904
        %v2906 = vadd.s32 %v2905, %v1534
        %v2907 = vadd.s32 %v2905, %v1535
        %v2908 = vadd.s32 %v2905, %v1536
        %vm2909 = vcmp.ge.s32.totalorder %v2906, 0
        %vm2910 = vcmp.ge.s32.totalorder %v2907, 0
        %vm2911 = vcmp.ge.s32.totalorder %v2908, 0
        %vm2912 = vcmp.lt.s32.totalorder %v2906, 16
        %vm2913 = vcmp.lt.s32.totalorder %v2907, 16
        %vm2914 = vcmp.lt.s32.totalorder %v2908, 16
        %vm2915 = vmand %vm2909, %vm2912
        %vm2916 = vmand %vm2910, %vm2913
        %vm2917 = vmand %vm2911, %vm2914
        %v2918 = vsel %vm2915, %v2901, 0.0
        %v2919 = vsel %vm2916, %v2902, 0.0
        %v2920 = vsel %vm2917, %v2903, 0.0
        %v2921 = vpack.c.bf16 %v2919, %v2918
        %v2922 = vpack.c.bf16 %v2920, %v2920
        %2923 = vst [vmem:[#allocation2] sm:$0xff] %v2921
        %2924 = vst [vmem:[#allocation2 + $0x8] sm:$0xf] %v2922
        %v2925 = vld [vmem:[#allocation2] sm:$0xff]
        %v2926 = vld [vmem:[#allocation2 + $0x8] sm:$0x3]
        %v2927 = vld [vmem:[#allocation13] sm:$0xf]
        %v2928 = vld [vmem:[#allocation13 + $0x4] sm:$0xf]
        %v2929 = vld [vmem:[#allocation13 + $0x8] sm:$0xf]
        %v2930 = vld [vmem:[#allocation13 + $0xc] sm:$0xf]
        %v2931 = vld [vmem:[#allocation13 + $0x10] sm:$0xf]
        %v2932 = vld [vmem:[#allocation13 + $0x14] sm:$0xf]
        %v2933 = vld [vmem:[#allocation13 + $0x18] sm:$0xf]
        %v2934 = vld [vmem:[#allocation13 + $0x1c] sm:$0xf]
        %v2935 = vld [vmem:[#allocation13 + $0x20] sm:$0xf]
        %v2936 = vld [vmem:[#allocation13 + $0x24] sm:$0xf]
        %v2937 = vld [vmem:[#allocation13 + $0x28] sm:$0xf]
        %v2938 = vld [vmem:[#allocation13 + $0x2c] sm:$0xf]
        %v2939 = vld [vmem:[#allocation13 + $0x30] sm:$0xf]
        %v2940 = vld [vmem:[#allocation13 + $0x34] sm:$0xf]
        %v2941 = vld [vmem:[#allocation13 + $0x38] sm:$0xf]
        %v2942 = vld [vmem:[#allocation13 + $0x3c] sm:$0xf]
        %v2943 = vld [vmem:[#allocation2 + $0x8] sm:$0x7]
        %s2944 = scalar_lea.vmem [#allocation13], 64
        %v2945 = vld [vmem:[%s2944] sm:$0xf]
        %v2946 = vld [vmem:[%s2944 + $0x4] sm:$0xf]
        %v2947 = vld [vmem:[%s2944 + $0x8] sm:$0xf]
        %v2948 = vld [vmem:[%s2944 + $0xc] sm:$0xf]
        %v2949 = vld [vmem:[%s2944 + $0x10] sm:$0xf]
        %v2950 = vld [vmem:[%s2944 + $0x14] sm:$0xf]
        %v2951 = vld [vmem:[%s2944 + $0x18] sm:$0xf]
        %v2952 = vld [vmem:[%s2944 + $0x1c] sm:$0xf]
        %v2953 = vld [vmem:[%s2944 + $0x20] sm:$0xf]
        %v2954 = vld [vmem:[%s2944 + $0x24] sm:$0xf]
        %v2955 = vld [vmem:[%s2944 + $0x28] sm:$0xf]
        %v2956 = vld [vmem:[%s2944 + $0x2c] sm:$0xf]
        %v2957 = vld [vmem:[%s2944 + $0x30] sm:$0xf]
        %v2958 = vld [vmem:[%s2944 + $0x34] sm:$0xf]
        %v2959 = vld [vmem:[%s2944 + $0x38] sm:$0xf]
        %v2960 = vld [vmem:[%s2944 + $0x3c] sm:$0xf]
        %v2962 = vshrl.u32 %v2925, 16
        %v2964 = vshll.u32 %v2925, 16
        %v2966 = vrot.slane %v2964, 1
        %v2967 = vor.u32 %v2962, %v2966
        %v2969 = vshll.u32 %v2943, 16
        %v2971 = vrot.slane %v2969, 1
        %v2972 = vsel %vm881, %v2967, %v2971
        %v2973 = vshrl.u32 %v2943, 16
        %v2975 = vor.u32 %v2973, %v2971
        %v2994 = vunpack.c.l.b16 %v2945
        %v2995 = vunpack.c.l.b16 %v2946
        %v2996 = vunpack.c.l.b16 %v2947
        %v2997 = vunpack.c.l.b16 %v2948
        %v2998 = vunpack.c.l.b16 %v2949
        %v2999 = vunpack.c.l.b16 %v2950
        %v3000 = vunpack.c.l.b16 %v2951
        %v3001 = vunpack.c.l.b16 %v2952
        %v3002 = vunpack.c.l.b16 %v2953
        %v3003 = vunpack.c.l.b16 %v2954
        %v3004 = vunpack.c.l.b16 %v2955
        %v3005 = vunpack.c.l.b16 %v2956
        %v3006 = vunpack.c.l.b16 %v2957
        %v3007 = vunpack.c.l.b16 %v2958
        %v3008 = vunpack.c.l.b16 %v2959
        %v3009 = vunpack.c.l.b16 %v2960
        %v3010 = vpack.c.b16 %v2995, %v2994
        %v3011 = vpack.c.b16 %v2997, %v2996
        %v3012 = vpack.c.b16 %v2999, %v2998
        %v3013 = vpack.c.b16 %v3001, %v3000
        %v3014 = vpack.c.b16 %v3003, %v3002
        %v3015 = vpack.c.b16 %v3005, %v3004
        %v3016 = vpack.c.b16 %v3007, %v3006
        %v3017 = vpack.c.b16 %v3009, %v3008
        %3026 = vmatprep.subr.bf16.mxu0 0
        %3027 = vmatpush1.bf16.msra.mxu0 %v3010
        %3028 = vmatprep.subr.bf16.mxu0 0
        %3029 = vmatpush1.bf16.msra.mxu0 %v3011
        %3030 = vmatprep.subr.bf16.mxu0 0
        %3031 = vmatpush1.bf16.msra.mxu0 %v3012
        %3032 = vmatprep.subr.bf16.mxu0 0
        %3033 = vmatpush1.bf16.msra.mxu0 %v3013
        %3034 = vmatprep.subr.bf16.mxu0 0
        %3035 = vmatpush1.bf16.msra.mxu0 %v3014
        %3036 = vmatprep.subr.bf16.mxu0 0
        %3037 = vmatpush1.bf16.msra.mxu0 %v3015
        %3038 = vmatprep.subr.bf16.mxu0 0
        %3039 = vmatpush1.bf16.msra.mxu0 %v3016
        %3040 = vmatprep.subr.bf16.mxu0 0
        %3041 = vmatpush1.bf16.msra.mxu0 %v3017
        %3042 = vmatprep.subr.bf16.mxu0 0
        %3043 = vmatpush1.bf16.msra.mxu0 0
        %3044 = vmatprep.subr.bf16.mxu0 0
        %3045 = vmatpush1.bf16.msra.mxu0 0
        %3046 = vmatprep.subr.bf16.mxu0 0
        %3047 = vmatpush1.bf16.msra.mxu0 0
        %3048 = vmatprep.subr.bf16.mxu0 0
        %3049 = vmatpush1.bf16.msra.mxu0 0
        %3050 = vmatprep.subr.bf16.mxu0 0
        %3051 = vmatpush1.bf16.msra.mxu0 0
        %3052 = vmatprep.subr.bf16.mxu0 0
        %3053 = vmatpush1.bf16.msra.mxu0 0
        %3054 = vmatprep.subr.bf16.mxu0 0
        %3055 = vmatpush1.bf16.msra.mxu0 0
        %3056 = vmatprep.subr.bf16.mxu0 0
        %3057 = vmatpush1.bf16.msra.mxu0 0
        %3058 = vmatprep.mubr.bf16.mxu0 0
        %3059 = vmatmul.mubr.bf16.gmra.mrb[0].mxu0 %v2972
        %v3060 = vpop.f32.mrb[0].mxu0
        %v3061 = vadd.f32 0.0, %v3060
        %v3062 = vpop.f32.mrb[0].mxu0
        %v3063 = vpop.f32.mrb[0].mxu0
        %v3064 = vadd.f32 0.0, %v3063
        %v3065 = vpop.f32.mrb[0].mxu0
        %3066 = vmatprep.mubr.bf16.mxu0 0
        %3067 = vmatmul.mubr.bf16.gmra.mrb[0].mxu0 %v2975
        %v3068 = vpop.f32.mrb[0].mxu0
        %v3069 = vadd.f32 0.0, %v3068
        %v3070 = vpop.f32.mrb[0].mxu0
        %v3071 = vpop.f32.mrb[0].mxu0
        %v3072 = vpop.f32.mrb[0].mxu0
        %3073 = vdwg.mxu0
        %v3090 = vunpack.c.l.b16 %v2927
        %v3091 = vunpack.c.l.b16 %v2928
        %v3092 = vunpack.c.l.b16 %v2929
        %v3093 = vunpack.c.l.b16 %v2930
        %v3094 = vunpack.c.l.b16 %v2931
        %v3095 = vunpack.c.l.b16 %v2932
        %v3096 = vunpack.c.l.b16 %v2933
        %v3097 = vunpack.c.l.b16 %v2934
        %v3098 = vunpack.c.l.b16 %v2935
        %v3099 = vunpack.c.l.b16 %v2936
        %v3100 = vunpack.c.l.b16 %v2937
        %v3101 = vunpack.c.l.b16 %v2938
        %v3102 = vunpack.c.l.b16 %v2939
        %v3103 = vunpack.c.l.b16 %v2940
        %v3104 = vunpack.c.l.b16 %v2941
        %v3105 = vunpack.c.l.b16 %v2942
        %v3106 = vpack.c.b16 %v3091, %v3090
        %v3107 = vpack.c.b16 %v3093, %v3092
        %v3108 = vpack.c.b16 %v3095, %v3094
        %v3109 = vpack.c.b16 %v3097, %v3096
        %v3110 = vpack.c.b16 %v3099, %v3098
        %v3111 = vpack.c.b16 %v3101, %v3100
        %v3112 = vpack.c.b16 %v3103, %v3102
        %v3113 = vpack.c.b16 %v3105, %v3104
        %3122 = vmatprep.subr.bf16.mxu0 0
        %3123 = vmatpush1.bf16.msra.mxu0 %v3106
        %3124 = vmatprep.subr.bf16.mxu0 0
        %3125 = vmatpush1.bf16.msra.mxu0 %v3107
        %3126 = vmatprep.subr.bf16.mxu0 0
        %3127 = vmatpush1.bf16.msra.mxu0 %v3108
        %3128 = vmatprep.subr.bf16.mxu0 0
        %3129 = vmatpush1.bf16.msra.mxu0 %v3109
        %3130 = vmatprep.subr.bf16.mxu0 0
        %3131 = vmatpush1.bf16.msra.mxu0 %v3110
        %3132 = vmatprep.subr.bf16.mxu0 0
        %3133 = vmatpush1.bf16.msra.mxu0 %v3111
        %3134 = vmatprep.subr.bf16.mxu0 0
        %3135 = vmatpush1.bf16.msra.mxu0 %v3112
        %3136 = vmatprep.subr.bf16.mxu0 0
        %3137 = vmatpush1.bf16.msra.mxu0 %v3113
        %3138 = vmatprep.subr.bf16.mxu0 0
        %3139 = vmatpush1.bf16.msra.mxu0 0
        %3140 = vmatprep.subr.bf16.mxu0 0
        %3141 = vmatpush1.bf16.msra.mxu0 0
        %3142 = vmatprep.subr.bf16.mxu0 0
        %3143 = vmatpush1.bf16.msra.mxu0 0
        %3144 = vmatprep.subr.bf16.mxu0 0
        %3145 = vmatpush1.bf16.msra.mxu0 0
        %3146 = vmatprep.subr.bf16.mxu0 0
        %3147 = vmatpush1.bf16.msra.mxu0 0
        %3148 = vmatprep.subr.bf16.mxu0 0
        %3149 = vmatpush1.bf16.msra.mxu0 0
        %3150 = vmatprep.subr.bf16.mxu0 0
        %3151 = vmatpush1.bf16.msra.mxu0 0
        %3152 = vmatprep.subr.bf16.mxu0 0
        %3153 = vmatpush1.bf16.msra.mxu0 0
        %3154 = vmatprep.mubr.bf16.mxu0 0
        %3155 = vmatmul.mubr.bf16.gmra.mrb[0].mxu0 %v2925
        %v3156 = vpop.f32.mrb[0].mxu0
        %v3157 = vadd.f32 %v3061, %v3156
        %v3158 = vpop.f32.mrb[0].mxu0
        %v3159 = vpop.f32.mrb[0].mxu0
        %v3160 = vadd.f32 %v3064, %v3159
        %v3161 = vpop.f32.mrb[0].mxu0
        %3162 = vmatprep.mubr.bf16.mxu0 0
        %3163 = vmatmul.mubr.bf16.gmra.mrb[0].mxu0 %v2926
        %v3164 = vpop.f32.mrb[0].mxu0
        %v3165 = vadd.f32 %v3069, %v3164
        %v3166 = vpop.f32.mrb[0].mxu0
        %v3167 = vpop.f32.mrb[0].mxu0
        %v3168 = vpop.f32.mrb[0].mxu0
        %3169 = vdwg.mxu0
        %v3170 = vld [vmem:[#allocation2] sm:$0xfe]
        %s3171 = scalar_lea.vmem [#allocation13], 128
        %v3172 = vld [vmem:[%s3171] sm:$0xf]
        %v3173 = vld [vmem:[%s3171 + $0x4] sm:$0xf]
        %v3174 = vld [vmem:[%s3171 + $0x8] sm:$0xf]
        %v3175 = vld [vmem:[%s3171 + $0xc] sm:$0xf]
        %v3176 = vld [vmem:[%s3171 + $0x10] sm:$0xf]
        %v3177 = vld [vmem:[%s3171 + $0x14] sm:$0xf]
        %v3178 = vld [vmem:[%s3171 + $0x18] sm:$0xf]
        %v3179 = vld [vmem:[%s3171 + $0x1c] sm:$0xf]
        %v3180 = vld [vmem:[%s3171 + $0x20] sm:$0xf]
        %v3181 = vld [vmem:[%s3171 + $0x24] sm:$0xf]
        %v3182 = vld [vmem:[%s3171 + $0x28] sm:$0xf]
        %v3183 = vld [vmem:[%s3171 + $0x2c] sm:$0xf]
        %v3184 = vld [vmem:[%s3171 + $0x30] sm:$0xf]
        %v3185 = vld [vmem:[%s3171 + $0x34] sm:$0xf]
        %v3186 = vld [vmem:[%s3171 + $0x38] sm:$0xf]
        %v3187 = vld [vmem:[%s3171 + $0x3c] sm:$0xf]
        %v3190 = vrot.slane %v3170, 1
        %v3191 = vrot.slane %v2943, 1
        %v3192 = vsel %vm1121, %v3190, %v3191
        %v3211 = vunpack.c.l.b16 %v3172
        %v3212 = vunpack.c.l.b16 %v3173
        %v3213 = vunpack.c.l.b16 %v3174
        %v3214 = vunpack.c.l.b16 %v3175
        %v3215 = vunpack.c.l.b16 %v3176
        %v3216 = vunpack.c.l.b16 %v3177
        %v3217 = vunpack.c.l.b16 %v3178
        %v3218 = vunpack.c.l.b16 %v3179
        %v3219 = vunpack.c.l.b16 %v3180
        %v3220 = vunpack.c.l.b16 %v3181
        %v3221 = vunpack.c.l.b16 %v3182
        %v3222 = vunpack.c.l.b16 %v3183
        %v3223 = vunpack.c.l.b16 %v3184
        %v3224 = vunpack.c.l.b16 %v3185
        %v3225 = vunpack.c.l.b16 %v3186
        %v3226 = vunpack.c.l.b16 %v3187
        %v3227 = vpack.c.b16 %v3212, %v3211
        %v3228 = vpack.c.b16 %v3214, %v3213
        %v3229 = vpack.c.b16 %v3216, %v3215
        %v3230 = vpack.c.b16 %v3218, %v3217
        %v3231 = vpack.c.b16 %v3220, %v3219
        %v3232 = vpack.c.b16 %v3222, %v3221
        %v3233 = vpack.c.b16 %v3224, %v3223
        %v3234 = vpack.c.b16 %v3226, %v3225
        %3243 = vmatprep.subr.bf16.mxu0 0
        %3244 = vmatpush1.bf16.msra.mxu0 %v3227
        %3245 = vmatprep.subr.bf16.mxu0 0
        %3246 = vmatpush1.bf16.msra.mxu0 %v3228
        %3247 = vmatprep.subr.bf16.mxu0 0
        %3248 = vmatpush1.bf16.msra.mxu0 %v3229
        %3249 = vmatprep.subr.bf16.mxu0 0
        %3250 = vmatpush1.bf16.msra.mxu0 %v3230
        %3251 = vmatprep.subr.bf16.mxu0 0
        %3252 = vmatpush1.bf16.msra.mxu0 %v3231
        %3253 = vmatprep.subr.bf16.mxu0 0
        %3254 = vmatpush1.bf16.msra.mxu0 %v3232
        %3255 = vmatprep.subr.bf16.mxu0 0
        %3256 = vmatpush1.bf16.msra.mxu0 %v3233
        %3257 = vmatprep.subr.bf16.mxu0 0
        %3258 = vmatpush1.bf16.msra.mxu0 %v3234
        %3259 = vmatprep.subr.bf16.mxu0 0
        %3260 = vmatpush1.bf16.msra.mxu0 0
        %3261 = vmatprep.subr.bf16.mxu0 0
        %3262 = vmatpush1.bf16.msra.mxu0 0
        %3263 = vmatprep.subr.bf16.mxu0 0
        %3264 = vmatpush1.bf16.msra.mxu0 0
        %3265 = vmatprep.subr.bf16.mxu0 0
        %3266 = vmatpush1.bf16.msra.mxu0 0
        %3267 = vmatprep.subr.bf16.mxu0 0
        %3268 = vmatpush1.bf16.msra.mxu0 0
        %3269 = vmatprep.subr.bf16.mxu0 0
        %3270 = vmatpush1.bf16.msra.mxu0 0
        %3271 = vmatprep.subr.bf16.mxu0 0
        %3272 = vmatpush1.bf16.msra.mxu0 0
        %3273 = vmatprep.subr.bf16.mxu0 0
        %3274 = vmatpush1.bf16.msra.mxu0 0
        %3275 = vmatprep.mubr.bf16.mxu0 0
        %3276 = vmatmul.mubr.bf16.gmra.mrb[0].mxu0 %v3192
        %v3277 = vpop.f32.mrb[0].mxu0
        %v3278 = vadd.f32 0.0, %v3277
        %v3279 = vpop.f32.mrb[0].mxu0
        %v3280 = vpop.f32.mrb[0].mxu0
        %v3281 = vadd.f32 0.0, %v3280
        %v3282 = vpop.f32.mrb[0].mxu0
        %3283 = vmatprep.mubr.bf16.mxu0 0
        %3284 = vmatmul.mubr.bf16.gmra.mrb[0].mxu0 %v3191
        %v3285 = vpop.f32.mrb[0].mxu0
        %v3286 = vadd.f32 0.0, %v3285
        %v3287 = vpop.f32.mrb[0].mxu0
        %v3288 = vpop.f32.mrb[0].mxu0
        %v3289 = vpop.f32.mrb[0].mxu0
        %3290 = vdwg.mxu0
        %v3291 = vadd.f32 %v3157, %v3278
        %v3292 = vadd.f32 %v3160, %v3281
        %v3293 = vadd.f32 %v3165, %v3286
        %v3294 = vld [vmem:[#allocation2 + $0x8] sm:$0xf]
        %s3295 = scalar_lea.vmem [#allocation13], 192
        %v3296 = vld [vmem:[%s3295] sm:$0xf]
        %v3297 = vld [vmem:[%s3295 + $0x4] sm:$0xf]
        %v3298 = vld [vmem:[%s3295 + $0x8] sm:$0xf]
        %v3299 = vld [vmem:[%s3295 + $0xc] sm:$0xf]
        %v3300 = vld [vmem:[%s3295 + $0x10] sm:$0xf]
        %v3301 = vld [vmem:[%s3295 + $0x14] sm:$0xf]
        %v3302 = vld [vmem:[%s3295 + $0x18] sm:$0xf]
        %v3303 = vld [vmem:[%s3295 + $0x1c] sm:$0xf]
        %v3304 = vld [vmem:[%s3295 + $0x20] sm:$0xf]
        %v3305 = vld [vmem:[%s3295 + $0x24] sm:$0xf]
        %v3306 = vld [vmem:[%s3295 + $0x28] sm:$0xf]
        %v3307 = vld [vmem:[%s3295 + $0x2c] sm:$0xf]
        %v3308 = vld [vmem:[%s3295 + $0x30] sm:$0xf]
        %v3309 = vld [vmem:[%s3295 + $0x34] sm:$0xf]
        %v3310 = vld [vmem:[%s3295 + $0x38] sm:$0xf]
        %v3311 = vld [vmem:[%s3295 + $0x3c] sm:$0xf]
        %v3313 = vshrl.u32 %v3170, 16
        %v3315 = vrot.slane %v3313, 1
        %v3316 = vshll.u32 %v3170, 16
        %v3318 = vrot.slane %v3316, 2
        %v3319 = vor.u32 %v3315, %v3318
        %v3321 = vshrl.u32 %v3294, 16
        %v3323 = vrot.slane %v3321, 1
        %v3324 = vshll.u32 %v3294, 16
        %v3326 = vrot.slane %v3324, 2
        %v3327 = vor.u32 %v3323, %v3326
        %v3328 = vsel %vm1251, %v3319, %v3327
        %v3347 = vunpack.c.l.b16 %v3296
        %v3348 = vunpack.c.l.b16 %v3297
        %v3349 = vunpack.c.l.b16 %v3298
        %v3350 = vunpack.c.l.b16 %v3299
        %v3351 = vunpack.c.l.b16 %v3300
        %v3352 = vunpack.c.l.b16 %v3301
        %v3353 = vunpack.c.l.b16 %v3302
        %v3354 = vunpack.c.l.b16 %v3303
        %v3355 = vunpack.c.l.b16 %v3304
        %v3356 = vunpack.c.l.b16 %v3305
        %v3357 = vunpack.c.l.b16 %v3306
        %v3358 = vunpack.c.l.b16 %v3307
        %v3359 = vunpack.c.l.b16 %v3308
        %v3360 = vunpack.c.l.b16 %v3309
        %v3361 = vunpack.c.l.b16 %v3310
        %v3362 = vunpack.c.l.b16 %v3311
        %v3363 = vpack.c.b16 %v3348, %v3347
        %v3364 = vpack.c.b16 %v3350, %v3349
        %v3365 = vpack.c.b16 %v3352, %v3351
        %v3366 = vpack.c.b16 %v3354, %v3353
        %v3367 = vpack.c.b16 %v3356, %v3355
        %v3368 = vpack.c.b16 %v3358, %v3357
        %v3369 = vpack.c.b16 %v3360, %v3359
        %v3370 = vpack.c.b16 %v3362, %v3361
        %3379 = vmatprep.subr.bf16.mxu0 0
        %3380 = vmatpush1.bf16.msra.mxu0 %v3363
        %3381 = vmatprep.subr.bf16.mxu0 0
        %3382 = vmatpush1.bf16.msra.mxu0 %v3364
        %3383 = vmatprep.subr.bf16.mxu0 0
        %3384 = vmatpush1.bf16.msra.mxu0 %v3365
        %3385 = vmatprep.subr.bf16.mxu0 0
        %3386 = vmatpush1.bf16.msra.mxu0 %v3366
        %3387 = vmatprep.subr.bf16.mxu0 0
        %3388 = vmatpush1.bf16.msra.mxu0 %v3367
        %3389 = vmatprep.subr.bf16.mxu0 0
        %3390 = vmatpush1.bf16.msra.mxu0 %v3368
        %3391 = vmatprep.subr.bf16.mxu0 0
        %3392 = vmatpush1.bf16.msra.mxu0 %v3369
        %3393 = vmatprep.subr.bf16.mxu0 0
        %3394 = vmatpush1.bf16.msra.mxu0 %v3370
        %3395 = vmatprep.subr.bf16.mxu0 0
        %3396 = vmatpush1.bf16.msra.mxu0 0
        %3397 = vmatprep.subr.bf16.mxu0 0
        %3398 = vmatpush1.bf16.msra.mxu0 0
        %3399 = vmatprep.subr.bf16.mxu0 0
        %3400 = vmatpush1.bf16.msra.mxu0 0
        %3401 = vmatprep.subr.bf16.mxu0 0
        %3402 = vmatpush1.bf16.msra.mxu0 0
        %3403 = vmatprep.subr.bf16.mxu0 0
        %3404 = vmatpush1.bf16.msra.mxu0 0
        %3405 = vmatprep.subr.bf16.mxu0 0
        %3406 = vmatpush1.bf16.msra.mxu0 0
        %3407 = vmatprep.subr.bf16.mxu0 0
        %3408 = vmatpush1.bf16.msra.mxu0 0
        %3409 = vmatprep.subr.bf16.mxu0 0
        %3410 = vmatpush1.bf16.msra.mxu0 0
        %3411 = vmatprep.mubr.bf16.mxu0 0
        %3412 = vmatmul.mubr.bf16.gmra.mrb[0].mxu0 %v3328
        %v3413 = vpop.f32.mrb[0].mxu0
        %v3414 = vadd.f32 0.0, %v3413
        %v3415 = vpop.f32.mrb[0].mxu0
        %v3416 = vpop.f32.mrb[0].mxu0
        %v3417 = vadd.f32 0.0, %v3416
        %v3418 = vpop.f32.mrb[0].mxu0
        %3419 = vmatprep.mubr.bf16.mxu0 0
        %3420 = vmatmul.mubr.bf16.gmra.mrb[0].mxu0 %v3327
        %v3421 = vpop.f32.mrb[0].mxu0
        %v3422 = vadd.f32 0.0, %v3421
        %v3423 = vpop.f32.mrb[0].mxu0
        %v3424 = vpop.f32.mrb[0].mxu0
        %v3425 = vpop.f32.mrb[0].mxu0
        %3426 = vdwg.mxu0
        %v3427 = vadd.f32 %v3291, %v3414
        %v3428 = vadd.f32 %v3292, %v3417
        %v3429 = vadd.f32 %v3293, %v3422
        %v3430 = vld [vmem:[#allocation2] sm:$0xfc]
        %s3431 = scalar_lea.vmem [#allocation13], 256
        %v3432 = vld [vmem:[%s3431] sm:$0xf]
        %v3433 = vld [vmem:[%s3431 + $0x4] sm:$0xf]
        %v3434 = vld [vmem:[%s3431 + $0x8] sm:$0xf]
        %v3435 = vld [vmem:[%s3431 + $0xc] sm:$0xf]
        %v3436 = vld [vmem:[%s3431 + $0x10] sm:$0xf]
        %v3437 = vld [vmem:[%s3431 + $0x14] sm:$0xf]
        %v3438 = vld [vmem:[%s3431 + $0x18] sm:$0xf]
        %v3439 = vld [vmem:[%s3431 + $0x1c] sm:$0xf]
        %v3440 = vld [vmem:[%s3431 + $0x20] sm:$0xf]
        %v3441 = vld [vmem:[%s3431 + $0x24] sm:$0xf]
        %v3442 = vld [vmem:[%s3431 + $0x28] sm:$0xf]
        %v3443 = vld [vmem:[%s3431 + $0x2c] sm:$0xf]
        %v3444 = vld [vmem:[%s3431 + $0x30] sm:$0xf]
        %v3445 = vld [vmem:[%s3431 + $0x34] sm:$0xf]
        %v3446 = vld [vmem:[%s3431 + $0x38] sm:$0xf]
        %v3447 = vld [vmem:[%s3431 + $0x3c] sm:$0xf]
        %v3450 = vrot.slane %v3430, 2
        %v3451 = vrot.slane %v3294, 2
        %v3452 = vsel %vm1397, %v3450, %v3451
        %v3471 = vunpack.c.l.b16 %v3432
        %v3472 = vunpack.c.l.b16 %v3433
        %v3473 = vunpack.c.l.b16 %v3434
        %v3474 = vunpack.c.l.b16 %v3435
        %v3475 = vunpack.c.l.b16 %v3436
        %v3476 = vunpack.c.l.b16 %v3437
        %v3477 = vunpack.c.l.b16 %v3438
        %v3478 = vunpack.c.l.b16 %v3439
        %v3479 = vunpack.c.l.b16 %v3440
        %v3480 = vunpack.c.l.b16 %v3441
        %v3481 = vunpack.c.l.b16 %v3442
        %v3482 = vunpack.c.l.b16 %v3443
        %v3483 = vunpack.c.l.b16 %v3444
        %v3484 = vunpack.c.l.b16 %v3445
        %v3485 = vunpack.c.l.b16 %v3446
        %v3486 = vunpack.c.l.b16 %v3447
        %v3487 = vpack.c.b16 %v3472, %v3471
        %v3488 = vpack.c.b16 %v3474, %v3473
        %v3489 = vpack.c.b16 %v3476, %v3475
        %v3490 = vpack.c.b16 %v3478, %v3477
        %v3491 = vpack.c.b16 %v3480, %v3479
        %v3492 = vpack.c.b16 %v3482, %v3481
        %v3493 = vpack.c.b16 %v3484, %v3483
        %v3494 = vpack.c.b16 %v3486, %v3485
        %3503 = vmatprep.subr.bf16.mxu0 0
        %3504 = vmatpush1.bf16.msra.mxu0 %v3487
        %3505 = vmatprep.subr.bf16.mxu0 0
        %3506 = vmatpush1.bf16.msra.mxu0 %v3488
        %3507 = vmatprep.subr.bf16.mxu0 0
        %3508 = vmatpush1.bf16.msra.mxu0 %v3489
        %3509 = vmatprep.subr.bf16.mxu0 0
        %3510 = vmatpush1.bf16.msra.mxu0 %v3490
        %3511 = vmatprep.subr.bf16.mxu0 0
        %3512 = vmatpush1.bf16.msra.mxu0 %v3491
        %3513 = vmatprep.subr.bf16.mxu0 0
        %3514 = vmatpush1.bf16.msra.mxu0 %v3492
        %3515 = vmatprep.subr.bf16.mxu0 0
        %3516 = vmatpush1.bf16.msra.mxu0 %v3493
        %3517 = vmatprep.subr.bf16.mxu0 0
        %3518 = vmatpush1.bf16.msra.mxu0 %v3494
        %3519 = vmatprep.subr.bf16.mxu0 0
        %3520 = vmatpush1.bf16.msra.mxu0 0
        %3521 = vmatprep.subr.bf16.mxu0 0
        %3522 = vmatpush1.bf16.msra.mxu0 0
        %3523 = vmatprep.subr.bf16.mxu0 0
        %3524 = vmatpush1.bf16.msra.mxu0 0
        %3525 = vmatprep.subr.bf16.mxu0 0
        %3526 = vmatpush1.bf16.msra.mxu0 0
        %3527 = vmatprep.subr.bf16.mxu0 0
        %3528 = vmatpush1.bf16.msra.mxu0 0
        %3529 = vmatprep.subr.bf16.mxu0 0
        %3530 = vmatpush1.bf16.msra.mxu0 0
        %3531 = vmatprep.subr.bf16.mxu0 0
        %3532 = vmatpush1.bf16.msra.mxu0 0
        %3533 = vmatprep.subr.bf16.mxu0 0
        %3534 = vmatpush1.bf16.msra.mxu0 0
        %3535 = vmatprep.mubr.bf16.mxu0 0
        %3536 = vmatmul.mubr.bf16.gmra.mrb[0].mxu0 %v3452
        %v3537 = vpop.f32.mrb[0].mxu0
        %v3538 = vadd.f32 0.0, %v3537
        %v3539 = vpop.f32.mrb[0].mxu0
        %v3540 = vpop.f32.mrb[0].mxu0
        %v3541 = vadd.f32 0.0, %v3540
        %v3542 = vpop.f32.mrb[0].mxu0
        %3543 = vmatprep.mubr.bf16.mxu0 0
        %3544 = vmatmul.mubr.bf16.gmra.mrb[0].mxu0 %v3451
        %v3545 = vpop.f32.mrb[0].mxu0
        %v3546 = vadd.f32 0.0, %v3545
        %v3547 = vpop.f32.mrb[0].mxu0
        %v3548 = vpop.f32.mrb[0].mxu0
        %v3549 = vpop.f32.mrb[0].mxu0
        %3550 = vdwg.mxu0
        %v3551 = vadd.f32 %v3427, %v3538
        %v3552 = vadd.f32 %v3428, %v3541
        %v3553 = vadd.f32 %v3429, %v3546
        %v3554 = vld [vmem:[#allocation21] sm:$0x1]
        %v3556 = vlaneseq
        %v3557 = vshrl.u32 %v3556, 7
        %v3558 = vsub.s32 0, %v3557
        %v3559 = vrot.slane %v3554, %v3558
        %v3561 = vmul.f32 %v3551, %v3559
        %v3562 = vmul.f32 %v3552, %v3559
        %v3563 = vmul.f32 %v3553, %v3559
        %v3564 = vld [vmem:[#allocation28] sm:$0x1]
        %v3566 = vlaneseq
        %v3567 = vshrl.u32 %v3566, 7
        %v3568 = vsub.s32 0, %v3567
        %v3569 = vrot.slane %v3564, %v3568
        %v3571 = vadd.f32 %v3561, %v3569
        %v3572 = vadd.f32 %v3562, %v3569
        %v3573 = vadd.f32 %v3563, %v3569
        %v3574 = vtanh.pop %v3571
        %v3575 = vtanh.pop %v3572
        %v3576 = vtanh.pop %v3573
        %s3577 = ssub.s32 %s829, 2
        %v3578 = vstv %s3577
        %v3579 = vadd.s32 %v3578, %v1534
        %v3580 = vadd.s32 %v3578, %v1535
        %v3581 = vadd.s32 %v3578, %v1536
        %vm3582 = vcmp.ge.s32.totalorder %v3579, 0
        %vm3583 = vcmp.ge.s32.totalorder %v3580, 0
        %vm3584 = vcmp.ge.s32.totalorder %v3581, 0
        %vm3585 = vcmp.lt.s32.totalorder %v3579, 16
        %vm3586 = vcmp.lt.s32.totalorder %v3580, 16
        %vm3587 = vcmp.lt.s32.totalorder %v3581, 16
        %vm3588 = vmand %vm3582, %vm3585
        %vm3589 = vmand %vm3583, %vm3586
        %vm3590 = vmand %vm3584, %vm3587
        %v3591 = vsel %vm3588, %v3574, 0.0
        %v3592 = vsel %vm3589, %v3575, 0.0
        %v3593 = vsel %vm3590, %v3576, 0.0
        %v3594 = vpack.c.bf16 %v3592, %v3591
        %v3595 = vpack.c.bf16 %v3593, %v3593
        %3596 = vst [vmem:[#allocation3] sm:$0xff] %v3594
        %3597 = vst [vmem:[#allocation3 + $0x8] sm:$0x3] %v3595
        %v3598 = vld [vmem:[#allocation3] sm:$0xff]
        %v3599 = vld [vmem:[#allocation15] sm:$0xf]
        %v3600 = vld [vmem:[#allocation15 + $0x4] sm:$0xf]
        %v3601 = vld [vmem:[#allocation15 + $0x8] sm:$0xf]
        %v3602 = vld [vmem:[#allocation15 + $0xc] sm:$0xf]
        %v3603 = vld [vmem:[#allocation15 + $0x10] sm:$0xf]
        %v3604 = vld [vmem:[#allocation15 + $0x14] sm:$0xf]
        %v3605 = vld [vmem:[#allocation15 + $0x18] sm:$0xf]
        %v3606 = vld [vmem:[#allocation15 + $0x1c] sm:$0xf]
        %v3607 = vld [vmem:[#allocation15 + $0x20] sm:$0xf]
        %v3608 = vld [vmem:[#allocation15 + $0x24] sm:$0xf]
        %v3609 = vld [vmem:[#allocation15 + $0x28] sm:$0xf]
        %v3610 = vld [vmem:[#allocation15 + $0x2c] sm:$0xf]
        %v3611 = vld [vmem:[#allocation15 + $0x30] sm:$0xf]
        %v3612 = vld [vmem:[#allocation15 + $0x34] sm:$0xf]
        %v3613 = vld [vmem:[#allocation15 + $0x38] sm:$0xf]
        %v3614 = vld [vmem:[#allocation15 + $0x3c] sm:$0xf]
        %v3615 = vld [vmem:[#allocation3] sm:$0xff]
        %v3616 = vld [vmem:[#allocation3 + $0x8] sm:$0x1]
        %s3617 = scalar_lea.vmem [#allocation15], 64
        %v3618 = vld [vmem:[%s3617] sm:$0xf]
        %v3619 = vld [vmem:[%s3617 + $0x4] sm:$0xf]
        %v3620 = vld [vmem:[%s3617 + $0x8] sm:$0xf]
        %v3621 = vld [vmem:[%s3617 + $0xc] sm:$0xf]
        %v3622 = vld [vmem:[%s3617 + $0x10] sm:$0xf]
        %v3623 = vld [vmem:[%s3617 + $0x14] sm:$0xf]
        %v3624 = vld [vmem:[%s3617 + $0x18] sm:$0xf]
        %v3625 = vld [vmem:[%s3617 + $0x1c] sm:$0xf]
        %v3626 = vld [vmem:[%s3617 + $0x20] sm:$0xf]
        %v3627 = vld [vmem:[%s3617 + $0x24] sm:$0xf]
        %v3628 = vld [vmem:[%s3617 + $0x28] sm:$0xf]
        %v3629 = vld [vmem:[%s3617 + $0x2c] sm:$0xf]
        %v3630 = vld [vmem:[%s3617 + $0x30] sm:$0xf]
        %v3631 = vld [vmem:[%s3617 + $0x34] sm:$0xf]
        %v3632 = vld [vmem:[%s3617 + $0x38] sm:$0xf]
        %v3633 = vld [vmem:[%s3617 + $0x3c] sm:$0xf]
        %v3635 = vshrl.u32 %v3615, 16
        %v3637 = vshll.u32 %v3615, 16
        %v3639 = vrot.slane %v3637, 1
        %v3640 = vor.u32 %v3635, %v3639
        %v3642 = vshll.u32 %v3616, 16
        %v3644 = vrot.slane %v3642, 1
        %v3645 = vsel %vm881, %v3640, %v3644
        %v3663 = vunpack.c.l.b16 %v3618
        %v3664 = vunpack.c.l.b16 %v3619
        %v3665 = vunpack.c.l.b16 %v3620
        %v3666 = vunpack.c.l.b16 %v3621
        %v3667 = vunpack.c.l.b16 %v3622
        %v3668 = vunpack.c.l.b16 %v3623
        %v3669 = vunpack.c.l.b16 %v3624
        %v3670 = vunpack.c.l.b16 %v3625
        %v3671 = vunpack.c.l.b16 %v3626
        %v3672 = vunpack.c.l.b16 %v3627
        %v3673 = vunpack.c.l.b16 %v3628
        %v3674 = vunpack.c.l.b16 %v3629
        %v3675 = vunpack.c.l.b16 %v3630
        %v3676 = vunpack.c.l.b16 %v3631
        %v3677 = vunpack.c.l.b16 %v3632
        %v3678 = vunpack.c.l.b16 %v3633
        %v3679 = vpack.c.b16 %v3664, %v3663
        %v3680 = vpack.c.b16 %v3666, %v3665
        %v3681 = vpack.c.b16 %v3668, %v3667
        %v3682 = vpack.c.b16 %v3670, %v3669
        %v3683 = vpack.c.b16 %v3672, %v3671
        %v3684 = vpack.c.b16 %v3674, %v3673
        %v3685 = vpack.c.b16 %v3676, %v3675
        %v3686 = vpack.c.b16 %v3678, %v3677
        %3695 = vmatprep.subr.bf16.mxu0 0
        %3696 = vmatpush1.bf16.msra.mxu0 %v3679
        %3697 = vmatprep.subr.bf16.mxu0 0
        %3698 = vmatpush1.bf16.msra.mxu0 %v3680
        %3699 = vmatprep.subr.bf16.mxu0 0
        %3700 = vmatpush1.bf16.msra.mxu0 %v3681
        %3701 = vmatprep.subr.bf16.mxu0 0
        %3702 = vmatpush1.bf16.msra.mxu0 %v3682
        %3703 = vmatprep.subr.bf16.mxu0 0
        %3704 = vmatpush1.bf16.msra.mxu0 %v3683
        %3705 = vmatprep.subr.bf16.mxu0 0
        %3706 = vmatpush1.bf16.msra.mxu0 %v3684
        %3707 = vmatprep.subr.bf16.mxu0 0
        %3708 = vmatpush1.bf16.msra.mxu0 %v3685
        %3709 = vmatprep.subr.bf16.mxu0 0
        %3710 = vmatpush1.bf16.msra.mxu0 %v3686
        %3711 = vmatprep.subr.bf16.mxu0 0
        %3712 = vmatpush1.bf16.msra.mxu0 0
        %3713 = vmatprep.subr.bf16.mxu0 0
        %3714 = vmatpush1.bf16.msra.mxu0 0
        %3715 = vmatprep.subr.bf16.mxu0 0
        %3716 = vmatpush1.bf16.msra.mxu0 0
        %3717 = vmatprep.subr.bf16.mxu0 0
        %3718 = vmatpush1.bf16.msra.mxu0 0
        %3719 = vmatprep.subr.bf16.mxu0 0
        %3720 = vmatpush1.bf16.msra.mxu0 0
        %3721 = vmatprep.subr.bf16.mxu0 0
        %3722 = vmatpush1.bf16.msra.mxu0 0
        %3723 = vmatprep.subr.bf16.mxu0 0
        %3724 = vmatpush1.bf16.msra.mxu0 0
        %3725 = vmatprep.subr.bf16.mxu0 0
        %3726 = vmatpush1.bf16.msra.mxu0 0
        %3727 = vmatprep.mubr.bf16.mxu0 0
        %3728 = vmatmul.mubr.bf16.gmra.mrb[0].mxu0 %v3645
        %v3729 = vpop.f32.mrb[0].mxu0
        %v3730 = vadd.f32 0.0, %v3729
        %v3731 = vpop.f32.mrb[0].mxu0
        %v3732 = vpop.f32.mrb[0].mxu0
        %v3733 = vadd.f32 0.0, %v3732
        %v3734 = vpop.f32.mrb[0].mxu0
        %3735 = vdwg.mxu0
        %v3752 = vunpack.c.l.b16 %v3599
        %v3753 = vunpack.c.l.b16 %v3600
        %v3754 = vunpack.c.l.b16 %v3601
        %v3755 = vunpack.c.l.b16 %v3602
        %v3756 = vunpack.c.l.b16 %v3603
        %v3757 = vunpack.c.l.b16 %v3604
        %v3758 = vunpack.c.l.b16 %v3605
        %v3759 = vunpack.c.l.b16 %v3606
        %v3760 = vunpack.c.l.b16 %v3607
        %v3761 = vunpack.c.l.b16 %v3608
        %v3762 = vunpack.c.l.b16 %v3609
        %v3763 = vunpack.c.l.b16 %v3610
        %v3764 = vunpack.c.l.b16 %v3611
        %v3765 = vunpack.c.l.b16 %v3612
        %v3766 = vunpack.c.l.b16 %v3613
        %v3767 = vunpack.c.l.b16 %v3614
        %v3768 = vpack.c.b16 %v3753, %v3752
        %v3769 = vpack.c.b16 %v3755, %v3754
        %v3770 = vpack.c.b16 %v3757, %v3756
        %v3771 = vpack.c.b16 %v3759, %v3758
        %v3772 = vpack.c.b16 %v3761, %v3760
        %v3773 = vpack.c.b16 %v3763, %v3762
        %v3774 = vpack.c.b16 %v3765, %v3764
        %v3775 = vpack.c.b16 %v3767, %v3766
        %3784 = vmatprep.subr.bf16.mxu0 0
        %3785 = vmatpush1.bf16.msra.mxu0 %v3768
        %3786 = vmatprep.subr.bf16.mxu0 0
        %3787 = vmatpush1.bf16.msra.mxu0 %v3769
        %3788 = vmatprep.subr.bf16.mxu0 0
        %3789 = vmatpush1.bf16.msra.mxu0 %v3770
        %3790 = vmatprep.subr.bf16.mxu0 0
        %3791 = vmatpush1.bf16.msra.mxu0 %v3771
        %3792 = vmatprep.subr.bf16.mxu0 0
        %3793 = vmatpush1.bf16.msra.mxu0 %v3772
        %3794 = vmatprep.subr.bf16.mxu0 0
        %3795 = vmatpush1.bf16.msra.mxu0 %v3773
        %3796 = vmatprep.subr.bf16.mxu0 0
        %3797 = vmatpush1.bf16.msra.mxu0 %v3774
        %3798 = vmatprep.subr.bf16.mxu0 0
        %3799 = vmatpush1.bf16.msra.mxu0 %v3775
        %3800 = vmatprep.subr.bf16.mxu0 0
        %3801 = vmatpush1.bf16.msra.mxu0 0
        %3802 = vmatprep.subr.bf16.mxu0 0
        %3803 = vmatpush1.bf16.msra.mxu0 0
        %3804 = vmatprep.subr.bf16.mxu0 0
        %3805 = vmatpush1.bf16.msra.mxu0 0
        %3806 = vmatprep.subr.bf16.mxu0 0
        %3807 = vmatpush1.bf16.msra.mxu0 0
        %3808 = vmatprep.subr.bf16.mxu0 0
        %3809 = vmatpush1.bf16.msra.mxu0 0
        %3810 = vmatprep.subr.bf16.mxu0 0
        %3811 = vmatpush1.bf16.msra.mxu0 0
        %3812 = vmatprep.subr.bf16.mxu0 0
        %3813 = vmatpush1.bf16.msra.mxu0 0
        %3814 = vmatprep.subr.bf16.mxu0 0
        %3815 = vmatpush1.bf16.msra.mxu0 0
        %3816 = vmatprep.mubr.bf16.mxu0 0
        %3817 = vmatmul.mubr.bf16.gmra.mrb[0].mxu0 %v3598
        %v3818 = vpop.f32.mrb[0].mxu0
        %v3819 = vadd.f32 %v3730, %v3818
        %v3820 = vpop.f32.mrb[0].mxu0
        %v3821 = vpop.f32.mrb[0].mxu0
        %v3822 = vadd.f32 %v3733, %v3821
        %v3823 = vpop.f32.mrb[0].mxu0
        %3824 = vdwg.mxu0
        %v3825 = vld [vmem:[#allocation3] sm:$0xfe]
        %s3826 = scalar_lea.vmem [#allocation15], 128
        %v3827 = vld [vmem:[%s3826] sm:$0xf]
        %v3828 = vld [vmem:[%s3826 + $0x4] sm:$0xf]
        %v3829 = vld [vmem:[%s3826 + $0x8] sm:$0xf]
        %v3830 = vld [vmem:[%s3826 + $0xc] sm:$0xf]
        %v3831 = vld [vmem:[%s3826 + $0x10] sm:$0xf]
        %v3832 = vld [vmem:[%s3826 + $0x14] sm:$0xf]
        %v3833 = vld [vmem:[%s3826 + $0x18] sm:$0xf]
        %v3834 = vld [vmem:[%s3826 + $0x1c] sm:$0xf]
        %v3835 = vld [vmem:[%s3826 + $0x20] sm:$0xf]
        %v3836 = vld [vmem:[%s3826 + $0x24] sm:$0xf]
        %v3837 = vld [vmem:[%s3826 + $0x28] sm:$0xf]
        %v3838 = vld [vmem:[%s3826 + $0x2c] sm:$0xf]
        %v3839 = vld [vmem:[%s3826 + $0x30] sm:$0xf]
        %v3840 = vld [vmem:[%s3826 + $0x34] sm:$0xf]
        %v3841 = vld [vmem:[%s3826 + $0x38] sm:$0xf]
        %v3842 = vld [vmem:[%s3826 + $0x3c] sm:$0xf]
        %v3845 = vrot.slane %v3825, 1
        %v3846 = vrot.slane %v3616, 1
        %v3847 = vsel %vm1121, %v3845, %v3846
        %v3865 = vunpack.c.l.b16 %v3827
        %v3866 = vunpack.c.l.b16 %v3828
        %v3867 = vunpack.c.l.b16 %v3829
        %v3868 = vunpack.c.l.b16 %v3830
        %v3869 = vunpack.c.l.b16 %v3831
        %v3870 = vunpack.c.l.b16 %v3832
        %v3871 = vunpack.c.l.b16 %v3833
        %v3872 = vunpack.c.l.b16 %v3834
        %v3873 = vunpack.c.l.b16 %v3835
        %v3874 = vunpack.c.l.b16 %v3836
        %v3875 = vunpack.c.l.b16 %v3837
        %v3876 = vunpack.c.l.b16 %v3838
        %v3877 = vunpack.c.l.b16 %v3839
        %v3878 = vunpack.c.l.b16 %v3840
        %v3879 = vunpack.c.l.b16 %v3841
        %v3880 = vunpack.c.l.b16 %v3842
        %v3881 = vpack.c.b16 %v3866, %v3865
        %v3882 = vpack.c.b16 %v3868, %v3867
        %v3883 = vpack.c.b16 %v3870, %v3869
        %v3884 = vpack.c.b16 %v3872, %v3871
        %v3885 = vpack.c.b16 %v3874, %v3873
        %v3886 = vpack.c.b16 %v3876, %v3875
        %v3887 = vpack.c.b16 %v3878, %v3877
        %v3888 = vpack.c.b16 %v3880, %v3879
        %3897 = vmatprep.subr.bf16.mxu0 0
        %3898 = vmatpush1.bf16.msra.mxu0 %v3881
        %3899 = vmatprep.subr.bf16.mxu0 0
        %3900 = vmatpush1.bf16.msra.mxu0 %v3882
        %3901 = vmatprep.subr.bf16.mxu0 0
        %3902 = vmatpush1.bf16.msra.mxu0 %v3883
        %3903 = vmatprep.subr.bf16.mxu0 0
        %3904 = vmatpush1.bf16.msra.mxu0 %v3884
        %3905 = vmatprep.subr.bf16.mxu0 0
        %3906 = vmatpush1.bf16.msra.mxu0 %v3885
        %3907 = vmatprep.subr.bf16.mxu0 0
        %3908 = vmatpush1.bf16.msra.mxu0 %v3886
        %3909 = vmatprep.subr.bf16.mxu0 0
        %3910 = vmatpush1.bf16.msra.mxu0 %v3887
        %3911 = vmatprep.subr.bf16.mxu0 0
        %3912 = vmatpush1.bf16.msra.mxu0 %v3888
        %3913 = vmatprep.subr.bf16.mxu0 0
        %3914 = vmatpush1.bf16.msra.mxu0 0
        %3915 = vmatprep.subr.bf16.mxu0 0
        %3916 = vmatpush1.bf16.msra.mxu0 0
        %3917 = vmatprep.subr.bf16.mxu0 0
        %3918 = vmatpush1.bf16.msra.mxu0 0
        %3919 = vmatprep.subr.bf16.mxu0 0
        %3920 = vmatpush1.bf16.msra.mxu0 0
        %3921 = vmatprep.subr.bf16.mxu0 0
        %3922 = vmatpush1.bf16.msra.mxu0 0
        %3923 = vmatprep.subr.bf16.mxu0 0
        %3924 = vmatpush1.bf16.msra.mxu0 0
        %3925 = vmatprep.subr.bf16.mxu0 0
        %3926 = vmatpush1.bf16.msra.mxu0 0
        %3927 = vmatprep.subr.bf16.mxu0 0
        %3928 = vmatpush1.bf16.msra.mxu0 0
        %3929 = vmatprep.mubr.bf16.mxu0 0
        %3930 = vmatmul.mubr.bf16.gmra.mrb[0].mxu0 %v3847
        %v3931 = vpop.f32.mrb[0].mxu0
        %v3932 = vadd.f32 0.0, %v3931
        %v3933 = vpop.f32.mrb[0].mxu0
        %v3934 = vpop.f32.mrb[0].mxu0
        %v3935 = vadd.f32 0.0, %v3934
        %v3936 = vpop.f32.mrb[0].mxu0
        %3937 = vdwg.mxu0
        %v3938 = vadd.f32 %v3819, %v3932
        %v3939 = vadd.f32 %v3822, %v3935
        %v3940 = vld [vmem:[#allocation3 + $0x8] sm:$0x3]
        %s3941 = scalar_lea.vmem [#allocation15], 192
        %v3942 = vld [vmem:[%s3941] sm:$0xf]
        %v3943 = vld [vmem:[%s3941 + $0x4] sm:$0xf]
        %v3944 = vld [vmem:[%s3941 + $0x8] sm:$0xf]
        %v3945 = vld [vmem:[%s3941 + $0xc] sm:$0xf]
        %v3946 = vld [vmem:[%s3941 + $0x10] sm:$0xf]
        %v3947 = vld [vmem:[%s3941 + $0x14] sm:$0xf]
        %v3948 = vld [vmem:[%s3941 + $0x18] sm:$0xf]
        %v3949 = vld [vmem:[%s3941 + $0x1c] sm:$0xf]
        %v3950 = vld [vmem:[%s3941 + $0x20] sm:$0xf]
        %v3951 = vld [vmem:[%s3941 + $0x24] sm:$0xf]
        %v3952 = vld [vmem:[%s3941 + $0x28] sm:$0xf]
        %v3953 = vld [vmem:[%s3941 + $0x2c] sm:$0xf]
        %v3954 = vld [vmem:[%s3941 + $0x30] sm:$0xf]
        %v3955 = vld [vmem:[%s3941 + $0x34] sm:$0xf]
        %v3956 = vld [vmem:[%s3941 + $0x38] sm:$0xf]
        %v3957 = vld [vmem:[%s3941 + $0x3c] sm:$0xf]
        %v3959 = vshrl.u32 %v3825, 16
        %v3961 = vrot.slane %v3959, 1
        %v3962 = vshll.u32 %v3825, 16
        %v3964 = vrot.slane %v3962, 2
        %v3965 = vor.u32 %v3961, %v3964
        %v3967 = vshrl.u32 %v3940, 16
        %v3969 = vrot.slane %v3967, 1
        %v3970 = vshll.u32 %v3940, 16
        %v3972 = vrot.slane %v3970, 2
        %v3973 = vor.u32 %v3969, %v3972
        %v3974 = vsel %vm1251, %v3965, %v3973
        %v3992 = vunpack.c.l.b16 %v3942
        %v3993 = vunpack.c.l.b16 %v3943
        %v3994 = vunpack.c.l.b16 %v3944
        %v3995 = vunpack.c.l.b16 %v3945
        %v3996 = vunpack.c.l.b16 %v3946
        %v3997 = vunpack.c.l.b16 %v3947
        %v3998 = vunpack.c.l.b16 %v3948
        %v3999 = vunpack.c.l.b16 %v3949
        %v4000 = vunpack.c.l.b16 %v3950
        %v4001 = vunpack.c.l.b16 %v3951
        %v4002 = vunpack.c.l.b16 %v3952
        %v4003 = vunpack.c.l.b16 %v3953
        %v4004 = vunpack.c.l.b16 %v3954
        %v4005 = vunpack.c.l.b16 %v3955
        %v4006 = vunpack.c.l.b16 %v3956
        %v4007 = vunpack.c.l.b16 %v3957
        %v4008 = vpack.c.b16 %v3993, %v3992
        %v4009 = vpack.c.b16 %v3995, %v3994
        %v4010 = vpack.c.b16 %v3997, %v3996
        %v4011 = vpack.c.b16 %v3999, %v3998
        %v4012 = vpack.c.b16 %v4001, %v4000
        %v4013 = vpack.c.b16 %v4003, %v4002
        %v4014 = vpack.c.b16 %v4005, %v4004
        %v4015 = vpack.c.b16 %v4007, %v4006
        %4024 = vmatprep.subr.bf16.mxu0 0
        %4025 = vmatpush1.bf16.msra.mxu0 %v4008
        %4026 = vmatprep.subr.bf16.mxu0 0
        %4027 = vmatpush1.bf16.msra.mxu0 %v4009
        %4028 = vmatprep.subr.bf16.mxu0 0
        %4029 = vmatpush1.bf16.msra.mxu0 %v4010
        %4030 = vmatprep.subr.bf16.mxu0 0
        %4031 = vmatpush1.bf16.msra.mxu0 %v4011
        %4032 = vmatprep.subr.bf16.mxu0 0
        %4033 = vmatpush1.bf16.msra.mxu0 %v4012
        %4034 = vmatprep.subr.bf16.mxu0 0
        %4035 = vmatpush1.bf16.msra.mxu0 %v4013
        %4036 = vmatprep.subr.bf16.mxu0 0
        %4037 = vmatpush1.bf16.msra.mxu0 %v4014
        %4038 = vmatprep.subr.bf16.mxu0 0
        %4039 = vmatpush1.bf16.msra.mxu0 %v4015
        %4040 = vmatprep.subr.bf16.mxu0 0
        %4041 = vmatpush1.bf16.msra.mxu0 0
        %4042 = vmatprep.subr.bf16.mxu0 0
        %4043 = vmatpush1.bf16.msra.mxu0 0
        %4044 = vmatprep.subr.bf16.mxu0 0
        %4045 = vmatpush1.bf16.msra.mxu0 0
        %4046 = vmatprep.subr.bf16.mxu0 0
        %4047 = vmatpush1.bf16.msra.mxu0 0
        %4048 = vmatprep.subr.bf16.mxu0 0
        %4049 = vmatpush1.bf16.msra.mxu0 0
        %4050 = vmatprep.subr.bf16.mxu0 0
        %4051 = vmatpush1.bf16.msra.mxu0 0
        %4052 = vmatprep.subr.bf16.mxu0 0
        %4053 = vmatpush1.bf16.msra.mxu0 0
        %4054 = vmatprep.subr.bf16.mxu0 0
        %4055 = vmatpush1.bf16.msra.mxu0 0
        %4056 = vmatprep.mubr.bf16.mxu0 0
        %4057 = vmatmul.mubr.bf16.gmra.mrb[0].mxu0 %v3974
        %v4058 = vpop.f32.mrb[0].mxu0
        %v4059 = vadd.f32 0.0, %v4058
        %v4060 = vpop.f32.mrb[0].mxu0
        %v4061 = vpop.f32.mrb[0].mxu0
        %v4062 = vadd.f32 0.0, %v4061
        %v4063 = vpop.f32.mrb[0].mxu0
        %4064 = vdwg.mxu0
        %v4065 = vadd.f32 %v3938, %v4059
        %v4066 = vadd.f32 %v3939, %v4062
        %v4067 = vld [vmem:[#allocation3] sm:$0xfc]
        %s4068 = scalar_lea.vmem [#allocation15], 256
        %v4069 = vld [vmem:[%s4068] sm:$0xf]
        %v4070 = vld [vmem:[%s4068 + $0x4] sm:$0xf]
        %v4071 = vld [vmem:[%s4068 + $0x8] sm:$0xf]
        %v4072 = vld [vmem:[%s4068 + $0xc] sm:$0xf]
        %v4073 = vld [vmem:[%s4068 + $0x10] sm:$0xf]
        %v4074 = vld [vmem:[%s4068 + $0x14] sm:$0xf]
        %v4075 = vld [vmem:[%s4068 + $0x18] sm:$0xf]
        %v4076 = vld [vmem:[%s4068 + $0x1c] sm:$0xf]
        %v4077 = vld [vmem:[%s4068 + $0x20] sm:$0xf]
        %v4078 = vld [vmem:[%s4068 + $0x24] sm:$0xf]
        %v4079 = vld [vmem:[%s4068 + $0x28] sm:$0xf]
        %v4080 = vld [vmem:[%s4068 + $0x2c] sm:$0xf]
        %v4081 = vld [vmem:[%s4068 + $0x30] sm:$0xf]
        %v4082 = vld [vmem:[%s4068 + $0x34] sm:$0xf]
        %v4083 = vld [vmem:[%s4068 + $0x38] sm:$0xf]
        %v4084 = vld [vmem:[%s4068 + $0x3c] sm:$0xf]
        %v4087 = vrot.slane %v4067, 2
        %v4088 = vrot.slane %v3940, 2
        %v4089 = vsel %vm1397, %v4087, %v4088
        %v4107 = vunpack.c.l.b16 %v4069
        %v4108 = vunpack.c.l.b16 %v4070
        %v4109 = vunpack.c.l.b16 %v4071
        %v4110 = vunpack.c.l.b16 %v4072
        %v4111 = vunpack.c.l.b16 %v4073
        %v4112 = vunpack.c.l.b16 %v4074
        %v4113 = vunpack.c.l.b16 %v4075
        %v4114 = vunpack.c.l.b16 %v4076
        %v4115 = vunpack.c.l.b16 %v4077
        %v4116 = vunpack.c.l.b16 %v4078
        %v4117 = vunpack.c.l.b16 %v4079
        %v4118 = vunpack.c.l.b16 %v4080
        %v4119 = vunpack.c.l.b16 %v4081
        %v4120 = vunpack.c.l.b16 %v4082
        %v4121 = vunpack.c.l.b16 %v4083
        %v4122 = vunpack.c.l.b16 %v4084
        %v4123 = vpack.c.b16 %v4108, %v4107
        %v4124 = vpack.c.b16 %v4110, %v4109
        %v4125 = vpack.c.b16 %v4112, %v4111
        %v4126 = vpack.c.b16 %v4114, %v4113
        %v4127 = vpack.c.b16 %v4116, %v4115
        %v4128 = vpack.c.b16 %v4118, %v4117
        %v4129 = vpack.c.b16 %v4120, %v4119
        %v4130 = vpack.c.b16 %v4122, %v4121
        %4139 = vmatprep.subr.bf16.mxu0 0
        %4140 = vmatpush1.bf16.msra.mxu0 %v4123
        %4141 = vmatprep.subr.bf16.mxu0 0
        %4142 = vmatpush1.bf16.msra.mxu0 %v4124
        %4143 = vmatprep.subr.bf16.mxu0 0
        %4144 = vmatpush1.bf16.msra.mxu0 %v4125
        %4145 = vmatprep.subr.bf16.mxu0 0
        %4146 = vmatpush1.bf16.msra.mxu0 %v4126
        %4147 = vmatprep.subr.bf16.mxu0 0
        %4148 = vmatpush1.bf16.msra.mxu0 %v4127
        %4149 = vmatprep.subr.bf16.mxu0 0
        %4150 = vmatpush1.bf16.msra.mxu0 %v4128
        %4151 = vmatprep.subr.bf16.mxu0 0
        %4152 = vmatpush1.bf16.msra.mxu0 %v4129
        %4153 = vmatprep.subr.bf16.mxu0 0
        %4154 = vmatpush1.bf16.msra.mxu0 %v4130
        %4155 = vmatprep.subr.bf16.mxu0 0
        %4156 = vmatpush1.bf16.msra.mxu0 0
        %4157 = vmatprep.subr.bf16.mxu0 0
        %4158 = vmatpush1.bf16.msra.mxu0 0
        %4159 = vmatprep.subr.bf16.mxu0 0
        %4160 = vmatpush1.bf16.msra.mxu0 0
        %4161 = vmatprep.subr.bf16.mxu0 0
        %4162 = vmatpush1.bf16.msra.mxu0 0
        %4163 = vmatprep.subr.bf16.mxu0 0
        %4164 = vmatpush1.bf16.msra.mxu0 0
        %4165 = vmatprep.subr.bf16.mxu0 0
        %4166 = vmatpush1.bf16.msra.mxu0 0
        %4167 = vmatprep.subr.bf16.mxu0 0
        %4168 = vmatpush1.bf16.msra.mxu0 0
        %4169 = vmatprep.subr.bf16.mxu0 0
        %4170 = vmatpush1.bf16.msra.mxu0 0
        %4171 = vmatprep.mubr.bf16.mxu0 0
        %4172 = vmatmul.mubr.bf16.gmra.mrb[0].mxu0 %v4089
        %v4173 = vpop.f32.mrb[0].mxu0
        %v4174 = vadd.f32 0.0, %v4173
        %v4175 = vpop.f32.mrb[0].mxu0
        %v4176 = vpop.f32.mrb[0].mxu0
        %v4177 = vadd.f32 0.0, %v4176
        %v4178 = vpop.f32.mrb[0].mxu0
        %4179 = vdwg.mxu0
        %v4180 = vadd.f32 %v4065, %v4174
        %v4181 = vadd.f32 %v4066, %v4177
        %v4182 = vld [vmem:[#allocation22] sm:$0x1]
        %v4184 = vlaneseq
        %v4185 = vshrl.u32 %v4184, 7
        %v4186 = vsub.s32 0, %v4185
        %v4187 = vrot.slane %v4182, %v4186
        %v4189 = vmul.f32 %v4180, %v4187
        %v4190 = vmul.f32 %v4181, %v4187
        %v4191 = vld [vmem:[#allocation30] sm:$0x1]
        %v4193 = vlaneseq
        %v4194 = vshrl.u32 %v4193, 7
        %v4195 = vsub.s32 0, %v4194
        %v4196 = vrot.slane %v4191, %v4195
        %v4198 = vadd.f32 %v4189, %v4196
        %v4199 = vadd.f32 %v4190, %v4196
        %v4200 = vld [vmem:[%s710] sm:$0xff]
        %v4201 = vld [vmem:[%s710 + $0x8] sm:$0xff]
        %v4202 = vadd.f32 %v4198, %v4200
        %v4203 = vadd.f32 %v4199, %v4201
        %4204 = vst [vmem:[%s825] sm:$0xff] %v4202
        %4205 = vst [vmem:[%s825 + $0x8] sm:$0xff] %v4203
        %s4206 = sand.u32 %s437, 1
        %s4207 = scalar_lea.sflag [#allocation6], %s4206
        %s4208 = sand.u32 %s437, 1
        %s4209 = smul.addr %s4208, 16
        %s4210 = scalar_lea.vmem [#allocation31], %s4209
        // Predicated region
        $region157: #{tpu_custom_call.1} parent=87 // pred_check
          %p4211 = pneg %p447
        $region158: #{tpu_custom_call.1} parent=87 // pred_check_branch
          %4213 = sbr.rel (%p4211) target = $region160
        $region159: #{tpu_custom_call.1} parent=87 // pred_region
          %s4214 = smul.u32 2, %s49
          %s4216 = ssub.s32 256, 256
          %4217 = vsyncadd %s4207, %s4216
          %s4218 = smul.addr %s48, 2
          %s4219 = sadd.s32 %s4214, %s4218
          %s4220 = smul.addr %s4219, 128
          %s4221 = scalar_lea.hbm %s17, %s4220
          %s4222 = sshll.u32 %s4210, 4
          %s4223 = int_to_ptr.vmem [resolvable:$true] %s4222
          %4228 = dma.vmem_to_hbm [thread:$0]  %s4223, 256, %s4221, %s4207, 128, 128, 8
        $region160: #{tpu_custom_call.1} parent=87 // pred_fallthru
          _
      $region88: #{tpu_custom_call.1} parent=5 // pred_fallthru
        _
      %p4229 = scmp.le.s32.totalorder 2, %s39
      // Predicated region
      $region161: #{tpu_custom_call.1} parent=5 // pred_check
        %p4230 = pneg %p4229
      $region162: #{tpu_custom_call.1} parent=5 // pred_check_branch
        %4232 = sbr.rel (%p4230) target = $region164
      $region163: #{tpu_custom_call.1} parent=5 // pred_region
        %s4233 = ssub.s32 %s39, 2
        // Predicated region
        $region165: #{tpu_custom_call.1} parent=163 // pred_check
          %p4234 = pneg %p453
        $region166: #{tpu_custom_call.1} parent=163 // pred_check_branch
          %4236 = sbr.rel (%p4234) target = $region168
        $region167: #{tpu_custom_call.1} parent=163 // pred_region
          %s4237 = sand.u32 %s438, 1
          %s4238 = scalar_lea.sflag [#allocation6], %s4237
          %s4239 = sand.u32 %s438, 1
          %s4240 = smul.addr %s4239, 16
          %s4241 = scalar_lea.vmem [#allocation31], %s4240
          %4242 = dma.done %s4238, 256
        $region168: #{tpu_custom_call.1} parent=163 // pred_fallthru
          _
      $region164: #{tpu_custom_call.1} parent=5 // pred_fallthru
        _
    $region6: #{tpu_custom_call.1} parent=1 // loop_footer
      %s43 = sadd.s32 1, %s39
    $region7: #{tpu_custom_call.1} parent=1 // loop_footer_branch
      %38 = sbr.rel target = $region3
    $region8: #{tpu_custom_call.1} parent=1 // loop_exit
      _
    %4243 = vsyncpa [#allocation5], 1
    %s4244 = scalar_lea.sflag [#allocation5], 1
    %4245 = vsyncpa %s4244, 1
    %4246 = vsyncpa [#allocation8], 1
    %s4247 = scalar_lea.sflag [#allocation8], 1
    %4248 = vsyncpa %s4247, 1
    %4249 = vsyncpa [#allocation11], 1
    %4250 = vsyncpa [#allocation14], 1
    %4251 = vsyncpa [#allocation17], 1
    %4252 = vsyncpa [#allocation20], 1
    %4253 = vsyncpa [#allocation23], 1
    %4254 = vsyncpa [#allocation26], 1
    %4255 = vsyncpa [#allocation29], 1
    %4256 = vsyncpa [#allocation6], 1
    %s4257 = scalar_lea.sflag [#allocation6], 1
    %4258 = vsyncpa %s4257, 1

</llo_original>
